<compile_context>
chip_gen: v5e
topology: v5e:2x2
jax: 0.10.0
libtpu: 0.0.40
codegen_flags: <defaults>
</compile_context>

<pallas_src>
import math

import jax
import jax.numpy as jnp
from jax.experimental import pallas as pl
from jax.experimental.pallas import tpu as pltpu


def _round_up(x, m):
    return (x + m - 1) // m * m


def _pad_gate_cols(a, H, Hp):
    """(K, 3H) with gate order r|z|n -> (K, 3Hp), each gate block zero-padded."""
    r, z, n = a[:, :H], a[:, H:2 * H], a[:, 2 * H:]
    pad = lambda m: jnp.pad(m, ((0, 0), (0, Hp - H)))
    return jnp.concatenate([pad(r), pad(z), pad(n)], axis=1)


# ----------------------------------------------------------------------------
# Pallas kernel: 2-layer GRU recurrence + final linear head.
# grid = (num_batch_tiles, T // TS). Each grid step runs TS timesteps for one
# batch tile; hidden states are carried across the time axis in VMEM scratch.
# ----------------------------------------------------------------------------
def stacked_gru_kernel(
    gx1_ref,    # (TS, BT, 3Hp) f32  precomputed layer-1 gate pre-activations
    whh1_ref,   # (Hp, 3Hp) f32
    bhh1n_ref,  # (1, Hp)  f32   layer-1 hidden bias, n gate only
    wih2_ref,   # (Hp, 3Hp) f32
    bx2_ref,    # (1, 3Hp) f32   layer-2 combined input-side bias
    whh2_ref,   # (Hp, 3Hp) f32
    bhh2n_ref,  # (1, Hp)  f32
    w2_ref,     # (Hp, Cp) f32   classifier head
    b2_ref,     # (1, Cp)  f32
    out_ref,    # (BT, Cp) f32
    h1_ref,     # scratch (BT, Hp) f32
    h2_ref,     # scratch (BT, Hp) f32
):
    t_blk = pl.program_id(1)

    @pl.when(t_blk == 0)
    def _():
        h1_ref[...] = jnp.zeros_like(h1_ref)
        h2_ref[...] = jnp.zeros_like(h2_ref)

    BT, Hp = h1_ref.shape
    TS = gx1_ref.shape[0]
    f32 = jnp.float32

    whh1 = whh1_ref[...]
    wih2 = wih2_ref[...]
    whh2 = whh2_ref[...]
    # Hoist bias broadcasts out of the unrolled time loop (not CSE'd per-iter).
    bhh1n = jnp.broadcast_to(bhh1n_ref[...], (BT, Hp))
    bhh2n = jnp.broadcast_to(bhh2n_ref[...], (BT, Hp))
    bx2 = jnp.broadcast_to(bx2_ref[...], (BT, 3 * Hp))

    h1 = h1_ref[...]
    h2 = h2_ref[...]

    def gru_gates(gx, gh, bhh_n, h):
        # PyTorch GRU cell, gate order (r, z, n); gx already contains the
        # input-side biases (and bhh_r/bhh_z folded in), lane-aligned slices.
        r = jax.nn.sigmoid(gx[:, :Hp] + gh[:, :Hp])
        z = jax.nn.sigmoid(gx[:, Hp:2 * Hp] + gh[:, Hp:2 * Hp])
        n = jnp.tanh(gx[:, 2 * Hp:] + r * (gh[:, 2 * Hp:] + bhh_n))
        return (1.0 - z) * n + z * h

    # Unrolled recurrence over the TS timesteps of this block.
    for ts in range(TS):
        gx1 = gx1_ref[ts]  # (BT, 3Hp)
        gh1 = jnp.dot(h1, whh1, preferred_element_type=f32)
        h1 = gru_gates(gx1, gh1, bhh1n, h1)
        # TODO(synk): inter-layer dropout (p=0.2) only applies in training
        # mode; eval semantics (identity) implemented here.
        gx2 = jnp.dot(h1, wih2, preferred_element_type=f32) + bx2
        gh2 = jnp.dot(h2, whh2, preferred_element_type=f32)
        h2 = gru_gates(gx2, gh2, bhh2n, h2)

    h1_ref[...] = h1
    h2_ref[...] = h2

    @pl.when(t_blk == pl.num_programs(1) - 1)
    def _():
        # TODO(synk): final dropout (p=0.25) is identity in eval mode.
        out_ref[...] = (
            jnp.dot(h2, w2_ref[...], preferred_element_type=f32) + b2_ref[...]
        )


def stacked_gru_forward(x_btc, params, *, ts_block=8):
    """x_btc: (B, T, I) float32 (batch_first, as in the PyTorch module)."""
    B, T, I = x_btc.shape
    H = params["whh1"].shape[0]
    C = params["w2"].shape[1]
    f32 = jnp.float32

    # Lane/sublane-aligned padded sizes.
    Hp = _round_up(H, 128)
    Cp = _round_up(C, 128)
    Bp = _round_up(B, 8)
    BT = min(Bp, 128)
    Bp = _round_up(Bp, BT)
    nb = Bp // BT
    # Largest divisor of T that is <= ts_block (leading block dim: no 8/128 rule).
    TS = max(d for d in range(1, min(T, ts_block) + 1) if T % d == 0)
    nt = T // TS

    # ---- pad gate blocks so r/z/n boundaries land on 128-lane multiples ----
    wih1p = _pad_gate_cols(params["wih1"], H, Hp)                              # (I, 3Hp)
    whh1p = jnp.pad(_pad_gate_cols(params["whh1"], H, Hp), ((0, Hp - H), (0, 0)))
    wih2p = jnp.pad(_pad_gate_cols(params["wih2"], H, Hp), ((0, Hp - H), (0, 0)))
    whh2p = jnp.pad(_pad_gate_cols(params["whh2"], H, Hp), ((0, Hp - H), (0, 0)))
    w2p = jnp.pad(params["w2"], ((0, Hp - H), (0, Cp - C)))                    # (Hp, Cp)
    b2p = jnp.pad(params["b2"], ((0, 0), (0, Cp - C)))                         # (1, Cp)

    bih1p = _pad_gate_cols(params["bih1"], H, Hp)
    bhh1p = _pad_gate_cols(params["bhh1"], H, Hp)
    bih2p = _pad_gate_cols(params["bih2"], H, Hp)
    bhh2p = _pad_gate_cols(params["bhh2"], H, Hp)

    # Pre-combined biases: r/z gates take (bih + bhh); n keeps bhh_n separate.
    bx1 = jnp.concatenate(
        [bih1p[:, :2 * Hp] + bhh1p[:, :2 * Hp], bih1p[:, 2 * Hp:]], axis=1)
    bx2 = jnp.concatenate(
        [bih2p[:, :2 * Hp] + bhh2p[:, :2 * Hp], bih2p[:, 2 * Hp:]], axis=1)
    bhh1n = bhh1p[:, 2 * Hp:]
    bhh2n = bhh2p[:, 2 * Hp:]

    # ---- hoist the layer-1 input projection off the serial critical path ----
    # One large f32 matmul over all timesteps; output written directly in the
    # time-major (T, Bp, 3Hp) layout the kernel consumes (no extra transpose
    # pass over x).
    x_pad = jnp.pad(x_btc, ((0, Bp - B), (0, 0), (0, 0)))                      # (Bp, T, I)
    gx1 = jnp.einsum(
        "bti,ig->tbg", x_pad, wih1p,
        preferred_element_type=f32) + bx1[None]                                # (T, Bp, 3Hp)

    const = lambda b, t: (0, 0)
    grid_spec = pltpu.PrefetchScalarGridSpec(
        num_scalar_prefetch=0,
        grid=(nb, nt),
        in_specs=[
            pl.BlockSpec((TS, BT, 3 * Hp), lambda b, t: (t, b, 0)),  # gx1 stream
            pl.BlockSpec((Hp, 3 * Hp), const),   # whh1
            pl.BlockSpec((1, Hp), const),        # bhh1 n-gate
            pl.BlockSpec((Hp, 3 * Hp), const),   # wih2
            pl.BlockSpec((1, 3 * Hp), const),    # layer-2 combined input bias
            pl.BlockSpec((Hp, 3 * Hp), const),   # whh2
            pl.BlockSpec((1, Hp), const),        # bhh2 n-gate
            pl.BlockSpec((Hp, Cp), const),       # w2
            pl.BlockSpec((1, Cp), const),        # b2
        ],
        out_specs=pl.BlockSpec((BT, Cp), lambda b, t: (b, 0)),
        scratch_shapes=[
            pltpu.VMEM((BT, Hp), f32),   # h1 carry
            pltpu.VMEM((BT, Hp), f32),   # h2 carry
        ],
    )

    out = pl.pallas_call(
        stacked_gru_kernel,
        out_shape=jax.ShapeDtypeStruct((Bp, Cp), f32),
        grid_spec=grid_spec,
        compiler_params=pltpu.CompilerParams(
            # batch tiles are independent (megacore-shardable on v7x);
            # the time axis is a sequential recurrence.
            dimension_semantics=("parallel", "arbitrary"),
            vmem_limit_bytes=32 * 1024 * 1024,
        ),
    )(
        gx1,
        whh1p, bhh1n,
        wih2p, bx2,
        whh2p, bhh2n,
        w2p, b2p,
    )
    return out[:B, :C]


# ----------------------------------------------------------------------------
# Pure-JAX reference mirroring the kernel's numerics (f32 throughout) for a
# tight correctness check.
# ----------------------------------------------------------------------------
def reference_forward(x_btc, params):
    H = params["whh1"].shape[0]
    f32 = jnp.float32
    B, T, _ = x_btc.shape

    def cell(x, h, wih, whh, bih, bhh):
        gx = jnp.dot(x, wih, preferred_element_type=f32) + bih
        gh = jnp.dot(h, whh, preferred_element_type=f32) + bhh
        r = jax.nn.sigmoid(gx[:, :H] + gh[:, :H])
        z = jax.nn.sigmoid(gx[:, H:2 * H] + gh[:, H:2 * H])
        n = jnp.tanh(gx[:, 2 * H:] + r * gh[:, 2 * H:])
        return (1.0 - z) * n + z * h

    h1 = jnp.zeros((B, H), f32)
    h2 = jnp.zeros((B, H), f32)
    for t in range(T):
        x_t = x_btc[:, t, :]
        h1 = cell(x_t, h1, params["wih1"], params["whh1"],
                  params["bih1"], params["bhh1"])
        h2 = cell(h1, h2, params["wih2"], params["whh2"],
                  params["bih2"], params["bhh2"])
    head = jnp.dot(h2, params["w2"], preferred_element_type=f32)
    return head + params["b2"]


# ----------------------------------------------------------------------------
# Deterministic parameter init (mirrors PyTorch shapes; values are synthetic).
# ----------------------------------------------------------------------------
def make_params(key, input_size, hidden_size, num_classes):
    H = hidden_size
    stdv_gru = 1.0 / math.sqrt(H)
    stdv2 = 1.0 / math.sqrt(num_classes)
    keys = jax.random.split(key, 10)
    u = lambda k, shape, s: jax.random.uniform(
        k, shape, jnp.float32, minval=-s, maxval=s)
    # GRU weights stored pre-transposed: (in_features, 3H), gate order r,z,n.
    return {
        "wih1": u(keys[0], (input_size, 3 * H), stdv_gru),
        "whh1": u(keys[1], (H, 3 * H), stdv_gru),
        "bih1": u(keys[2], (1, 3 * H), stdv_gru),
        "bhh1": u(keys[3], (1, 3 * H), stdv_gru),
        "wih2": u(keys[4], (H, 3 * H), stdv_gru),
        "whh2": u(keys[5], (H, 3 * H), stdv_gru),
        "bih2": u(keys[6], (1, 3 * H), stdv_gru),
        "bhh2": u(keys[7], (1, 3 * H), stdv_gru),
        "w2":   u(keys[8], (H, num_classes), stdv2),
        "b2":   u(keys[9], (1, num_classes), stdv2),
    }


if __name__ == "__main__":
    B, T, INPUT, HIDDEN, CLASSES = 2, 8, 4, 32, 8

    key = jax.random.PRNGKey(0)
    kx, kp = jax.random.split(key)
    x = jax.random.normal(kx, (B, T, INPUT), jnp.float32)  # batch_first (B,T,I)
    params = make_params(kp, INPUT, HIDDEN, CLASSES)

    out = stacked_gru_forward(x, params)
    out = jax.block_until_ready(out)

    ref = reference_forward(x, params)
    assert out.shape == (B, CLASSES), out.shape
    err = float(jnp.max(jnp.abs(out - ref)))
    assert jnp.allclose(out, ref, atol=1e-3, rtol=1e-3), ("mismatch vs reference", err)

    print("KERNEL_OK")
</pallas_src>

<mosaic_0001>
module attributes {stable_mosaic.version = 11 : i64} {
  func.func @stacked_gru_kernel(%arg0: i32, %arg1: i32, %arg2: memref<8x8x384xf32, #tpu.memory_space<vmem>>, %arg3: memref<128x384xf32, #tpu.memory_space<vmem>>, %arg4: memref<1x128xf32, #tpu.memory_space<vmem>>, %arg5: memref<128x384xf32, #tpu.memory_space<vmem>>, %arg6: memref<1x384xf32, #tpu.memory_space<vmem>>, %arg7: memref<128x384xf32, #tpu.memory_space<vmem>>, %arg8: memref<1x128xf32, #tpu.memory_space<vmem>>, %arg9: memref<128x128xf32, #tpu.memory_space<vmem>>, %arg10: memref<1x128xf32, #tpu.memory_space<vmem>>, %arg11: memref<8x128xf32, #tpu.memory_space<vmem>>, %arg12: memref<8x128xf32, #tpu.memory_space<vmem>>, %arg13: memref<8x128xf32, #tpu.memory_space<vmem>>) attributes {dimension_semantics = [#tpu.dimension_semantics<parallel>, #tpu.dimension_semantics<arbitrary>], iteration_bounds = array<i64: 1, 1>, scalar_prefetch = 0 : i64, scratch_operands = 2 : i64, tpu.core_type = #tpu.core_type<tc>, window_params = [{transform_indices = @transform_0, window_bounds = array<i64: 8, 8, 384>}, {pipeline_mode = #tpu.pipeline_mode<synchronous>, transform_indices = @transform_1, window_bounds = array<i64: 128, 384>}, {pipeline_mode = #tpu.pipeline_mode<synchronous>, transform_indices = @transform_2, window_bounds = array<i64: 1, 128>}, {pipeline_mode = #tpu.pipeline_mode<synchronous>, transform_indices = @transform_3, window_bounds = array<i64: 128, 384>}, {pipeline_mode = #tpu.pipeline_mode<synchronous>, transform_indices = @transform_4, window_bounds = array<i64: 1, 384>}, {pipeline_mode = #tpu.pipeline_mode<synchronous>, transform_indices = @transform_5, window_bounds = array<i64: 128, 384>}, {pipeline_mode = #tpu.pipeline_mode<synchronous>, transform_indices = @transform_6, window_bounds = array<i64: 1, 128>}, {pipeline_mode = #tpu.pipeline_mode<synchronous>, transform_indices = @transform_7, window_bounds = array<i64: 128, 128>}, {pipeline_mode = #tpu.pipeline_mode<synchronous>, transform_indices = @transform_8, window_bounds = array<i64: 1, 128>}, {transform_indices = @transform_9, window_bounds = array<i64: 8, 128>}]} {
    %c0_i32 = arith.constant 0 : i32
    %0 = arith.cmpi eq, %arg1, %c0_i32 : i32
    %1 = arith.extui %0 : i1 to i32
    %c0_i32_0 = arith.constant 0 : i32
    %2 = arith.cmpi ne, %1, %c0_i32_0 : i32
    scf.if %2 {
      %cst_110 = arith.constant 0.000000e+00 : f32
      %502 = vector.broadcast %cst_110 : f32 to vector<8x128xf32>
      %c0_111 = arith.constant 0 : index
      %c0_112 = arith.constant 0 : index
      %503 = vector.load %arg12[%c0_111, %c0_112] : memref<8x128xf32, #tpu.memory_space<vmem>>, vector<8x128xf32>
      tpu.vector_store %arg12[%c0_111, %c0_112], %502 {strides = array<i32>} : memref<8x128xf32, #tpu.memory_space<vmem>>, vector<8x128xf32>,
      %cst_113 = arith.constant 0.000000e+00 : f32
      %504 = vector.broadcast %cst_113 : f32 to vector<8x128xf32>
      %c0_114 = arith.constant 0 : index
      %c0_115 = arith.constant 0 : index
      %505 = vector.load %arg13[%c0_114, %c0_115] : memref<8x128xf32, #tpu.memory_space<vmem>>, vector<8x128xf32>
      tpu.vector_store %arg13[%c0_114, %c0_115], %504 {strides = array<i32>} : memref<8x128xf32, #tpu.memory_space<vmem>>, vector<8x128xf32>,
    } else {
    }
    %c0 = arith.constant 0 : index
    %c0_1 = arith.constant 0 : index
    %3 = vector.load %arg3[%c0, %c0_1] : memref<128x384xf32, #tpu.memory_space<vmem>>, vector<128x384xf32>
    %c0_2 = arith.constant 0 : index
    %c0_3 = arith.constant 0 : index
    %4 = vector.load %arg5[%c0_2, %c0_3] : memref<128x384xf32, #tpu.memory_space<vmem>>, vector<128x384xf32>
    %c0_4 = arith.constant 0 : index
    %c0_5 = arith.constant 0 : index
    %5 = vector.load %arg7[%c0_4, %c0_5] : memref<128x384xf32, #tpu.memory_space<vmem>>, vector<128x384xf32>
    %c0_6 = arith.constant 0 : index
    %c0_7 = arith.constant 0 : index
    %6 = vector.load %arg4[%c0_6, %c0_7] : memref<1x128xf32, #tpu.memory_space<vmem>>, vector<1x128xf32>
    %7 = vector.shape_cast %6 : vector<1x128xf32> to vector<1x128xf32>
    %8 = vector.broadcast %7 : vector<1x128xf32> to vector<8x128xf32>
    %c0_8 = arith.constant 0 : index
    %c0_9 = arith.constant 0 : index
    %9 = vector.load %arg8[%c0_8, %c0_9] : memref<1x128xf32, #tpu.memory_space<vmem>>, vector<1x128xf32>
    %10 = vector.shape_cast %9 : vector<1x128xf32> to vector<1x128xf32>
    %11 = vector.broadcast %10 : vector<1x128xf32> to vector<8x128xf32>
    %c0_10 = arith.constant 0 : index
    %c0_11 = arith.constant 0 : index
    %12 = vector.load %arg6[%c0_10, %c0_11] : memref<1x384xf32, #tpu.memory_space<vmem>>, vector<1x384xf32>
    %13 = vector.shape_cast %12 : vector<1x384xf32> to vector<1x384xf32>
    %14 = vector.broadcast %13 : vector<1x384xf32> to vector<8x384xf32>
    %c0_12 = arith.constant 0 : index
    %c0_13 = arith.constant 0 : index
    %15 = vector.load %arg12[%c0_12, %c0_13] : memref<8x128xf32, #tpu.memory_space<vmem>>, vector<8x128xf32>
    %c0_14 = arith.constant 0 : index
    %c0_15 = arith.constant 0 : index
    %16 = vector.load %arg13[%c0_14, %c0_15] : memref<8x128xf32, #tpu.memory_space<vmem>>, vector<8x128xf32>
    %c0_16 = arith.constant 0 : index
    %c0_17 = arith.constant 0 : index
    %c0_18 = arith.constant 0 : index
    %17 = vector.load %arg2[%c0_16, %c0_17, %c0_18] : memref<8x8x384xf32, #tpu.memory_space<vmem>>, vector<1x8x384xf32>
    %18 = vector.shape_cast %17 : vector<1x8x384xf32> to vector<8x384xf32>
    %cst = arith.constant dense<0.000000e+00> : vector<8x384xf32>
    %19 = tpu.matmul %15, %3, %cst {dimension_numbers = #tpu.dot_dimension_numbers<[1], [0], [0], [1], [0, 0, 1, 1], [], []>} : vector<8x128xf32>, vector<128x384xf32>, vector<8x384xf32> -> vector<8x384xf32>
    %20 = vector.extract_strided_slice %18 {offsets = [0, 0], sizes = [8, 128], strides = [1, 1]} : vector<8x384xf32> to vector<8x128xf32>
    %21 = vector.extract_strided_slice %19 {offsets = [0, 0], sizes = [8, 128], strides = [1, 1]} : vector<8x384xf32> to vector<8x128xf32>
    %22 = arith.addf %20, %21 : vector<8x128xf32>
    %23 = arith.negf %22 : vector<8x128xf32>
    %24 = math.exp %23 : vector<8x128xf32>
    %cst_19 = arith.constant 1.000000e+00 : f32
    %25 = vector.broadcast %cst_19 : f32 to vector<8x128xf32>
    %26 = arith.addf %25, %24 : vector<8x128xf32>
    %27 = arith.divf %25, %26 : vector<8x128xf32>
    %28 = vector.extract_strided_slice %18 {offsets = [0, 128], sizes = [8, 128], strides = [1, 1]} : vector<8x384xf32> to vector<8x128xf32>
    %29 = vector.extract_strided_slice %19 {offsets = [0, 128], sizes = [8, 128], strides = [1, 1]} : vector<8x384xf32> to vector<8x128xf32>
    %30 = arith.addf %28, %29 : vector<8x128xf32>
    %31 = arith.negf %30 : vector<8x128xf32>
    %32 = math.exp %31 : vector<8x128xf32>
    %cst_20 = arith.constant 1.000000e+00 : f32
    %33 = vector.broadcast %cst_20 : f32 to vector<8x128xf32>
    %34 = arith.addf %33, %32 : vector<8x128xf32>
    %35 = arith.divf %33, %34 : vector<8x128xf32>
    %36 = vector.extract_strided_slice %18 {offsets = [0, 256], sizes = [8, 128], strides = [1, 1]} : vector<8x384xf32> to vector<8x128xf32>
    %37 = vector.extract_strided_slice %19 {offsets = [0, 256], sizes = [8, 128], strides = [1, 1]} : vector<8x384xf32> to vector<8x128xf32>
    %38 = arith.addf %37, %8 : vector<8x128xf32>
    %39 = arith.mulf %27, %38 : vector<8x128xf32>
    %40 = arith.addf %36, %39 : vector<8x128xf32>
    %41 = math.tanh %40 : vector<8x128xf32>
    %cst_21 = arith.constant 1.000000e+00 : f32
    %42 = vector.broadcast %cst_21 : f32 to vector<8x128xf32>
    %43 = arith.subf %42, %35 : vector<8x128xf32>
    %44 = arith.mulf %43, %41 : vector<8x128xf32>
    %45 = arith.mulf %35, %15 : vector<8x128xf32>
    %46 = arith.addf %44, %45 : vector<8x128xf32>
    %cst_22 = arith.constant dense<0.000000e+00> : vector<8x384xf32>
    %47 = tpu.matmul %46, %4, %cst_22 {dimension_numbers = #tpu.dot_dimension_numbers<[1], [0], [0], [1], [0, 0, 1, 1], [], []>} : vector<8x128xf32>, vector<128x384xf32>, vector<8x384xf32> -> vector<8x384xf32>
    %48 = arith.addf %47, %14 : vector<8x384xf32>
    %cst_23 = arith.constant dense<0.000000e+00> : vector<8x384xf32>
    %49 = tpu.matmul %16, %5, %cst_23 {dimension_numbers = #tpu.dot_dimension_numbers<[1], [0], [0], [1], [0, 0, 1, 1], [], []>} : vector<8x128xf32>, vector<128x384xf32>, vector<8x384xf32> -> vector<8x384xf32>
    %50 = vector.extract_strided_slice %48 {offsets = [0, 0], sizes = [8, 128], strides = [1, 1]} : vector<8x384xf32> to vector<8x128xf32>
    %51 = vector.extract_strided_slice %49 {offsets = [0, 0], sizes = [8, 128], strides = [1, 1]} : vector<8x384xf32> to vector<8x128xf32>
    %52 = arith.addf %50, %51 : vector<8x128xf32>
    %53 = arith.negf %52 : vector<8x128xf32>
    %54 = math.exp %53 : vector<8x128xf32>
    %cst_24 = arith.constant 1.000000e+00 : f32
    %55 = vector.broadcast %cst_24 : f32 to vector<8x128xf32>
    %56 = arith.addf %55, %54 : vector<8x128xf32>
    %57 = arith.divf %55, %56 : vector<8x128xf32>
    %58 = vector.extract_strided_slice %48 {offsets = [0, 128], sizes = [8, 128], strides = [1, 1]} : vector<8x384xf32> to vector<8x128xf32>
    %59 = vector.extract_strided_slice %49 {offsets = [0, 128], sizes = [8, 128], strides = [1, 1]} : vector<8x384xf32> to vector<8x128xf32>
    %60 = arith.addf %58, %59 : vector<8x128xf32>
    %61 = arith.negf %60 : vector<8x128xf32>
    %62 = math.exp %61 : vector<8x128xf32>
    %cst_25 = arith.constant 1.000000e+00 : f32
    %63 = vector.broadcast %cst_25 : f32 to vector<8x128xf32>
    %64 = arith.addf %63, %62 : vector<8x128xf32>
    %65 = arith.divf %63, %64 : vector<8x128xf32>
    %66 = vector.extract_strided_slice %48 {offsets = [0, 256], sizes = [8, 128], strides = [1, 1]} : vector<8x384xf32> to vector<8x128xf32>
    %67 = vector.extract_strided_slice %49 {offsets = [0, 256], sizes = [8, 128], strides = [1, 1]} : vector<8x384xf32> to vector<8x128xf32>
    %68 = arith.addf %67, %11 : vector<8x128xf32>
    %69 = arith.mulf %57, %68 : vector<8x128xf32>
    %70 = arith.addf %66, %69 : vector<8x128xf32>
    %71 = math.tanh %70 : vector<8x128xf32>
    %cst_26 = arith.constant 1.000000e+00 : f32
    %72 = vector.broadcast %cst_26 : f32 to vector<8x128xf32>
    %73 = arith.subf %72, %65 : vector<8x128xf32>
    %74 = arith.mulf %73, %71 : vector<8x128xf32>
    %75 = arith.mulf %65, %16 : vector<8x128xf32>
    %76 = arith.addf %74, %75 : vector<8x128xf32>
    %c1 = arith.constant 1 : index
    %c0_27 = arith.constant 0 : index
    %c0_28 = arith.constant 0 : index
    %77 = vector.load %arg2[%c1, %c0_27, %c0_28] : memref<8x8x384xf32, #tpu.memory_space<vmem>>, vector<1x8x384xf32>
    %78 = vector.shape_cast %77 : vector<1x8x384xf32> to vector<8x384xf32>
    %cst_29 = arith.constant dense<0.000000e+00> : vector<8x384xf32>
    %79 = tpu.matmul %46, %3, %cst_29 {dimension_numbers = #tpu.dot_dimension_numbers<[1], [0], [0], [1], [0, 0, 1, 1], [], []>} : vector<8x128xf32>, vector<128x384xf32>, vector<8x384xf32> -> vector<8x384xf32>
    %80 = vector.extract_strided_slice %78 {offsets = [0, 0], sizes = [8, 128], strides = [1, 1]} : vector<8x384xf32> to vector<8x128xf32>
    %81 = vector.extract_strided_slice %79 {offsets = [0, 0], sizes = [8, 128], strides = [1, 1]} : vector<8x384xf32> to vector<8x128xf32>
    %82 = arith.addf %80, %81 : vector<8x128xf32>
    %83 = arith.negf %82 : vector<8x128xf32>
    %84 = math.exp %83 : vector<8x128xf32>
    %cst_30 = arith.constant 1.000000e+00 : f32
    %85 = vector.broadcast %cst_30 : f32 to vector<8x128xf32>
    %86 = arith.addf %85, %84 : vector<8x128xf32>
    %87 = arith.divf %85, %86 : vector<8x128xf32>
    %88 = vector.extract_strided_slice %78 {offsets = [0, 128], sizes = [8, 128], strides = [1, 1]} : vector<8x384xf32> to vector<8x128xf32>
    %89 = vector.extract_strided_slice %79 {offsets = [0, 128], sizes = [8, 128], strides = [1, 1]} : vector<8x384xf32> to vector<8x128xf32>
    %90 = arith.addf %88, %89 : vector<8x128xf32>
    %91 = arith.negf %90 : vector<8x128xf32>
    %92 = math.exp %91 : vector<8x128xf32>
    %cst_31 = arith.constant 1.000000e+00 : f32
    %93 = vector.broadcast %cst_31 : f32 to vector<8x128xf32>
    %94 = arith.addf %93, %92 : vector<8x128xf32>
    %95 = arith.divf %93, %94 : vector<8x128xf32>
    %96 = vector.extract_strided_slice %78 {offsets = [0, 256], sizes = [8, 128], strides = [1, 1]} : vector<8x384xf32> to vector<8x128xf32>
    %97 = vector.extract_strided_slice %79 {offsets = [0, 256], sizes = [8, 128], strides = [1, 1]} : vector<8x384xf32> to vector<8x128xf32>
    %98 = arith.addf %97, %8 : vector<8x128xf32>
    %99 = arith.mulf %87, %98 : vector<8x128xf32>
    %100 = arith.addf %96, %99 : vector<8x128xf32>
    %101 = math.tanh %100 : vector<8x128xf32>
    %cst_32 = arith.constant 1.000000e+00 : f32
    %102 = vector.broadcast %cst_32 : f32 to vector<8x128xf32>
    %103 = arith.subf %102, %95 : vector<8x128xf32>
    %104 = arith.mulf %103, %101 : vector<8x128xf32>
    %105 = arith.mulf %95, %46 : vector<8x128xf32>
    %106 = arith.addf %104, %105 : vector<8x128xf32>
    %cst_33 = arith.constant dense<0.000000e+00> : vector<8x384xf32>
    %107 = tpu.matmul %106, %4, %cst_33 {dimension_numbers = #tpu.dot_dimension_numbers<[1], [0], [0], [1], [0, 0, 1, 1], [], []>} : vector<8x128xf32>, vector<128x384xf32>, vector<8x384xf32> -> vector<8x384xf32>
    %108 = arith.addf %107, %14 : vector<8x384xf32>
    %cst_34 = arith.constant dense<0.000000e+00> : vector<8x384xf32>
    %109 = tpu.matmul %76, %5, %cst_34 {dimension_numbers = #tpu.dot_dimension_numbers<[1], [0], [0], [1], [0, 0, 1, 1], [], []>} : vector<8x128xf32>, vector<128x384xf32>, vector<8x384xf32> -> vector<8x384xf32>
    %110 = vector.extract_strided_slice %108 {offsets = [0, 0], sizes = [8, 128], strides = [1, 1]} : vector<8x384xf32> to vector<8x128xf32>
    %111 = vector.extract_strided_slice %109 {offsets = [0, 0], sizes = [8, 128], strides = [1, 1]} : vector<8x384xf32> to vector<8x128xf32>
    %112 = arith.addf %110, %111 : vector<8x128xf32>
    %113 = arith.negf %112 : vector<8x128xf32>
    %114 = math.exp %113 : vector<8x128xf32>
    %cst_35 = arith.constant 1.000000e+00 : f32
    %115 = vector.broadcast %cst_35 : f32 to vector<8x128xf32>
    %116 = arith.addf %115, %114 : vector<8x128xf32>
    %117 = arith.divf %115, %116 : vector<8x128xf32>
    %118 = vector.extract_strided_slice %108 {offsets = [0, 128], sizes = [8, 128], strides = [1, 1]} : vector<8x384xf32> to vector<8x128xf32>
    %119 = vector.extract_strided_slice %109 {offsets = [0, 128], sizes = [8, 128], strides = [1, 1]} : vector<8x384xf32> to vector<8x128xf32>
    %120 = arith.addf %118, %119 : vector<8x128xf32>
    %121 = arith.negf %120 : vector<8x128xf32>
    %122 = math.exp %121 : vector<8x128xf32>
    %cst_36 = arith.constant 1.000000e+00 : f32
    %123 = vector.broadcast %cst_36 : f32 to vector<8x128xf32>
    %124 = arith.addf %123, %122 : vector<8x128xf32>
    %125 = arith.divf %123, %124 : vector<8x128xf32>
    %126 = vector.extract_strided_slice %108 {offsets = [0, 256], sizes = [8, 128], strides = [1, 1]} : vector<8x384xf32> to vector<8x128xf32>
    %127 = vector.extract_strided_slice %109 {offsets = [0, 256], sizes = [8, 128], strides = [1, 1]} : vector<8x384xf32> to vector<8x128xf32>
    %128 = arith.addf %127, %11 : vector<8x128xf32>
    %129 = arith.mulf %117, %128 : vector<8x128xf32>
    %130 = arith.addf %126, %129 : vector<8x128xf32>
    %131 = math.tanh %130 : vector<8x128xf32>
    %cst_37 = arith.constant 1.000000e+00 : f32
    %132 = vector.broadcast %cst_37 : f32 to vector<8x128xf32>
    %133 = arith.subf %132, %125 : vector<8x128xf32>
    %134 = arith.mulf %133, %131 : vector<8x128xf32>
    %135 = arith.mulf %125, %76 : vector<8x128xf32>
    %136 = arith.addf %134, %135 : vector<8x128xf32>
    %c2 = arith.constant 2 : index
    %c0_38 = arith.constant 0 : index
    %c0_39 = arith.constant 0 : index
    %137 = vector.load %arg2[%c2, %c0_38, %c0_39] : memref<8x8x384xf32, #tpu.memory_space<vmem>>, vector<1x8x384xf32>
    %138 = vector.shape_cast %137 : vector<1x8x384xf32> to vector<8x384xf32>
    %cst_40 = arith.constant dense<0.000000e+00> : vector<8x384xf32>
    %139 = tpu.matmul %106, %3, %cst_40 {dimension_numbers = #tpu.dot_dimension_numbers<[1], [0], [0], [1], [0, 0, 1, 1], [], []>} : vector<8x128xf32>, vector<128x384xf32>, vector<8x384xf32> -> vector<8x384xf32>
    %140 = vector.extract_strided_slice %138 {offsets = [0, 0], sizes = [8, 128], strides = [1, 1]} : vector<8x384xf32> to vector<8x128xf32>
    %141 = vector.extract_strided_slice %139 {offsets = [0, 0], sizes = [8, 128], strides = [1, 1]} : vector<8x384xf32> to vector<8x128xf32>
    %142 = arith.addf %140, %141 : vector<8x128xf32>
    %143 = arith.negf %142 : vector<8x128xf32>
    %144 = math.exp %143 : vector<8x128xf32>
    %cst_41 = arith.constant 1.000000e+00 : f32
    %145 = vector.broadcast %cst_41 : f32 to vector<8x128xf32>
    %146 = arith.addf %145, %144 : vector<8x128xf32>
    %147 = arith.divf %145, %146 : vector<8x128xf32>
    %148 = vector.extract_strided_slice %138 {offsets = [0, 128], sizes = [8, 128], strides = [1, 1]} : vector<8x384xf32> to vector<8x128xf32>
    %149 = vector.extract_strided_slice %139 {offsets = [0, 128], sizes = [8, 128], strides = [1, 1]} : vector<8x384xf32> to vector<8x128xf32>
    %150 = arith.addf %148, %149 : vector<8x128xf32>
    %151 = arith.negf %150 : vector<8x128xf32>
    %152 = math.exp %151 : vector<8x128xf32>
    %cst_42 = arith.constant 1.000000e+00 : f32
    %153 = vector.broadcast %cst_42 : f32 to vector<8x128xf32>
    %154 = arith.addf %153, %152 : vector<8x128xf32>
    %155 = arith.divf %153, %154 : vector<8x128xf32>
    %156 = vector.extract_strided_slice %138 {offsets = [0, 256], sizes = [8, 128], strides = [1, 1]} : vector<8x384xf32> to vector<8x128xf32>
    %157 = vector.extract_strided_slice %139 {offsets = [0, 256], sizes = [8, 128], strides = [1, 1]} : vector<8x384xf32> to vector<8x128xf32>
    %158 = arith.addf %157, %8 : vector<8x128xf32>
    %159 = arith.mulf %147, %158 : vector<8x128xf32>
    %160 = arith.addf %156, %159 : vector<8x128xf32>
    %161 = math.tanh %160 : vector<8x128xf32>
    %cst_43 = arith.constant 1.000000e+00 : f32
    %162 = vector.broadcast %cst_43 : f32 to vector<8x128xf32>
    %163 = arith.subf %162, %155 : vector<8x128xf32>
    %164 = arith.mulf %163, %161 : vector<8x128xf32>
    %165 = arith.mulf %155, %106 : vector<8x128xf32>
    %166 = arith.addf %164, %165 : vector<8x128xf32>
    %cst_44 = arith.constant dense<0.000000e+00> : vector<8x384xf32>
    %167 = tpu.matmul %166, %4, %cst_44 {dimension_numbers = #tpu.dot_dimension_numbers<[1], [0], [0], [1], [0, 0, 1, 1], [], []>} : vector<8x128xf32>, vector<128x384xf32>, vector<8x384xf32> -> vector<8x384xf32>
    %168 = arith.addf %167, %14 : vector<8x384xf32>
    %cst_45 = arith.constant dense<0.000000e+00> : vector<8x384xf32>
    %169 = tpu.matmul %136, %5, %cst_45 {dimension_numbers = #tpu.dot_dimension_numbers<[1], [0], [0], [1], [0, 0, 1, 1], [], []>} : vector<8x128xf32>, vector<128x384xf32>, vector<8x384xf32> -> vector<8x384xf32>
    %170 = vector.extract_strided_slice %168 {offsets = [0, 0], sizes = [8, 128], strides = [1, 1]} : vector<8x384xf32> to vector<8x128xf32>
    %171 = vector.extract_strided_slice %169 {offsets = [0, 0], sizes = [8, 128], strides = [1, 1]} : vector<8x384xf32> to vector<8x128xf32>
    %172 = arith.addf %170, %171 : vector<8x128xf32>
    %173 = arith.negf %172 : vector<8x128xf32>
    %174 = math.exp %173 : vector<8x128xf32>
    %cst_46 = arith.constant 1.000000e+00 : f32
    %175 = vector.broadcast %cst_46 : f32 to vector<8x128xf32>
    %176 = arith.addf %175, %174 : vector<8x128xf32>
    %177 = arith.divf %175, %176 : vector<8x128xf32>
    %178 = vector.extract_strided_slice %168 {offsets = [0, 128], sizes = [8, 128], strides = [1, 1]} : vector<8x384xf32> to vector<8x128xf32>
    %179 = vector.extract_strided_slice %169 {offsets = [0, 128], sizes = [8, 128], strides = [1, 1]} : vector<8x384xf32> to vector<8x128xf32>
    %180 = arith.addf %178, %179 : vector<8x128xf32>
    %181 = arith.negf %180 : vector<8x128xf32>
    %182 = math.exp %181 : vector<8x128xf32>
    %cst_47 = arith.constant 1.000000e+00 : f32
    %183 = vector.broadcast %cst_47 : f32 to vector<8x128xf32>
    %184 = arith.addf %183, %182 : vector<8x128xf32>
    %185 = arith.divf %183, %184 : vector<8x128xf32>
    %186 = vector.extract_strided_slice %168 {offsets = [0, 256], sizes = [8, 128], strides = [1, 1]} : vector<8x384xf32> to vector<8x128xf32>
    %187 = vector.extract_strided_slice %169 {offsets = [0, 256], sizes = [8, 128], strides = [1, 1]} : vector<8x384xf32> to vector<8x128xf32>
    %188 = arith.addf %187, %11 : vector<8x128xf32>
    %189 = arith.mulf %177, %188 : vector<8x128xf32>
    %190 = arith.addf %186, %189 : vector<8x128xf32>
    %191 = math.tanh %190 : vector<8x128xf32>
    %cst_48 = arith.constant 1.000000e+00 : f32
    %192 = vector.broadcast %cst_48 : f32 to vector<8x128xf32>
    %193 = arith.subf %192, %185 : vector<8x128xf32>
    %194 = arith.mulf %193, %191 : vector<8x128xf32>
    %195 = arith.mulf %185, %136 : vector<8x128xf32>
    %196 = arith.addf %194, %195 : vector<8x128xf32>
    %c3 = arith.constant 3 : index
    %c0_49 = arith.constant 0 : index
    %c0_50 = arith.constant 0 : index
    %197 = vector.load %arg2[%c3, %c0_49, %c0_50] : memref<8x8x384xf32, #tpu.memory_space<vmem>>, vector<1x8x384xf32>
    %198 = vector.shape_cast %197 : vector<1x8x384xf32> to vector<8x384xf32>
    %cst_51 = arith.constant dense<0.000000e+00> : vector<8x384xf32>
    %199 = tpu.matmul %166, %3, %cst_51 {dimension_numbers = #tpu.dot_dimension_numbers<[1], [0], [0], [1], [0, 0, 1, 1], [], []>} : vector<8x128xf32>, vector<128x384xf32>, vector<8x384xf32> -> vector<8x384xf32>
    %200 = vector.extract_strided_slice %198 {offsets = [0, 0], sizes = [8, 128], strides = [1, 1]} : vector<8x384xf32> to vector<8x128xf32>
    %201 = vector.extract_strided_slice %199 {offsets = [0, 0], sizes = [8, 128], strides = [1, 1]} : vector<8x384xf32> to vector<8x128xf32>
    %202 = arith.addf %200, %201 : vector<8x128xf32>
    %203 = arith.negf %202 : vector<8x128xf32>
    %204 = math.exp %203 : vector<8x128xf32>
    %cst_52 = arith.constant 1.000000e+00 : f32
    %205 = vector.broadcast %cst_52 : f32 to vector<8x128xf32>
    %206 = arith.addf %205, %204 : vector<8x128xf32>
    %207 = arith.divf %205, %206 : vector<8x128xf32>
    %208 = vector.extract_strided_slice %198 {offsets = [0, 128], sizes = [8, 128], strides = [1, 1]} : vector<8x384xf32> to vector<8x128xf32>
    %209 = vector.extract_strided_slice %199 {offsets = [0, 128], sizes = [8, 128], strides = [1, 1]} : vector<8x384xf32> to vector<8x128xf32>
    %210 = arith.addf %208, %209 : vector<8x128xf32>
    %211 = arith.negf %210 : vector<8x128xf32>
    %212 = math.exp %211 : vector<8x128xf32>
    %cst_53 = arith.constant 1.000000e+00 : f32
    %213 = vector.broadcast %cst_53 : f32 to vector<8x128xf32>
    %214 = arith.addf %213, %212 : vector<8x128xf32>
    %215 = arith.divf %213, %214 : vector<8x128xf32>
    %216 = vector.extract_strided_slice %198 {offsets = [0, 256], sizes = [8, 128], strides = [1, 1]} : vector<8x384xf32> to vector<8x128xf32>
    %217 = vector.extract_strided_slice %199 {offsets = [0, 256], sizes = [8, 128], strides = [1, 1]} : vector<8x384xf32> to vector<8x128xf32>
    %218 = arith.addf %217, %8 : vector<8x128xf32>
    %219 = arith.mulf %207, %218 : vector<8x128xf32>
    %220 = arith.addf %216, %219 : vector<8x128xf32>
    %221 = math.tanh %220 : vector<8x128xf32>
    %cst_54 = arith.constant 1.000000e+00 : f32
    %222 = vector.broadcast %cst_54 : f32 to vector<8x128xf32>
    %223 = arith.subf %222, %215 : vector<8x128xf32>
    %224 = arith.mulf %223, %221 : vector<8x128xf32>
    %225 = arith.mulf %215, %166 : vector<8x128xf32>
    %226 = arith.addf %224, %225 : vector<8x128xf32>
    %cst_55 = arith.constant dense<0.000000e+00> : vector<8x384xf32>
    %227 = tpu.matmul %226, %4, %cst_55 {dimension_numbers = #tpu.dot_dimension_numbers<[1], [0], [0], [1], [0, 0, 1, 1], [], []>} : vector<8x128xf32>, vector<128x384xf32>, vector<8x384xf32> -> vector<8x384xf32>
    %228 = arith.addf %227, %14 : vector<8x384xf32>
    %cst_56 = arith.constant dense<0.000000e+00> : vector<8x384xf32>
    %229 = tpu.matmul %196, %5, %cst_56 {dimension_numbers = #tpu.dot_dimension_numbers<[1], [0], [0], [1], [0, 0, 1, 1], [], []>} : vector<8x128xf32>, vector<128x384xf32>, vector<8x384xf32> -> vector<8x384xf32>
    %230 = vector.extract_strided_slice %228 {offsets = [0, 0], sizes = [8, 128], strides = [1, 1]} : vector<8x384xf32> to vector<8x128xf32>
    %231 = vector.extract_strided_slice %229 {offsets = [0, 0], sizes = [8, 128], strides = [1, 1]} : vector<8x384xf32> to vector<8x128xf32>
    %232 = arith.addf %230, %231 : vector<8x128xf32>
    %233 = arith.negf %232 : vector<8x128xf32>
    %234 = math.exp %233 : vector<8x128xf32>
    %cst_57 = arith.constant 1.000000e+00 : f32
    %235 = vector.broadcast %cst_57 : f32 to vector<8x128xf32>
    %236 = arith.addf %235, %234 : vector<8x128xf32>
    %237 = arith.divf %235, %236 : vector<8x128xf32>
    %238 = vector.extract_strided_slice %228 {offsets = [0, 128], sizes = [8, 128], strides = [1, 1]} : vector<8x384xf32> to vector<8x128xf32>
    %239 = vector.extract_strided_slice %229 {offsets = [0, 128], sizes = [8, 128], strides = [1, 1]} : vector<8x384xf32> to vector<8x128xf32>
    %240 = arith.addf %238, %239 : vector<8x128xf32>
    %241 = arith.negf %240 : vector<8x128xf32>
    %242 = math.exp %241 : vector<8x128xf32>
    %cst_58 = arith.constant 1.000000e+00 : f32
    %243 = vector.broadcast %cst_58 : f32 to vector<8x128xf32>
    %244 = arith.addf %243, %242 : vector<8x128xf32>
    %245 = arith.divf %243, %244 : vector<8x128xf32>
    %246 = vector.extract_strided_slice %228 {offsets = [0, 256], sizes = [8, 128], strides = [1, 1]} : vector<8x384xf32> to vector<8x128xf32>
    %247 = vector.extract_strided_slice %229 {offsets = [0, 256], sizes = [8, 128], strides = [1, 1]} : vector<8x384xf32> to vector<8x128xf32>
    %248 = arith.addf %247, %11 : vector<8x128xf32>
    %249 = arith.mulf %237, %248 : vector<8x128xf32>
    %250 = arith.addf %246, %249 : vector<8x128xf32>
    %251 = math.tanh %250 : vector<8x128xf32>
    %cst_59 = arith.constant 1.000000e+00 : f32
    %252 = vector.broadcast %cst_59 : f32 to vector<8x128xf32>
    %253 = arith.subf %252, %245 : vector<8x128xf32>
    %254 = arith.mulf %253, %251 : vector<8x128xf32>
    %255 = arith.mulf %245, %196 : vector<8x128xf32>
    %256 = arith.addf %254, %255 : vector<8x128xf32>
    %c4 = arith.constant 4 : index
    %c0_60 = arith.constant 0 : index
    %c0_61 = arith.constant 0 : index
    %257 = vector.load %arg2[%c4, %c0_60, %c0_61] : memref<8x8x384xf32, #tpu.memory_space<vmem>>, vector<1x8x384xf32>
    %258 = vector.shape_cast %257 : vector<1x8x384xf32> to vector<8x384xf32>
    %cst_62 = arith.constant dense<0.000000e+00> : vector<8x384xf32>
    %259 = tpu.matmul %226, %3, %cst_62 {dimension_numbers = #tpu.dot_dimension_numbers<[1], [0], [0], [1], [0, 0, 1, 1], [], []>} : vector<8x128xf32>, vector<128x384xf32>, vector<8x384xf32> -> vector<8x384xf32>
    %260 = vector.extract_strided_slice %258 {offsets = [0, 0], sizes = [8, 128], strides = [1, 1]} : vector<8x384xf32> to vector<8x128xf32>
    %261 = vector.extract_strided_slice %259 {offsets = [0, 0], sizes = [8, 128], strides = [1, 1]} : vector<8x384xf32> to vector<8x128xf32>
    %262 = arith.addf %260, %261 : vector<8x128xf32>
    %263 = arith.negf %262 : vector<8x128xf32>
    %264 = math.exp %263 : vector<8x128xf32>
    %cst_63 = arith.constant 1.000000e+00 : f32
    %265 = vector.broadcast %cst_63 : f32 to vector<8x128xf32>
    %266 = arith.addf %265, %264 : vector<8x128xf32>
    %267 = arith.divf %265, %266 : vector<8x128xf32>
    %268 = vector.extract_strided_slice %258 {offsets = [0, 128], sizes = [8, 128], strides = [1, 1]} : vector<8x384xf32> to vector<8x128xf32>
    %269 = vector.extract_strided_slice %259 {offsets = [0, 128], sizes = [8, 128], strides = [1, 1]} : vector<8x384xf32> to vector<8x128xf32>
    %270 = arith.addf %268, %269 : vector<8x128xf32>
    %271 = arith.negf %270 : vector<8x128xf32>
    %272 = math.exp %271 : vector<8x128xf32>
    %cst_64 = arith.constant 1.000000e+00 : f32
    %273 = vector.broadcast %cst_64 : f32 to vector<8x128xf32>
    %274 = arith.addf %273, %272 : vector<8x128xf32>
    %275 = arith.divf %273, %274 : vector<8x128xf32>
    %276 = vector.extract_strided_slice %258 {offsets = [0, 256], sizes = [8, 128], strides = [1, 1]} : vector<8x384xf32> to vector<8x128xf32>
    %277 = vector.extract_strided_slice %259 {offsets = [0, 256], sizes = [8, 128], strides = [1, 1]} : vector<8x384xf32> to vector<8x128xf32>
    %278 = arith.addf %277, %8 : vector<8x128xf32>
    %279 = arith.mulf %267, %278 : vector<8x128xf32>
    %280 = arith.addf %276, %279 : vector<8x128xf32>
    %281 = math.tanh %280 : vector<8x128xf32>
    %cst_65 = arith.constant 1.000000e+00 : f32
    %282 = vector.broadcast %cst_65 : f32 to vector<8x128xf32>
    %283 = arith.subf %282, %275 : vector<8x128xf32>
    %284 = arith.mulf %283, %281 : vector<8x128xf32>
    %285 = arith.mulf %275, %226 : vector<8x128xf32>
    %286 = arith.addf %284, %285 : vector<8x128xf32>
    %cst_66 = arith.constant dense<0.000000e+00> : vector<8x384xf32>
    %287 = tpu.matmul %286, %4, %cst_66 {dimension_numbers = #tpu.dot_dimension_numbers<[1], [0], [0], [1], [0, 0, 1, 1], [], []>} : vector<8x128xf32>, vector<128x384xf32>, vector<8x384xf32> -> vector<8x384xf32>
    %288 = arith.addf %287, %14 : vector<8x384xf32>
    %cst_67 = arith.constant dense<0.000000e+00> : vector<8x384xf32>
    %289 = tpu.matmul %256, %5, %cst_67 {dimension_numbers = #tpu.dot_dimension_numbers<[1], [0], [0], [1], [0, 0, 1, 1], [], []>} : vector<8x128xf32>, vector<128x384xf32>, vector<8x384xf32> -> vector<8x384xf32>
    %290 = vector.extract_strided_slice %288 {offsets = [0, 0], sizes = [8, 128], strides = [1, 1]} : vector<8x384xf32> to vector<8x128xf32>
    %291 = vector.extract_strided_slice %289 {offsets = [0, 0], sizes = [8, 128], strides = [1, 1]} : vector<8x384xf32> to vector<8x128xf32>
    %292 = arith.addf %290, %291 : vector<8x128xf32>
    %293 = arith.negf %292 : vector<8x128xf32>
    %294 = math.exp %293 : vector<8x128xf32>
    %cst_68 = arith.constant 1.000000e+00 : f32
    %295 = vector.broadcast %cst_68 : f32 to vector<8x128xf32>
    %296 = arith.addf %295, %294 : vector<8x128xf32>
    %297 = arith.divf %295, %296 : vector<8x128xf32>
    %298 = vector.extract_strided_slice %288 {offsets = [0, 128], sizes = [8, 128], strides = [1, 1]} : vector<8x384xf32> to vector<8x128xf32>
    %299 = vector.extract_strided_slice %289 {offsets = [0, 128], sizes = [8, 128], strides = [1, 1]} : vector<8x384xf32> to vector<8x128xf32>
    %300 = arith.addf %298, %299 : vector<8x128xf32>
    %301 = arith.negf %300 : vector<8x128xf32>
    %302 = math.exp %301 : vector<8x128xf32>
    %cst_69 = arith.constant 1.000000e+00 : f32
    %303 = vector.broadcast %cst_69 : f32 to vector<8x128xf32>
    %304 = arith.addf %303, %302 : vector<8x128xf32>
    %305 = arith.divf %303, %304 : vector<8x128xf32>
    %306 = vector.extract_strided_slice %288 {offsets = [0, 256], sizes = [8, 128], strides = [1, 1]} : vector<8x384xf32> to vector<8x128xf32>
    %307 = vector.extract_strided_slice %289 {offsets = [0, 256], sizes = [8, 128], strides = [1, 1]} : vector<8x384xf32> to vector<8x128xf32>
    %308 = arith.addf %307, %11 : vector<8x128xf32>
    %309 = arith.mulf %297, %308 : vector<8x128xf32>
    %310 = arith.addf %306, %309 : vector<8x128xf32>
    %311 = math.tanh %310 : vector<8x128xf32>
    %cst_70 = arith.constant 1.000000e+00 : f32
    %312 = vector.broadcast %cst_70 : f32 to vector<8x128xf32>
    %313 = arith.subf %312, %305 : vector<8x128xf32>
    %314 = arith.mulf %313, %311 : vector<8x128xf32>
    %315 = arith.mulf %305, %256 : vector<8x128xf32>
    %316 = arith.addf %314, %315 : vector<8x128xf32>
    %c5 = arith.constant 5 : index
    %c0_71 = arith.constant 0 : index
    %c0_72 = arith.constant 0 : index
    %317 = vector.load %arg2[%c5, %c0_71, %c0_72] : memref<8x8x384xf32, #tpu.memory_space<vmem>>, vector<1x8x384xf32>
    %318 = vector.shape_cast %317 : vector<1x8x384xf32> to vector<8x384xf32>
    %cst_73 = arith.constant dense<0.000000e+00> : vector<8x384xf32>
    %319 = tpu.matmul %286, %3, %cst_73 {dimension_numbers = #tpu.dot_dimension_numbers<[1], [0], [0], [1], [0, 0, 1, 1], [], []>} : vector<8x128xf32>, vector<128x384xf32>, vector<8x384xf32> -> vector<8x384xf32>
    %320 = vector.extract_strided_slice %318 {offsets = [0, 0], sizes = [8, 128], strides = [1, 1]} : vector<8x384xf32> to vector<8x128xf32>
    %321 = vector.extract_strided_slice %319 {offsets = [0, 0], sizes = [8, 128], strides = [1, 1]} : vector<8x384xf32> to vector<8x128xf32>
    %322 = arith.addf %320, %321 : vector<8x128xf32>
    %323 = arith.negf %322 : vector<8x128xf32>
    %324 = math.exp %323 : vector<8x128xf32>
    %cst_74 = arith.constant 1.000000e+00 : f32
    %325 = vector.broadcast %cst_74 : f32 to vector<8x128xf32>
    %326 = arith.addf %325, %324 : vector<8x128xf32>
    %327 = arith.divf %325, %326 : vector<8x128xf32>
    %328 = vector.extract_strided_slice %318 {offsets = [0, 128], sizes = [8, 128], strides = [1, 1]} : vector<8x384xf32> to vector<8x128xf32>
    %329 = vector.extract_strided_slice %319 {offsets = [0, 128], sizes = [8, 128], strides = [1, 1]} : vector<8x384xf32> to vector<8x128xf32>
    %330 = arith.addf %328, %329 : vector<8x128xf32>
    %331 = arith.negf %330 : vector<8x128xf32>
    %332 = math.exp %331 : vector<8x128xf32>
    %cst_75 = arith.constant 1.000000e+00 : f32
    %333 = vector.broadcast %cst_75 : f32 to vector<8x128xf32>
    %334 = arith.addf %333, %332 : vector<8x128xf32>
    %335 = arith.divf %333, %334 : vector<8x128xf32>
    %336 = vector.extract_strided_slice %318 {offsets = [0, 256], sizes = [8, 128], strides = [1, 1]} : vector<8x384xf32> to vector<8x128xf32>
    %337 = vector.extract_strided_slice %319 {offsets = [0, 256], sizes = [8, 128], strides = [1, 1]} : vector<8x384xf32> to vector<8x128xf32>
    %338 = arith.addf %337, %8 : vector<8x128xf32>
    %339 = arith.mulf %327, %338 : vector<8x128xf32>
    %340 = arith.addf %336, %339 : vector<8x128xf32>
    %341 = math.tanh %340 : vector<8x128xf32>
    %cst_76 = arith.constant 1.000000e+00 : f32
    %342 = vector.broadcast %cst_76 : f32 to vector<8x128xf32>
    %343 = arith.subf %342, %335 : vector<8x128xf32>
    %344 = arith.mulf %343, %341 : vector<8x128xf32>
    %345 = arith.mulf %335, %286 : vector<8x128xf32>
    %346 = arith.addf %344, %345 : vector<8x128xf32>
    %cst_77 = arith.constant dense<0.000000e+00> : vector<8x384xf32>
    %347 = tpu.matmul %346, %4, %cst_77 {dimension_numbers = #tpu.dot_dimension_numbers<[1], [0], [0], [1], [0, 0, 1, 1], [], []>} : vector<8x128xf32>, vector<128x384xf32>, vector<8x384xf32> -> vector<8x384xf32>
    %348 = arith.addf %347, %14 : vector<8x384xf32>
    %cst_78 = arith.constant dense<0.000000e+00> : vector<8x384xf32>
    %349 = tpu.matmul %316, %5, %cst_78 {dimension_numbers = #tpu.dot_dimension_numbers<[1], [0], [0], [1], [0, 0, 1, 1], [], []>} : vector<8x128xf32>, vector<128x384xf32>, vector<8x384xf32> -> vector<8x384xf32>
    %350 = vector.extract_strided_slice %348 {offsets = [0, 0], sizes = [8, 128], strides = [1, 1]} : vector<8x384xf32> to vector<8x128xf32>
    %351 = vector.extract_strided_slice %349 {offsets = [0, 0], sizes = [8, 128], strides = [1, 1]} : vector<8x384xf32> to vector<8x128xf32>
    %352 = arith.addf %350, %351 : vector<8x128xf32>
    %353 = arith.negf %352 : vector<8x128xf32>
    %354 = math.exp %353 : vector<8x128xf32>
    %cst_79 = arith.constant 1.000000e+00 : f32
    %355 = vector.broadcast %cst_79 : f32 to vector<8x128xf32>
    %356 = arith.addf %355, %354 : vector<8x128xf32>
    %357 = arith.divf %355, %356 : vector<8x128xf32>
    %358 = vector.extract_strided_slice %348 {offsets = [0, 128], sizes = [8, 128], strides = [1, 1]} : vector<8x384xf32> to vector<8x128xf32>
    %359 = vector.extract_strided_slice %349 {offsets = [0, 128], sizes = [8, 128], strides = [1, 1]} : vector<8x384xf32> to vector<8x128xf32>
    %360 = arith.addf %358, %359 : vector<8x128xf32>
    %361 = arith.negf %360 : vector<8x128xf32>
    %362 = math.exp %361 : vector<8x128xf32>
    %cst_80 = arith.constant 1.000000e+00 : f32
    %363 = vector.broadcast %cst_80 : f32 to vector<8x128xf32>
    %364 = arith.addf %363, %362 : vector<8x128xf32>
    %365 = arith.divf %363, %364 : vector<8x128xf32>
    %366 = vector.extract_strided_slice %348 {offsets = [0, 256], sizes = [8, 128], strides = [1, 1]} : vector<8x384xf32> to vector<8x128xf32>
    %367 = vector.extract_strided_slice %349 {offsets = [0, 256], sizes = [8, 128], strides = [1, 1]} : vector<8x384xf32> to vector<8x128xf32>
    %368 = arith.addf %367, %11 : vector<8x128xf32>
    %369 = arith.mulf %357, %368 : vector<8x128xf32>
    %370 = arith.addf %366, %369 : vector<8x128xf32>
    %371 = math.tanh %370 : vector<8x128xf32>
    %cst_81 = arith.constant 1.000000e+00 : f32
    %372 = vector.broadcast %cst_81 : f32 to vector<8x128xf32>
    %373 = arith.subf %372, %365 : vector<8x128xf32>
    %374 = arith.mulf %373, %371 : vector<8x128xf32>
    %375 = arith.mulf %365, %316 : vector<8x128xf32>
    %376 = arith.addf %374, %375 : vector<8x128xf32>
    %c6 = arith.constant 6 : index
    %c0_82 = arith.constant 0 : index
    %c0_83 = arith.constant 0 : index
    %377 = vector.load %arg2[%c6, %c0_82, %c0_83] : memref<8x8x384xf32, #tpu.memory_space<vmem>>, vector<1x8x384xf32>
    %378 = vector.shape_cast %377 : vector<1x8x384xf32> to vector<8x384xf32>
    %cst_84 = arith.constant dense<0.000000e+00> : vector<8x384xf32>
    %379 = tpu.matmul %346, %3, %cst_84 {dimension_numbers = #tpu.dot_dimension_numbers<[1], [0], [0], [1], [0, 0, 1, 1], [], []>} : vector<8x128xf32>, vector<128x384xf32>, vector<8x384xf32> -> vector<8x384xf32>
    %380 = vector.extract_strided_slice %378 {offsets = [0, 0], sizes = [8, 128], strides = [1, 1]} : vector<8x384xf32> to vector<8x128xf32>
    %381 = vector.extract_strided_slice %379 {offsets = [0, 0], sizes = [8, 128], strides = [1, 1]} : vector<8x384xf32> to vector<8x128xf32>
    %382 = arith.addf %380, %381 : vector<8x128xf32>
    %383 = arith.negf %382 : vector<8x128xf32>
    %384 = math.exp %383 : vector<8x128xf32>
    %cst_85 = arith.constant 1.000000e+00 : f32
    %385 = vector.broadcast %cst_85 : f32 to vector<8x128xf32>
    %386 = arith.addf %385, %384 : vector<8x128xf32>
    %387 = arith.divf %385, %386 : vector<8x128xf32>
    %388 = vector.extract_strided_slice %378 {offsets = [0, 128], sizes = [8, 128], strides = [1, 1]} : vector<8x384xf32> to vector<8x128xf32>
    %389 = vector.extract_strided_slice %379 {offsets = [0, 128], sizes = [8, 128], strides = [1, 1]} : vector<8x384xf32> to vector<8x128xf32>
    %390 = arith.addf %388, %389 : vector<8x128xf32>
    %391 = arith.negf %390 : vector<8x128xf32>
    %392 = math.exp %391 : vector<8x128xf32>
    %cst_86 = arith.constant 1.000000e+00 : f32
    %393 = vector.broadcast %cst_86 : f32 to vector<8x128xf32>
    %394 = arith.addf %393, %392 : vector<8x128xf32>
    %395 = arith.divf %393, %394 : vector<8x128xf32>
    %396 = vector.extract_strided_slice %378 {offsets = [0, 256], sizes = [8, 128], strides = [1, 1]} : vector<8x384xf32> to vector<8x128xf32>
    %397 = vector.extract_strided_slice %379 {offsets = [0, 256], sizes = [8, 128], strides = [1, 1]} : vector<8x384xf32> to vector<8x128xf32>
    %398 = arith.addf %397, %8 : vector<8x128xf32>
    %399 = arith.mulf %387, %398 : vector<8x128xf32>
    %400 = arith.addf %396, %399 : vector<8x128xf32>
    %401 = math.tanh %400 : vector<8x128xf32>
    %cst_87 = arith.constant 1.000000e+00 : f32
    %402 = vector.broadcast %cst_87 : f32 to vector<8x128xf32>
    %403 = arith.subf %402, %395 : vector<8x128xf32>
    %404 = arith.mulf %403, %401 : vector<8x128xf32>
    %405 = arith.mulf %395, %346 : vector<8x128xf32>
    %406 = arith.addf %404, %405 : vector<8x128xf32>
    %cst_88 = arith.constant dense<0.000000e+00> : vector<8x384xf32>
    %407 = tpu.matmul %406, %4, %cst_88 {dimension_numbers = #tpu.dot_dimension_numbers<[1], [0], [0], [1], [0, 0, 1, 1], [], []>} : vector<8x128xf32>, vector<128x384xf32>, vector<8x384xf32> -> vector<8x384xf32>
    %408 = arith.addf %407, %14 : vector<8x384xf32>
    %cst_89 = arith.constant dense<0.000000e+00> : vector<8x384xf32>
    %409 = tpu.matmul %376, %5, %cst_89 {dimension_numbers = #tpu.dot_dimension_numbers<[1], [0], [0], [1], [0, 0, 1, 1], [], []>} : vector<8x128xf32>, vector<128x384xf32>, vector<8x384xf32> -> vector<8x384xf32>
    %410 = vector.extract_strided_slice %408 {offsets = [0, 0], sizes = [8, 128], strides = [1, 1]} : vector<8x384xf32> to vector<8x128xf32>
    %411 = vector.extract_strided_slice %409 {offsets = [0, 0], sizes = [8, 128], strides = [1, 1]} : vector<8x384xf32> to vector<8x128xf32>
    %412 = arith.addf %410, %411 : vector<8x128xf32>
    %413 = arith.negf %412 : vector<8x128xf32>
    %414 = math.exp %413 : vector<8x128xf32>
    %cst_90 = arith.constant 1.000000e+00 : f32
    %415 = vector.broadcast %cst_90 : f32 to vector<8x128xf32>
    %416 = arith.addf %415, %414 : vector<8x128xf32>
    %417 = arith.divf %415, %416 : vector<8x128xf32>
    %418 = vector.extract_strided_slice %408 {offsets = [0, 128], sizes = [8, 128], strides = [1, 1]} : vector<8x384xf32> to vector<8x128xf32>
    %419 = vector.extract_strided_slice %409 {offsets = [0, 128], sizes = [8, 128], strides = [1, 1]} : vector<8x384xf32> to vector<8x128xf32>
    %420 = arith.addf %418, %419 : vector<8x128xf32>
    %421 = arith.negf %420 : vector<8x128xf32>
    %422 = math.exp %421 : vector<8x128xf32>
    %cst_91 = arith.constant 1.000000e+00 : f32
    %423 = vector.broadcast %cst_91 : f32 to vector<8x128xf32>
    %424 = arith.addf %423, %422 : vector<8x128xf32>
    %425 = arith.divf %423, %424 : vector<8x128xf32>
    %426 = vector.extract_strided_slice %408 {offsets = [0, 256], sizes = [8, 128], strides = [1, 1]} : vector<8x384xf32> to vector<8x128xf32>
    %427 = vector.extract_strided_slice %409 {offsets = [0, 256], sizes = [8, 128], strides = [1, 1]} : vector<8x384xf32> to vector<8x128xf32>
    %428 = arith.addf %427, %11 : vector<8x128xf32>
    %429 = arith.mulf %417, %428 : vector<8x128xf32>
    %430 = arith.addf %426, %429 : vector<8x128xf32>
    %431 = math.tanh %430 : vector<8x128xf32>
    %cst_92 = arith.constant 1.000000e+00 : f32
    %432 = vector.broadcast %cst_92 : f32 to vector<8x128xf32>
    %433 = arith.subf %432, %425 : vector<8x128xf32>
    %434 = arith.mulf %433, %431 : vector<8x128xf32>
    %435 = arith.mulf %425, %376 : vector<8x128xf32>
    %436 = arith.addf %434, %435 : vector<8x128xf32>
    %c7 = arith.constant 7 : index
    %c0_93 = arith.constant 0 : index
    %c0_94 = arith.constant 0 : index
    %437 = vector.load %arg2[%c7, %c0_93, %c0_94] : memref<8x8x384xf32, #tpu.memory_space<vmem>>, vector<1x8x384xf32>
    %438 = vector.shape_cast %437 : vector<1x8x384xf32> to vector<8x384xf32>
    %cst_95 = arith.constant dense<0.000000e+00> : vector<8x384xf32>
    %439 = tpu.matmul %406, %3, %cst_95 {dimension_numbers = #tpu.dot_dimension_numbers<[1], [0], [0], [1], [0, 0, 1, 1], [], []>} : vector<8x128xf32>, vector<128x384xf32>, vector<8x384xf32> -> vector<8x384xf32>
    %440 = vector.extract_strided_slice %438 {offsets = [0, 0], sizes = [8, 128], strides = [1, 1]} : vector<8x384xf32> to vector<8x128xf32>
    %441 = vector.extract_strided_slice %439 {offsets = [0, 0], sizes = [8, 128], strides = [1, 1]} : vector<8x384xf32> to vector<8x128xf32>
    %442 = arith.addf %440, %441 : vector<8x128xf32>
    %443 = arith.negf %442 : vector<8x128xf32>
    %444 = math.exp %443 : vector<8x128xf32>
    %cst_96 = arith.constant 1.000000e+00 : f32
    %445 = vector.broadcast %cst_96 : f32 to vector<8x128xf32>
    %446 = arith.addf %445, %444 : vector<8x128xf32>
    %447 = arith.divf %445, %446 : vector<8x128xf32>
    %448 = vector.extract_strided_slice %438 {offsets = [0, 128], sizes = [8, 128], strides = [1, 1]} : vector<8x384xf32> to vector<8x128xf32>
    %449 = vector.extract_strided_slice %439 {offsets = [0, 128], sizes = [8, 128], strides = [1, 1]} : vector<8x384xf32> to vector<8x128xf32>
    %450 = arith.addf %448, %449 : vector<8x128xf32>
    %451 = arith.negf %450 : vector<8x128xf32>
    %452 = math.exp %451 : vector<8x128xf32>
    %cst_97 = arith.constant 1.000000e+00 : f32
    %453 = vector.broadcast %cst_97 : f32 to vector<8x128xf32>
    %454 = arith.addf %453, %452 : vector<8x128xf32>
    %455 = arith.divf %453, %454 : vector<8x128xf32>
    %456 = vector.extract_strided_slice %438 {offsets = [0, 256], sizes = [8, 128], strides = [1, 1]} : vector<8x384xf32> to vector<8x128xf32>
    %457 = vector.extract_strided_slice %439 {offsets = [0, 256], sizes = [8, 128], strides = [1, 1]} : vector<8x384xf32> to vector<8x128xf32>
    %458 = arith.addf %457, %8 : vector<8x128xf32>
    %459 = arith.mulf %447, %458 : vector<8x128xf32>
    %460 = arith.addf %456, %459 : vector<8x128xf32>
    %461 = math.tanh %460 : vector<8x128xf32>
    %cst_98 = arith.constant 1.000000e+00 : f32
    %462 = vector.broadcast %cst_98 : f32 to vector<8x128xf32>
    %463 = arith.subf %462, %455 : vector<8x128xf32>
    %464 = arith.mulf %463, %461 : vector<8x128xf32>
    %465 = arith.mulf %455, %406 : vector<8x128xf32>
    %466 = arith.addf %464, %465 : vector<8x128xf32>
    %cst_99 = arith.constant dense<0.000000e+00> : vector<8x384xf32>
    %467 = tpu.matmul %466, %4, %cst_99 {dimension_numbers = #tpu.dot_dimension_numbers<[1], [0], [0], [1], [0, 0, 1, 1], [], []>} : vector<8x128xf32>, vector<128x384xf32>, vector<8x384xf32> -> vector<8x384xf32>
    %468 = arith.addf %467, %14 : vector<8x384xf32>
    %cst_100 = arith.constant dense<0.000000e+00> : vector<8x384xf32>
    %469 = tpu.matmul %436, %5, %cst_100 {dimension_numbers = #tpu.dot_dimension_numbers<[1], [0], [0], [1], [0, 0, 1, 1], [], []>} : vector<8x128xf32>, vector<128x384xf32>, vector<8x384xf32> -> vector<8x384xf32>
    %470 = vector.extract_strided_slice %468 {offsets = [0, 0], sizes = [8, 128], strides = [1, 1]} : vector<8x384xf32> to vector<8x128xf32>
    %471 = vector.extract_strided_slice %469 {offsets = [0, 0], sizes = [8, 128], strides = [1, 1]} : vector<8x384xf32> to vector<8x128xf32>
    %472 = arith.addf %470, %471 : vector<8x128xf32>
    %473 = arith.negf %472 : vector<8x128xf32>
    %474 = math.exp %473 : vector<8x128xf32>
    %cst_101 = arith.constant 1.000000e+00 : f32
    %475 = vector.broadcast %cst_101 : f32 to vector<8x128xf32>
    %476 = arith.addf %475, %474 : vector<8x128xf32>
    %477 = arith.divf %475, %476 : vector<8x128xf32>
    %478 = vector.extract_strided_slice %468 {offsets = [0, 128], sizes = [8, 128], strides = [1, 1]} : vector<8x384xf32> to vector<8x128xf32>
    %479 = vector.extract_strided_slice %469 {offsets = [0, 128], sizes = [8, 128], strides = [1, 1]} : vector<8x384xf32> to vector<8x128xf32>
    %480 = arith.addf %478, %479 : vector<8x128xf32>
    %481 = arith.negf %480 : vector<8x128xf32>
    %482 = math.exp %481 : vector<8x128xf32>
    %cst_102 = arith.constant 1.000000e+00 : f32
    %483 = vector.broadcast %cst_102 : f32 to vector<8x128xf32>
    %484 = arith.addf %483, %482 : vector<8x128xf32>
    %485 = arith.divf %483, %484 : vector<8x128xf32>
    %486 = vector.extract_strided_slice %468 {offsets = [0, 256], sizes = [8, 128], strides = [1, 1]} : vector<8x384xf32> to vector<8x128xf32>
    %487 = vector.extract_strided_slice %469 {offsets = [0, 256], sizes = [8, 128], strides = [1, 1]} : vector<8x384xf32> to vector<8x128xf32>
    %488 = arith.addf %487, %11 : vector<8x128xf32>
    %489 = arith.mulf %477, %488 : vector<8x128xf32>
    %490 = arith.addf %486, %489 : vector<8x128xf32>
    %491 = math.tanh %490 : vector<8x128xf32>
    %cst_103 = arith.constant 1.000000e+00 : f32
    %492 = vector.broadcast %cst_103 : f32 to vector<8x128xf32>
    %493 = arith.subf %492, %485 : vector<8x128xf32>
    %494 = arith.mulf %493, %491 : vector<8x128xf32>
    %495 = arith.mulf %485, %436 : vector<8x128xf32>
    %496 = arith.addf %494, %495 : vector<8x128xf32>
    %c0_104 = arith.constant 0 : index
    %c0_105 = arith.constant 0 : index
    %497 = vector.load %arg12[%c0_104, %c0_105] : memref<8x128xf32, #tpu.memory_space<vmem>>, vector<8x128xf32>
    tpu.vector_store %arg12[%c0_104, %c0_105], %466 {strides = array<i32>} : memref<8x128xf32, #tpu.memory_space<vmem>>, vector<8x128xf32>,
    %c0_106 = arith.constant 0 : index
    %c0_107 = arith.constant 0 : index
    %498 = vector.load %arg13[%c0_106, %c0_107] : memref<8x128xf32, #tpu.memory_space<vmem>>, vector<8x128xf32>
    tpu.vector_store %arg13[%c0_106, %c0_107], %496 {strides = array<i32>} : memref<8x128xf32, #tpu.memory_space<vmem>>, vector<8x128xf32>,
    %c0_i32_108 = arith.constant 0 : i32
    %499 = arith.cmpi eq, %arg1, %c0_i32_108 : i32
    %500 = arith.extui %499 : i1 to i32
    %c0_i32_109 = arith.constant 0 : i32
    %501 = arith.cmpi ne, %500, %c0_i32_109 : i32
    scf.if %501 {
      %c0_110 = arith.constant 0 : index
      %c0_111 = arith.constant 0 : index
      %502 = vector.load %arg9[%c0_110, %c0_111] : memref<128x128xf32, #tpu.memory_space<vmem>>, vector<128x128xf32>
      %cst_112 = arith.constant dense<0.000000e+00> : vector<8x128xf32>
      %503 = tpu.matmul %496, %502, %cst_112 {dimension_numbers = #tpu.dot_dimension_numbers<[1], [0], [0], [1], [0, 0, 1, 1], [], []>} : vector<8x128xf32>, vector<128x128xf32>, vector<8x128xf32> -> vector<8x128xf32>
      %c0_113 = arith.constant 0 : index
      %c0_114 = arith.constant 0 : index
      %504 = vector.load %arg10[%c0_113, %c0_114] : memref<1x128xf32, #tpu.memory_space<vmem>>, vector<1x128xf32>
      %505 = vector.broadcast %504 : vector<1x128xf32> to vector<8x128xf32>
      %506 = arith.addf %503, %505 : vector<8x128xf32>
      %c0_115 = arith.constant 0 : index
      %c0_116 = arith.constant 0 : index
      %507 = vector.load %arg11[%c0_115, %c0_116] : memref<8x128xf32, #tpu.memory_space<vmem>>, vector<8x128xf32>
      tpu.vector_store %arg11[%c0_115, %c0_116], %506 {strides = array<i32>} : memref<8x128xf32, #tpu.memory_space<vmem>>, vector<8x128xf32>,
    } else {
    }
    return
  }
  func.func @transform_0(%arg0: i32, %arg1: i32) -> (i32, i32, i32) {
    %c0_i32 = arith.constant 0 : i32
    %c0_i32_0 = arith.constant 0 : i32
    return %arg1, %arg0, %c0_i32 : i32, i32, i32
  }
  func.func @transform_1(%arg0: i32, %arg1: i32) -> (i32, i32) {
    %c0_i32 = arith.constant 0 : i32
    %c0_i32_0 = arith.constant 0 : i32
    %c0_i32_1 = arith.constant 0 : i32
    return %c0_i32, %c0_i32_0 : i32, i32
  }
  func.func @transform_2(%arg0: i32, %arg1: i32) -> (i32, i32) {
    %c0_i32 = arith.constant 0 : i32
    %c0_i32_0 = arith.constant 0 : i32
    %c0_i32_1 = arith.constant 0 : i32
    return %c0_i32, %c0_i32_0 : i32, i32
  }
  func.func @transform_3(%arg0: i32, %arg1: i32) -> (i32, i32) {
    %c0_i32 = arith.constant 0 : i32
    %c0_i32_0 = arith.constant 0 : i32
    %c0_i32_1 = arith.constant 0 : i32
    return %c0_i32, %c0_i32_0 : i32, i32
  }
  func.func @transform_4(%arg0: i32, %arg1: i32) -> (i32, i32) {
    %c0_i32 = arith.constant 0 : i32
    %c0_i32_0 = arith.constant 0 : i32
    %c0_i32_1 = arith.constant 0 : i32
    return %c0_i32, %c0_i32_0 : i32, i32
  }
  func.func @transform_5(%arg0: i32, %arg1: i32) -> (i32, i32) {
    %c0_i32 = arith.constant 0 : i32
    %c0_i32_0 = arith.constant 0 : i32
    %c0_i32_1 = arith.constant 0 : i32
    return %c0_i32, %c0_i32_0 : i32, i32
  }
  func.func @transform_6(%arg0: i32, %arg1: i32) -> (i32, i32) {
    %c0_i32 = arith.constant 0 : i32
    %c0_i32_0 = arith.constant 0 : i32
    %c0_i32_1 = arith.constant 0 : i32
    return %c0_i32, %c0_i32_0 : i32, i32
  }
  func.func @transform_7(%arg0: i32, %arg1: i32) -> (i32, i32) {
    %c0_i32 = arith.constant 0 : i32
    %c0_i32_0 = arith.constant 0 : i32
    %c0_i32_1 = arith.constant 0 : i32
    return %c0_i32, %c0_i32_0 : i32, i32
  }
  func.func @transform_8(%arg0: i32, %arg1: i32) -> (i32, i32) {
    %c0_i32 = arith.constant 0 : i32
    %c0_i32_0 = arith.constant 0 : i32
    %c0_i32_1 = arith.constant 0 : i32
    return %c0_i32, %c0_i32_0 : i32, i32
  }
  func.func @transform_9(%arg0: i32, %arg1: i32) -> (i32, i32) {
    %c0_i32 = arith.constant 0 : i32
    %c0_i32_0 = arith.constant 0 : i32
    return %arg0, %c0_i32 : i32, i32
  }
}

</mosaic_0001>

<llo_original>
// kernel: tpu_custom_call.1
$region0: #{tpu_custom_call.1}
  #allocation0 [shape = 'u32[]', space=smem, size = 0x4, offset = 0x4, fixed_abs, tag = 'smem constant byte address 0x4 - core index']
  #allocation1 [shape = 'u32[72,128]{1,0:T(1,128)}', space=vmem, size = 0x9000, scoped, tag = 'internal scratch']
  #allocation2 [shape = 'f32[8,128]{1,0:T(8,128)}', space=vmem, size = 0x1000, scoped, tag = 'scratch operand']
  #allocation3 [shape = 'f32[8,128]{1,0:T(8,128)}', space=vmem, size = 0x1000, scoped, tag = 'scratch operand']
  %s0 = inlined_call_operand.hbm [shape: f32[8,8,384], index: 0, kind: input, shape index: {}]
  %s1 = inlined_call_operand.hbm [shape: f32[128,384], index: 1, kind: input, shape index: {}]
  %s2 = inlined_call_operand.hbm [shape: f32[1,128], index: 2, kind: input, shape index: {}]
  %s3 = inlined_call_operand.hbm [shape: f32[128,384], index: 3, kind: input, shape index: {}]
  %s4 = inlined_call_operand.vmem [shape: f32[1,384], index: 4, kind: input, shape index: {}]
  %s5 = inlined_call_operand.hbm [shape: f32[128,384], index: 5, kind: input, shape index: {}]
  %s6 = inlined_call_operand.vmem [shape: f32[1,128], index: 6, kind: input, shape index: {}]
  %s7 = inlined_call_operand.hbm [shape: f32[128,128], index: 7, kind: input, shape index: {}]
  %s8 = inlined_call_operand.vmem [shape: f32[1,128], index: 8, kind: input, shape index: {}]
  %s9 = inlined_call_operand.hbm [shape: f32[8,128], index: 9, kind: output, shape index: {}]
  %s10 = sld [smem:[#allocation0]]
  $region78: #{tpu_custom_call.1} parent=0
    _
  %s12 = ssub.s32 1, %s10
  %s13 = scalar_select 0, %s12, %s10
  $region1: #{tpu_custom_call.1} parent=0
    #allocation4 [shape = 'u8[98304]{0}', space=vmem, size = 0x18000, scoped, tag = 'input window, operand 0, single buffered']
    #allocation5 [shape = 's32[1]{0}', space=sflag, size = 0x4, scoped, tag = 'scoped memory for tpu_custom_call.1']
    #allocation6 [shape = 's32[1]{0}', space=sflag, size = 0x4, scoped, tag = 'scoped memory for tpu_custom_call.1']
    #allocation7 [shape = 'u8[196608]{0}', space=vmem, size = 0x30000, scoped, tag = 'input window, operand 1, single buffered']
    #allocation8 [shape = 's32[1]{0}', space=sflag, size = 0x4, scoped, tag = 'scoped memory for tpu_custom_call.1']
    #allocation9 [shape = 'u8[512]{0}', space=vmem, size = 0x400, scoped, tag = 'input window, operand 2, single buffered']
    #allocation10 [shape = 'u8[196608]{0}', space=vmem, size = 0x30000, scoped, tag = 'input window, operand 3, single buffered']
    #allocation11 [shape = 's32[1]{0}', space=sflag, size = 0x4, scoped, tag = 'scoped memory for tpu_custom_call.1']
    #allocation12 [shape = 'u8[196608]{0}', space=vmem, size = 0x30000, scoped, tag = 'input window, operand 5, single buffered']
    #allocation13 [shape = 'u8[65536]{0}', space=vmem, size = 0x10000, scoped, tag = 'input window, operand 7, single buffered']
    #allocation14 [shape = 's32[1]{0}', space=sflag, size = 0x4, scoped, tag = 'scoped memory for tpu_custom_call.1']
    #allocation15 [shape = 'u8[4096]{0}', space=vmem, size = 0x1000, scoped, tag = 'output window, operand 0, single buffered']
    %14 = vsyncpa [#allocation5], 0
    %15 = vsyncpa [#allocation8], 0
    %16 = vsyncpa [#allocation11], 0
    %17 = vsyncpa [#allocation14], 0
    %18 = vsyncpa [#allocation6], 0
    // Predicated region
    $region2: #{tpu_custom_call.1} parent=1 // pred_check
      _
    $region3: #{tpu_custom_call.1} parent=1 // pred_check_branch
      %20 = sbr.rel (0) target = $region5
    $region4: #{tpu_custom_call.1} parent=1 // pred_region
      %22 = vsyncadd [#allocation5], 0
      %s23 = sshll.u32 %s0, 4
      %s24 = int_to_ptr.hbm [resolvable:$true] %s23
      %s25 = sshll.u32 [#allocation4], 4
      %s26 = int_to_ptr.vmem [resolvable:$true] %s25
      %31 = dma.hbm_to_vmem [thread:$0]  %s24, 3072, %s26, [#allocation5], 384, 384, 24
    $region5: #{tpu_custom_call.1} parent=1 // pred_fallthru
      _
    // Predicated region
    $region6: #{tpu_custom_call.1} parent=1 // pred_check
      _
    $region7: #{tpu_custom_call.1} parent=1 // pred_check_branch
      %33 = sbr.rel (0) target = $region9
    $region8: #{tpu_custom_call.1} parent=1 // pred_region
      %35 = vsyncadd [#allocation8], 0
      %s36 = sshll.u32 %s1, 4
      %s37 = int_to_ptr.hbm [resolvable:$true] %s36
      %s38 = sshll.u32 [#allocation7], 4
      %s39 = int_to_ptr.vmem [resolvable:$true] %s38
      %44 = dma.hbm_to_vmem [thread:$0]  %s37, 6144, %s39, [#allocation8], 384, 384, 24
    $region9: #{tpu_custom_call.1} parent=1 // pred_fallthru
      _
    // Predicated region
    $region10: #{tpu_custom_call.1} parent=1 // pred_check
      _
    $region11: #{tpu_custom_call.1} parent=1 // pred_check_branch
      %46 = sbr.rel (0) target = $region13
    $region12: #{tpu_custom_call.1} parent=1 // pred_region
      %48 = vsyncadd [#allocation8], 0
      %s50 = sshll.u32 %s2, 4
      %s51 = int_to_ptr.hbm [resolvable:$true] %s50
      %s52 = sshll.u32 [#allocation9], 4
      %s53 = int_to_ptr.vmem [resolvable:$true] %s52
      %55 = dma.hbm_to_vmem [thread:$0]  %s51, 16, %s53, [#allocation8]
    $region13: #{tpu_custom_call.1} parent=1 // pred_fallthru
      _
    // Predicated region
    $region14: #{tpu_custom_call.1} parent=1 // pred_check
      _
    $region15: #{tpu_custom_call.1} parent=1 // pred_check_branch
      %57 = sbr.rel (0) target = $region17
    $region16: #{tpu_custom_call.1} parent=1 // pred_region
      %59 = vsyncadd [#allocation11], 0
      %s60 = sshll.u32 %s3, 4
      %s61 = int_to_ptr.hbm [resolvable:$true] %s60
      %s62 = sshll.u32 [#allocation10], 4
      %s63 = int_to_ptr.vmem [resolvable:$true] %s62
      %68 = dma.hbm_to_vmem [thread:$0]  %s61, 6144, %s63, [#allocation11], 384, 384, 24
    $region17: #{tpu_custom_call.1} parent=1 // pred_fallthru
      _
    // Predicated region
    $region18: #{tpu_custom_call.1} parent=1 // pred_check
      _
    $region19: #{tpu_custom_call.1} parent=1 // pred_check_branch
      %70 = sbr.rel (0) target = $region21
    $region20: #{tpu_custom_call.1} parent=1 // pred_region
      _
    $region21: #{tpu_custom_call.1} parent=1 // pred_fallthru
      _
    // Predicated region
    $region22: #{tpu_custom_call.1} parent=1 // pred_check
      _
    $region23: #{tpu_custom_call.1} parent=1 // pred_check_branch
      %72 = sbr.rel (0) target = $region25
    $region24: #{tpu_custom_call.1} parent=1 // pred_region
      %74 = vsyncadd [#allocation11], 0
      %s75 = sshll.u32 %s5, 4
      %s76 = int_to_ptr.hbm [resolvable:$true] %s75
      %s77 = sshll.u32 [#allocation12], 4
      %s78 = int_to_ptr.vmem [resolvable:$true] %s77
      %83 = dma.hbm_to_vmem [thread:$0]  %s76, 6144, %s78, [#allocation11], 384, 384, 24
    $region25: #{tpu_custom_call.1} parent=1 // pred_fallthru
      _
    // Predicated region
    $region26: #{tpu_custom_call.1} parent=1 // pred_check
      _
    $region27: #{tpu_custom_call.1} parent=1 // pred_check_branch
      %85 = sbr.rel (0) target = $region29
    $region28: #{tpu_custom_call.1} parent=1 // pred_region
      _
    $region29: #{tpu_custom_call.1} parent=1 // pred_fallthru
      _
    // Predicated region
    $region30: #{tpu_custom_call.1} parent=1 // pred_check
      _
    $region31: #{tpu_custom_call.1} parent=1 // pred_check_branch
      %87 = sbr.rel (0) target = $region33
    $region32: #{tpu_custom_call.1} parent=1 // pred_region
      %89 = vsyncadd [#allocation14], 0
      %s90 = sshll.u32 %s7, 4
      %s91 = int_to_ptr.hbm [resolvable:$true] %s90
      %s92 = sshll.u32 [#allocation13], 4
      %s93 = int_to_ptr.vmem [resolvable:$true] %s92
      %98 = dma.hbm_to_vmem [thread:$0]  %s91, 2048, %s93, [#allocation14], 128, 128, 8
    $region33: #{tpu_custom_call.1} parent=1 // pred_fallthru
      _
    // Predicated region
    $region34: #{tpu_custom_call.1} parent=1 // pred_check
      _
    $region35: #{tpu_custom_call.1} parent=1 // pred_check_branch
      %100 = sbr.rel (0) target = $region37
    $region36: #{tpu_custom_call.1} parent=1 // pred_region
      _
    $region37: #{tpu_custom_call.1} parent=1 // pred_fallthru
      _
    // Predicated region
    $region38: #{tpu_custom_call.1} parent=1 // pred_check
      _
    $region39: #{tpu_custom_call.1} parent=1 // pred_check_branch
      %102 = sbr.rel (0) target = $region41
    $region40: #{tpu_custom_call.1} parent=1 // pred_region
      %104 = dma.done [#allocation5], 3072
    $region41: #{tpu_custom_call.1} parent=1 // pred_fallthru
      _
    // Predicated region
    $region42: #{tpu_custom_call.1} parent=1 // pred_check
      _
    $region43: #{tpu_custom_call.1} parent=1 // pred_check_branch
      %106 = sbr.rel (0) target = $region45
    $region44: #{tpu_custom_call.1} parent=1 // pred_region
      %108 = dma.done [#allocation8], 6144
    $region45: #{tpu_custom_call.1} parent=1 // pred_fallthru
      _
    // Predicated region
    $region46: #{tpu_custom_call.1} parent=1 // pred_check
      _
    $region47: #{tpu_custom_call.1} parent=1 // pred_check_branch
      %110 = sbr.rel (0) target = $region49
    $region48: #{tpu_custom_call.1} parent=1 // pred_region
      %112 = dma.done [#allocation8], 16
    $region49: #{tpu_custom_call.1} parent=1 // pred_fallthru
      _
    // Predicated region
    $region50: #{tpu_custom_call.1} parent=1 // pred_check
      _
    $region51: #{tpu_custom_call.1} parent=1 // pred_check_branch
      %114 = sbr.rel (0) target = $region53
    $region52: #{tpu_custom_call.1} parent=1 // pred_region
      %116 = dma.done [#allocation11], 6144
    $region53: #{tpu_custom_call.1} parent=1 // pred_fallthru
      _
    // Predicated region
    $region54: #{tpu_custom_call.1} parent=1 // pred_check
      _
    $region55: #{tpu_custom_call.1} parent=1 // pred_check_branch
      %118 = sbr.rel (0) target = $region57
    $region56: #{tpu_custom_call.1} parent=1 // pred_region
      %120 = dma.done [#allocation11], 6144
    $region57: #{tpu_custom_call.1} parent=1 // pred_fallthru
      _
    // Predicated region
    $region58: #{tpu_custom_call.1} parent=1 // pred_check
      _
    $region59: #{tpu_custom_call.1} parent=1 // pred_check_branch
      %122 = sbr.rel (0) target = $region61
    $region60: #{tpu_custom_call.1} parent=1 // pred_region
      %124 = dma.done [#allocation14], 2048
    $region61: #{tpu_custom_call.1} parent=1 // pred_fallthru
      _
    %p125 = scmp.eq.s32.totalorder 0, 0
    // Predicated region
    $region62: #{tpu_custom_call.1} parent=1 // pred_check
      %p126 = pneg %p125
    $region63: #{tpu_custom_call.1} parent=1 // pred_check_branch
      %128 = sbr.rel (%p126) target = $region65
    $region64: #{tpu_custom_call.1} parent=1 // pred_region
      %129 = vst [vmem:[#allocation2] sm:$0xff] 0.0
      %130 = vst [vmem:[#allocation3] sm:$0xff] 0.0
    $region65: #{tpu_custom_call.1} parent=1 // pred_fallthru
      _
    %v131 = vld [vmem:[#allocation7] sm:$0xff]
    %v132 = vld [vmem:[#allocation7 + $0x8] sm:$0xff]
    %v133 = vld [vmem:[#allocation7 + $0x10] sm:$0xff]
    %v134 = vld [vmem:[#allocation7 + $0x18] sm:$0xff]
    %v135 = vld [vmem:[#allocation7 + $0x20] sm:$0xff]
    %v136 = vld [vmem:[#allocation7 + $0x28] sm:$0xff]
    %v137 = vld [vmem:[#allocation7 + $0x30] sm:$0xff]
    %v138 = vld [vmem:[#allocation7 + $0x38] sm:$0xff]
    %v139 = vld [vmem:[#allocation7 + $0x40] sm:$0xff]
    %v140 = vld [vmem:[#allocation7 + $0x48] sm:$0xff]
    %v141 = vld [vmem:[#allocation7 + $0x50] sm:$0xff]
    %v142 = vld [vmem:[#allocation7 + $0x58] sm:$0xff]
    %v143 = vld [vmem:[#allocation7 + $0x60] sm:$0xff]
    %v144 = vld [vmem:[#allocation7 + $0x68] sm:$0xff]
    %v145 = vld [vmem:[#allocation7 + $0x70] sm:$0xff]
    %v146 = vld [vmem:[#allocation7 + $0x78] sm:$0xff]
    %v147 = vld [vmem:[#allocation7 + $0x80] sm:$0xff]
    %v148 = vld [vmem:[#allocation7 + $0x88] sm:$0xff]
    %v149 = vld [vmem:[#allocation7 + $0x90] sm:$0xff]
    %v150 = vld [vmem:[#allocation7 + $0x98] sm:$0xff]
    %v151 = vld [vmem:[#allocation7 + $0xa0] sm:$0xff]
    %v152 = vld [vmem:[#allocation7 + $0xa8] sm:$0xff]
    %v153 = vld [vmem:[#allocation7 + $0xb0] sm:$0xff]
    %v154 = vld [vmem:[#allocation7 + $0xb8] sm:$0xff]
    %v155 = vld [vmem:[#allocation7 + $0xc0] sm:$0xff]
    %v156 = vld [vmem:[#allocation7 + $0xc8] sm:$0xff]
    %v157 = vld [vmem:[#allocation7 + $0xd0] sm:$0xff]
    %v158 = vld [vmem:[#allocation7 + $0xd8] sm:$0xff]
    %v159 = vld [vmem:[#allocation7 + $0xe0] sm:$0xff]
    %v160 = vld [vmem:[#allocation7 + $0xe8] sm:$0xff]
    %v161 = vld [vmem:[#allocation7 + $0xf0] sm:$0xff]
    %v162 = vld [vmem:[#allocation7 + $0xf8] sm:$0xff]
    %v163 = vld [vmem:[#allocation7 + $0x100] sm:$0xff]
    %v164 = vld [vmem:[#allocation7 + $0x108] sm:$0xff]
    %v165 = vld [vmem:[#allocation7 + $0x110] sm:$0xff]
    %v166 = vld [vmem:[#allocation7 + $0x118] sm:$0xff]
    %v167 = vld [vmem:[#allocation7 + $0x120] sm:$0xff]
    %v168 = vld [vmem:[#allocation7 + $0x128] sm:$0xff]
    %v169 = vld [vmem:[#allocation7 + $0x130] sm:$0xff]
    %v170 = vld [vmem:[#allocation7 + $0x138] sm:$0xff]
    %v171 = vld [vmem:[#allocation7 + $0x140] sm:$0xff]
    %v172 = vld [vmem:[#allocation7 + $0x148] sm:$0xff]
    %v173 = vld [vmem:[#allocation7 + $0x150] sm:$0xff]
    %v174 = vld [vmem:[#allocation7 + $0x158] sm:$0xff]
    %v175 = vld [vmem:[#allocation7 + $0x160] sm:$0xff]
    %v176 = vld [vmem:[#allocation7 + $0x168] sm:$0xff]
    %v177 = vld [vmem:[#allocation7 + $0x170] sm:$0xff]
    %v178 = vld [vmem:[#allocation7 + $0x178] sm:$0xff]
    %v179 = vld [vmem:[#allocation10] sm:$0xff]
    %v180 = vld [vmem:[#allocation10 + $0x8] sm:$0xff]
    %v181 = vld [vmem:[#allocation10 + $0x10] sm:$0xff]
    %v182 = vld [vmem:[#allocation10 + $0x18] sm:$0xff]
    %v183 = vld [vmem:[#allocation10 + $0x20] sm:$0xff]
    %v184 = vld [vmem:[#allocation10 + $0x28] sm:$0xff]
    %v185 = vld [vmem:[#allocation10 + $0x30] sm:$0xff]
    %v186 = vld [vmem:[#allocation10 + $0x38] sm:$0xff]
    %v187 = vld [vmem:[#allocation10 + $0x40] sm:$0xff]
    %v188 = vld [vmem:[#allocation10 + $0x48] sm:$0xff]
    %v189 = vld [vmem:[#allocation10 + $0x50] sm:$0xff]
    %v190 = vld [vmem:[#allocation10 + $0x58] sm:$0xff]
    %v191 = vld [vmem:[#allocation10 + $0x60] sm:$0xff]
    %v192 = vld [vmem:[#allocation10 + $0x68] sm:$0xff]
    %v193 = vld [vmem:[#allocation10 + $0x70] sm:$0xff]
    %v194 = vld [vmem:[#allocation10 + $0x78] sm:$0xff]
    %v195 = vld [vmem:[#allocation10 + $0x80] sm:$0xff]
    %v196 = vld [vmem:[#allocation10 + $0x88] sm:$0xff]
    %v197 = vld [vmem:[#allocation10 + $0x90] sm:$0xff]
    %v198 = vld [vmem:[#allocation10 + $0x98] sm:$0xff]
    %v199 = vld [vmem:[#allocation10 + $0xa0] sm:$0xff]
    %v200 = vld [vmem:[#allocation10 + $0xa8] sm:$0xff]
    %v201 = vld [vmem:[#allocation10 + $0xb0] sm:$0xff]
    %v202 = vld [vmem:[#allocation10 + $0xb8] sm:$0xff]
    %v203 = vld [vmem:[#allocation10 + $0xc0] sm:$0xff]
    %v204 = vld [vmem:[#allocation10 + $0xc8] sm:$0xff]
    %v205 = vld [vmem:[#allocation10 + $0xd0] sm:$0xff]
    %v206 = vld [vmem:[#allocation10 + $0xd8] sm:$0xff]
    %v207 = vld [vmem:[#allocation10 + $0xe0] sm:$0xff]
    %v208 = vld [vmem:[#allocation10 + $0xe8] sm:$0xff]
    %v209 = vld [vmem:[#allocation10 + $0xf0] sm:$0xff]
    %v210 = vld [vmem:[#allocation10 + $0xf8] sm:$0xff]
    %v211 = vld [vmem:[#allocation10 + $0x100] sm:$0xff]
    %v212 = vld [vmem:[#allocation10 + $0x108] sm:$0xff]
    %v213 = vld [vmem:[#allocation10 + $0x110] sm:$0xff]
    %v214 = vld [vmem:[#allocation10 + $0x118] sm:$0xff]
    %v215 = vld [vmem:[#allocation10 + $0x120] sm:$0xff]
    %v216 = vld [vmem:[#allocation10 + $0x128] sm:$0xff]
    %v217 = vld [vmem:[#allocation10 + $0x130] sm:$0xff]
    %v218 = vld [vmem:[#allocation10 + $0x138] sm:$0xff]
    %v219 = vld [vmem:[#allocation10 + $0x140] sm:$0xff]
    %v220 = vld [vmem:[#allocation10 + $0x148] sm:$0xff]
    %v221 = vld [vmem:[#allocation10 + $0x150] sm:$0xff]
    %v222 = vld [vmem:[#allocation10 + $0x158] sm:$0xff]
    %v223 = vld [vmem:[#allocation10 + $0x160] sm:$0xff]
    %v224 = vld [vmem:[#allocation10 + $0x168] sm:$0xff]
    %v225 = vld [vmem:[#allocation10 + $0x170] sm:$0xff]
    %v226 = vld [vmem:[#allocation10 + $0x178] sm:$0xff]
    %v227 = vld [vmem:[#allocation12] sm:$0xff]
    %v228 = vld [vmem:[#allocation12 + $0x8] sm:$0xff]
    %v229 = vld [vmem:[#allocation12 + $0x10] sm:$0xff]
    %v230 = vld [vmem:[#allocation12 + $0x18] sm:$0xff]
    %v231 = vld [vmem:[#allocation12 + $0x20] sm:$0xff]
    %v232 = vld [vmem:[#allocation12 + $0x28] sm:$0xff]
    %v233 = vld [vmem:[#allocation12 + $0x30] sm:$0xff]
    %v234 = vld [vmem:[#allocation12 + $0x38] sm:$0xff]
    %v235 = vld [vmem:[#allocation12 + $0x40] sm:$0xff]
    %v236 = vld [vmem:[#allocation12 + $0x48] sm:$0xff]
    %v237 = vld [vmem:[#allocation12 + $0x50] sm:$0xff]
    %v238 = vld [vmem:[#allocation12 + $0x58] sm:$0xff]
    %v239 = vld [vmem:[#allocation12 + $0x60] sm:$0xff]
    %v240 = vld [vmem:[#allocation12 + $0x68] sm:$0xff]
    %v241 = vld [vmem:[#allocation12 + $0x70] sm:$0xff]
    %v242 = vld [vmem:[#allocation12 + $0x78] sm:$0xff]
    %v243 = vld [vmem:[#allocation12 + $0x80] sm:$0xff]
    %v244 = vld [vmem:[#allocation12 + $0x88] sm:$0xff]
    %v245 = vld [vmem:[#allocation12 + $0x90] sm:$0xff]
    %v246 = vld [vmem:[#allocation12 + $0x98] sm:$0xff]
    %v247 = vld [vmem:[#allocation12 + $0xa0] sm:$0xff]
    %v248 = vld [vmem:[#allocation12 + $0xa8] sm:$0xff]
    %v249 = vld [vmem:[#allocation12 + $0xb0] sm:$0xff]
    %v250 = vld [vmem:[#allocation12 + $0xb8] sm:$0xff]
    %v251 = vld [vmem:[#allocation12 + $0xc0] sm:$0xff]
    %v252 = vld [vmem:[#allocation12 + $0xc8] sm:$0xff]
    %v253 = vld [vmem:[#allocation12 + $0xd0] sm:$0xff]
    %v254 = vld [vmem:[#allocation12 + $0xd8] sm:$0xff]
    %v255 = vld [vmem:[#allocation12 + $0xe0] sm:$0xff]
    %v256 = vld [vmem:[#allocation12 + $0xe8] sm:$0xff]
    %v257 = vld [vmem:[#allocation12 + $0xf0] sm:$0xff]
    %v258 = vld [vmem:[#allocation12 + $0xf8] sm:$0xff]
    %v259 = vld [vmem:[#allocation12 + $0x100] sm:$0xff]
    %v260 = vld [vmem:[#allocation12 + $0x108] sm:$0xff]
    %v261 = vld [vmem:[#allocation12 + $0x110] sm:$0xff]
    %v262 = vld [vmem:[#allocation12 + $0x118] sm:$0xff]
    %v263 = vld [vmem:[#allocation12 + $0x120] sm:$0xff]
    %v264 = vld [vmem:[#allocation12 + $0x128] sm:$0xff]
    %v265 = vld [vmem:[#allocation12 + $0x130] sm:$0xff]
    %v266 = vld [vmem:[#allocation12 + $0x138] sm:$0xff]
    %v267 = vld [vmem:[#allocation12 + $0x140] sm:$0xff]
    %v268 = vld [vmem:[#allocation12 + $0x148] sm:$0xff]
    %v269 = vld [vmem:[#allocation12 + $0x150] sm:$0xff]
    %v270 = vld [vmem:[#allocation12 + $0x158] sm:$0xff]
    %v271 = vld [vmem:[#allocation12 + $0x160] sm:$0xff]
    %v272 = vld [vmem:[#allocation12 + $0x168] sm:$0xff]
    %v273 = vld [vmem:[#allocation12 + $0x170] sm:$0xff]
    %v274 = vld [vmem:[#allocation12 + $0x178] sm:$0xff]
    %v275 = vld [vmem:[#allocation9] sm:$0x1]
    %v277 = vperm.slane %v275, 0
    %v279 = vld [vmem:[%s6] sm:$0x1]
    %v281 = vperm.slane %v279, 0
    %v283 = vld [vmem:[%s4] sm:$0x7]
    %v285 = vperm.slane %v283, 0
    %v286 = vperm.slane %v283, 1
    %v287 = vperm.slane %v283, 2
    %v291 = vld [vmem:[#allocation2] sm:$0xff]
    %v292 = vld [vmem:[#allocation3] sm:$0xff]
    %v293 = vld [vmem:[#allocation4] sm:$0xff]
    %v294 = vld [vmem:[#allocation4 + $0x8] sm:$0xff]
    %v295 = vld [vmem:[#allocation4 + $0x10] sm:$0xff]
    %296 = vmatpush.msra.mxu0 %v176
    %297 = vmatpush.msra.mxu0 %v173
    %298 = vmatpush.msra.mxu0 %v170
    %299 = vmatpush.msra.mxu0 %v167
    %300 = vmatpush.msra.mxu0 %v164
    %301 = vmatpush.msra.mxu0 %v161
    %302 = vmatpush.msra.mxu0 %v158
    %303 = vmatpush.msra.mxu0 %v155
    %304 = vmatpush.msra.mxu0 %v152
    %305 = vmatpush.msra.mxu0 %v149
    %306 = vmatpush.msra.mxu0 %v146
    %307 = vmatpush.msra.mxu0 %v143
    %308 = vmatpush.msra.mxu0 %v140
    %309 = vmatpush.msra.mxu0 %v137
    %310 = vmatpush.msra.mxu0 %v134
    %311 = vmatpush.msra.mxu0 %v131
    %312 = vmatmul.f32.gmra.mxu0 %v291
    %v313 = vpop.f32.mrf.mxu0
    %v314 = vadd.f32 0.0, %v313
    %315 = vdwg.mxu0
    %316 = vmatpush.msra.mxu0 %v177
    %317 = vmatpush.msra.mxu0 %v174
    %318 = vmatpush.msra.mxu0 %v171
    %319 = vmatpush.msra.mxu0 %v168
    %320 = vmatpush.msra.mxu0 %v165
    %321 = vmatpush.msra.mxu0 %v162
    %322 = vmatpush.msra.mxu0 %v159
    %323 = vmatpush.msra.mxu0 %v156
    %324 = vmatpush.msra.mxu0 %v153
    %325 = vmatpush.msra.mxu0 %v150
    %326 = vmatpush.msra.mxu0 %v147
    %327 = vmatpush.msra.mxu0 %v144
    %328 = vmatpush.msra.mxu0 %v141
    %329 = vmatpush.msra.mxu0 %v138
    %330 = vmatpush.msra.mxu0 %v135
    %331 = vmatpush.msra.mxu0 %v132
    %332 = vmatmul.f32.gmra.mxu0 %v291
    %v333 = vpop.f32.mrf.mxu0
    %v334 = vadd.f32 0.0, %v333
    %335 = vdwg.mxu0
    %336 = vmatpush.msra.mxu0 %v178
    %337 = vmatpush.msra.mxu0 %v175
    %338 = vmatpush.msra.mxu0 %v172
    %339 = vmatpush.msra.mxu0 %v169
    %340 = vmatpush.msra.mxu0 %v166
    %341 = vmatpush.msra.mxu0 %v163
    %342 = vmatpush.msra.mxu0 %v160
    %343 = vmatpush.msra.mxu0 %v157
    %344 = vmatpush.msra.mxu0 %v154
    %345 = vmatpush.msra.mxu0 %v151
    %346 = vmatpush.msra.mxu0 %v148
    %347 = vmatpush.msra.mxu0 %v145
    %348 = vmatpush.msra.mxu0 %v142
    %349 = vmatpush.msra.mxu0 %v139
    %350 = vmatpush.msra.mxu0 %v136
    %351 = vmatpush.msra.mxu0 %v133
    %352 = vmatmul.f32.gmra.mxu0 %v291
    %v353 = vpop.f32.mrf.mxu0
    %v354 = vadd.f32 0.0, %v353
    %355 = vdwg.mxu0
    %v356 = vadd.f32 %v293, %v314
    %v357 = vxor.u32 %v356, 2147483648
    %v358 = vmul.f32 %v357, 1.442695
    %v359 = vpow.pop %v358
    %v360 = vadd.f32 %v359, 1.0
    %v361 = vrcp.pop %v360
    %v362 = vmul.f32 %v360, %v361
    %v363 = vsub.f32 1.0, %v362
    %v364 = vmul.f32 %v361, %v363
    %v365 = vadd.f32 %v361, %v364
    %vm366 = vweird.f32 %v360
    %vm367 = vweird.f32 %v361
    %vm368 = vmor %vm366, %vm367
    %v369 = vsel %vm368, %v361, %v365
    %v370 = vand.u32 2147483647, %v360
    %vm371 = vcmp.eq.f32.partialorder %v370, 8.507059e+37
    %v372 = vand.u32 %v360, 2147483648
    %v373 = vor.u32 1.1754944e-38, %v372
    %v374 = vsel %vm371, %v373, %v369
    %v375 = vmul.f32 1.0, %v374
    %v376 = vadd.f32 %v294, %v334
    %v377 = vxor.u32 %v376, 2147483648
    %v378 = vmul.f32 %v377, 1.442695
    %v379 = vpow.pop %v378
    %v380 = vadd.f32 %v379, 1.0
    %v381 = vrcp.pop %v380
    %v382 = vmul.f32 %v380, %v381
    %v383 = vsub.f32 1.0, %v382
    %v384 = vmul.f32 %v381, %v383
    %v385 = vadd.f32 %v381, %v384
    %vm386 = vweird.f32 %v380
    %vm387 = vweird.f32 %v381
    %vm388 = vmor %vm386, %vm387
    %v389 = vsel %vm388, %v381, %v385
    %v390 = vand.u32 2147483647, %v380
    %vm391 = vcmp.eq.f32.partialorder %v390, 8.507059e+37
    %v392 = vand.u32 %v380, 2147483648
    %v393 = vor.u32 1.1754944e-38, %v392
    %v394 = vsel %vm391, %v393, %v389
    %v395 = vmul.f32 1.0, %v394
    %v396 = vadd.f32 %v354, %v277
    %v397 = vmul.f32 %v375, %v396
    %v398 = vadd.f32 %v295, %v397
    %v399 = vtanh.pop %v398
    %v400 = vsub.f32 1.0, %v395
    %v401 = vmul.f32 %v400, %v399
    %v402 = vmul.f32 %v395, %v291
    %v403 = vadd.f32 %v401, %v402
    %404 = vmatpush.msra.mxu0 %v224
    %405 = vmatpush.msra.mxu0 %v221
    %406 = vmatpush.msra.mxu0 %v218
    %407 = vmatpush.msra.mxu0 %v215
    %408 = vmatpush.msra.mxu0 %v212
    %409 = vmatpush.msra.mxu0 %v209
    %410 = vmatpush.msra.mxu0 %v206
    %411 = vmatpush.msra.mxu0 %v203
    %412 = vmatpush.msra.mxu0 %v200
    %413 = vmatpush.msra.mxu0 %v197
    %414 = vmatpush.msra.mxu0 %v194
    %415 = vmatpush.msra.mxu0 %v191
    %416 = vmatpush.msra.mxu0 %v188
    %417 = vmatpush.msra.mxu0 %v185
    %418 = vmatpush.msra.mxu0 %v182
    %419 = vmatpush.msra.mxu0 %v179
    %420 = vmatmul.f32.gmra.mxu0 %v403
    %v421 = vpop.f32.mrf.mxu0
    %v422 = vadd.f32 %v285, %v421
    %423 = vdwg.mxu0
    %424 = vmatpush.msra.mxu0 %v225
    %425 = vmatpush.msra.mxu0 %v222
    %426 = vmatpush.msra.mxu0 %v219
    %427 = vmatpush.msra.mxu0 %v216
    %428 = vmatpush.msra.mxu0 %v213
    %429 = vmatpush.msra.mxu0 %v210
    %430 = vmatpush.msra.mxu0 %v207
    %431 = vmatpush.msra.mxu0 %v204
    %432 = vmatpush.msra.mxu0 %v201
    %433 = vmatpush.msra.mxu0 %v198
    %434 = vmatpush.msra.mxu0 %v195
    %435 = vmatpush.msra.mxu0 %v192
    %436 = vmatpush.msra.mxu0 %v189
    %437 = vmatpush.msra.mxu0 %v186
    %438 = vmatpush.msra.mxu0 %v183
    %439 = vmatpush.msra.mxu0 %v180
    %440 = vmatmul.f32.gmra.mxu0 %v403
    %v441 = vpop.f32.mrf.mxu0
    %v442 = vadd.f32 %v286, %v441
    %443 = vdwg.mxu0
    %444 = vmatpush.msra.mxu0 %v226
    %445 = vmatpush.msra.mxu0 %v223
    %446 = vmatpush.msra.mxu0 %v220
    %447 = vmatpush.msra.mxu0 %v217
    %448 = vmatpush.msra.mxu0 %v214
    %449 = vmatpush.msra.mxu0 %v211
    %450 = vmatpush.msra.mxu0 %v208
    %451 = vmatpush.msra.mxu0 %v205
    %452 = vmatpush.msra.mxu0 %v202
    %453 = vmatpush.msra.mxu0 %v199
    %454 = vmatpush.msra.mxu0 %v196
    %455 = vmatpush.msra.mxu0 %v193
    %456 = vmatpush.msra.mxu0 %v190
    %457 = vmatpush.msra.mxu0 %v187
    %458 = vmatpush.msra.mxu0 %v184
    %459 = vmatpush.msra.mxu0 %v181
    %460 = vmatmul.f32.gmra.mxu0 %v403
    %v461 = vpop.f32.mrf.mxu0
    %v462 = vadd.f32 %v287, %v461
    %463 = vdwg.mxu0
    %464 = vmatpush.msra.mxu0 %v272
    %465 = vmatpush.msra.mxu0 %v269
    %466 = vmatpush.msra.mxu0 %v266
    %467 = vmatpush.msra.mxu0 %v263
    %468 = vmatpush.msra.mxu0 %v260
    %469 = vmatpush.msra.mxu0 %v257
    %470 = vmatpush.msra.mxu0 %v254
    %471 = vmatpush.msra.mxu0 %v251
    %472 = vmatpush.msra.mxu0 %v248
    %473 = vmatpush.msra.mxu0 %v245
    %474 = vmatpush.msra.mxu0 %v242
    %475 = vmatpush.msra.mxu0 %v239
    %476 = vmatpush.msra.mxu0 %v236
    %477 = vmatpush.msra.mxu0 %v233
    %478 = vmatpush.msra.mxu0 %v230
    %479 = vmatpush.msra.mxu0 %v227
    %480 = vmatmul.f32.gmra.mxu0 %v292
    %v481 = vpop.f32.mrf.mxu0
    %v482 = vadd.f32 0.0, %v481
    %483 = vdwg.mxu0
    %484 = vmatpush.msra.mxu0 %v273
    %485 = vmatpush.msra.mxu0 %v270
    %486 = vmatpush.msra.mxu0 %v267
    %487 = vmatpush.msra.mxu0 %v264
    %488 = vmatpush.msra.mxu0 %v261
    %489 = vmatpush.msra.mxu0 %v258
    %490 = vmatpush.msra.mxu0 %v255
    %491 = vmatpush.msra.mxu0 %v252
    %492 = vmatpush.msra.mxu0 %v249
    %493 = vmatpush.msra.mxu0 %v246
    %494 = vmatpush.msra.mxu0 %v243
    %495 = vmatpush.msra.mxu0 %v240
    %496 = vmatpush.msra.mxu0 %v237
    %497 = vmatpush.msra.mxu0 %v234
    %498 = vmatpush.msra.mxu0 %v231
    %499 = vmatpush.msra.mxu0 %v228
    %500 = vmatmul.f32.gmra.mxu0 %v292
    %v501 = vpop.f32.mrf.mxu0
    %v502 = vadd.f32 0.0, %v501
    %503 = vdwg.mxu0
    %504 = vmatpush.msra.mxu0 %v274
    %505 = vmatpush.msra.mxu0 %v271
    %506 = vmatpush.msra.mxu0 %v268
    %507 = vmatpush.msra.mxu0 %v265
    %508 = vmatpush.msra.mxu0 %v262
    %509 = vmatpush.msra.mxu0 %v259
    %510 = vmatpush.msra.mxu0 %v256
    %511 = vmatpush.msra.mxu0 %v253
    %512 = vmatpush.msra.mxu0 %v250
    %513 = vmatpush.msra.mxu0 %v247
    %514 = vmatpush.msra.mxu0 %v244
    %515 = vmatpush.msra.mxu0 %v241
    %516 = vmatpush.msra.mxu0 %v238
    %517 = vmatpush.msra.mxu0 %v235
    %518 = vmatpush.msra.mxu0 %v232
    %519 = vmatpush.msra.mxu0 %v229
    %520 = vmatmul.f32.gmra.mxu0 %v292
    %v521 = vpop.f32.mrf.mxu0
    %v522 = vadd.f32 0.0, %v521
    %523 = vdwg.mxu0
    %v524 = vadd.f32 %v422, %v482
    %v525 = vxor.u32 %v524, 2147483648
    %v526 = vmul.f32 %v525, 1.442695
    %v527 = vpow.pop %v526
    %v528 = vadd.f32 %v527, 1.0
    %v529 = vrcp.pop %v528
    %v530 = vmul.f32 %v528, %v529
    %v531 = vsub.f32 1.0, %v530
    %v532 = vmul.f32 %v529, %v531
    %v533 = vadd.f32 %v529, %v532
    %vm534 = vweird.f32 %v528
    %vm535 = vweird.f32 %v529
    %vm536 = vmor %vm534, %vm535
    %v537 = vsel %vm536, %v529, %v533
    %v538 = vand.u32 2147483647, %v528
    %vm539 = vcmp.eq.f32.partialorder %v538, 8.507059e+37
    %v540 = vand.u32 %v528, 2147483648
    %v541 = vor.u32 1.1754944e-38, %v540
    %v542 = vsel %vm539, %v541, %v537
    %v543 = vmul.f32 1.0, %v542
    %v544 = vadd.f32 %v442, %v502
    %v545 = vxor.u32 %v544, 2147483648
    %v546 = vmul.f32 %v545, 1.442695
    %v547 = vpow.pop %v546
    %v548 = vadd.f32 %v547, 1.0
    %v549 = vrcp.pop %v548
    %v550 = vmul.f32 %v548, %v549
    %v551 = vsub.f32 1.0, %v550
    %v552 = vmul.f32 %v549, %v551
    %v553 = vadd.f32 %v549, %v552
    %vm554 = vweird.f32 %v548
    %vm555 = vweird.f32 %v549
    %vm556 = vmor %vm554, %vm555
    %v557 = vsel %vm556, %v549, %v553
    %v558 = vand.u32 2147483647, %v548
    %vm559 = vcmp.eq.f32.partialorder %v558, 8.507059e+37
    %v560 = vand.u32 %v548, 2147483648
    %v561 = vor.u32 1.1754944e-38, %v560
    %v562 = vsel %vm559, %v561, %v557
    %v563 = vmul.f32 1.0, %v562
    %v564 = vadd.f32 %v522, %v281
    %v565 = vmul.f32 %v543, %v564
    %v566 = vadd.f32 %v462, %v565
    %v567 = vtanh.pop %v566
    %v568 = vsub.f32 1.0, %v563
    %v569 = vmul.f32 %v568, %v567
    %v570 = vmul.f32 %v563, %v292
    %v571 = vadd.f32 %v569, %v570
    %s572 = scalar_lea.vmem [#allocation4], 24
    %v573 = vld [vmem:[%s572] sm:$0xff]
    %v574 = vld [vmem:[%s572 + $0x8] sm:$0xff]
    %v575 = vld [vmem:[%s572 + $0x10] sm:$0xff]
    %576 = vmatpush.msra.mxu0 %v176
    %577 = vmatpush.msra.mxu0 %v173
    %578 = vmatpush.msra.mxu0 %v170
    %579 = vmatpush.msra.mxu0 %v167
    %580 = vmatpush.msra.mxu0 %v164
    %581 = vmatpush.msra.mxu0 %v161
    %582 = vmatpush.msra.mxu0 %v158
    %583 = vmatpush.msra.mxu0 %v155
    %584 = vmatpush.msra.mxu0 %v152
    %585 = vmatpush.msra.mxu0 %v149
    %586 = vmatpush.msra.mxu0 %v146
    %587 = vmatpush.msra.mxu0 %v143
    %588 = vmatpush.msra.mxu0 %v140
    %589 = vmatpush.msra.mxu0 %v137
    %590 = vmatpush.msra.mxu0 %v134
    %591 = vmatpush.msra.mxu0 %v131
    %592 = vmatmul.f32.gmra.mxu0 %v403
    %v593 = vpop.f32.mrf.mxu0
    %v594 = vadd.f32 0.0, %v593
    %595 = vdwg.mxu0
    %596 = vmatpush.msra.mxu0 %v177
    %597 = vmatpush.msra.mxu0 %v174
    %598 = vmatpush.msra.mxu0 %v171
    %599 = vmatpush.msra.mxu0 %v168
    %600 = vmatpush.msra.mxu0 %v165
    %601 = vmatpush.msra.mxu0 %v162
    %602 = vmatpush.msra.mxu0 %v159
    %603 = vmatpush.msra.mxu0 %v156
    %604 = vmatpush.msra.mxu0 %v153
    %605 = vmatpush.msra.mxu0 %v150
    %606 = vmatpush.msra.mxu0 %v147
    %607 = vmatpush.msra.mxu0 %v144
    %608 = vmatpush.msra.mxu0 %v141
    %609 = vmatpush.msra.mxu0 %v138
    %610 = vmatpush.msra.mxu0 %v135
    %611 = vmatpush.msra.mxu0 %v132
    %612 = vmatmul.f32.gmra.mxu0 %v403
    %v613 = vpop.f32.mrf.mxu0
    %v614 = vadd.f32 0.0, %v613
    %615 = vdwg.mxu0
    %616 = vmatpush.msra.mxu0 %v178
    %617 = vmatpush.msra.mxu0 %v175
    %618 = vmatpush.msra.mxu0 %v172
    %619 = vmatpush.msra.mxu0 %v169
    %620 = vmatpush.msra.mxu0 %v166
    %621 = vmatpush.msra.mxu0 %v163
    %622 = vmatpush.msra.mxu0 %v160
    %623 = vmatpush.msra.mxu0 %v157
    %624 = vmatpush.msra.mxu0 %v154
    %625 = vmatpush.msra.mxu0 %v151
    %626 = vmatpush.msra.mxu0 %v148
    %627 = vmatpush.msra.mxu0 %v145
    %628 = vmatpush.msra.mxu0 %v142
    %629 = vmatpush.msra.mxu0 %v139
    %630 = vmatpush.msra.mxu0 %v136
    %631 = vmatpush.msra.mxu0 %v133
    %632 = vmatmul.f32.gmra.mxu0 %v403
    %v633 = vpop.f32.mrf.mxu0
    %v634 = vadd.f32 0.0, %v633
    %635 = vdwg.mxu0
    %v636 = vadd.f32 %v573, %v594
    %v637 = vxor.u32 %v636, 2147483648
    %v638 = vmul.f32 %v637, 1.442695
    %v639 = vpow.pop %v638
    %v640 = vadd.f32 %v639, 1.0
    %v641 = vrcp.pop %v640
    %v642 = vmul.f32 %v640, %v641
    %v643 = vsub.f32 1.0, %v642
    %v644 = vmul.f32 %v641, %v643
    %v645 = vadd.f32 %v641, %v644
    %vm646 = vweird.f32 %v640
    %vm647 = vweird.f32 %v641
    %vm648 = vmor %vm646, %vm647
    %v649 = vsel %vm648, %v641, %v645
    %v650 = vand.u32 2147483647, %v640
    %vm651 = vcmp.eq.f32.partialorder %v650, 8.507059e+37
    %v652 = vand.u32 %v640, 2147483648
    %v653 = vor.u32 1.1754944e-38, %v652
    %v654 = vsel %vm651, %v653, %v649
    %v655 = vmul.f32 1.0, %v654
    %v656 = vadd.f32 %v574, %v614
    %v657 = vxor.u32 %v656, 2147483648
    %v658 = vmul.f32 %v657, 1.442695
    %v659 = vpow.pop %v658
    %v660 = vadd.f32 %v659, 1.0
    %v661 = vrcp.pop %v660
    %v662 = vmul.f32 %v660, %v661
    %v663 = vsub.f32 1.0, %v662
    %v664 = vmul.f32 %v661, %v663
    %v665 = vadd.f32 %v661, %v664
    %vm666 = vweird.f32 %v660
    %vm667 = vweird.f32 %v661
    %vm668 = vmor %vm666, %vm667
    %v669 = vsel %vm668, %v661, %v665
    %v670 = vand.u32 2147483647, %v660
    %vm671 = vcmp.eq.f32.partialorder %v670, 8.507059e+37
    %v672 = vand.u32 %v660, 2147483648
    %v673 = vor.u32 1.1754944e-38, %v672
    %v674 = vsel %vm671, %v673, %v669
    %v675 = vmul.f32 1.0, %v674
    %v676 = vadd.f32 %v634, %v277
    %v677 = vmul.f32 %v655, %v676
    %v678 = vadd.f32 %v575, %v677
    %v679 = vtanh.pop %v678
    %v680 = vsub.f32 1.0, %v675
    %v681 = vmul.f32 %v680, %v679
    %v682 = vmul.f32 %v675, %v403
    %v683 = vadd.f32 %v681, %v682
    %684 = vmatpush.msra.mxu0 %v224
    %685 = vmatpush.msra.mxu0 %v221
    %686 = vmatpush.msra.mxu0 %v218
    %687 = vmatpush.msra.mxu0 %v215
    %688 = vmatpush.msra.mxu0 %v212
    %689 = vmatpush.msra.mxu0 %v209
    %690 = vmatpush.msra.mxu0 %v206
    %691 = vmatpush.msra.mxu0 %v203
    %692 = vmatpush.msra.mxu0 %v200
    %693 = vmatpush.msra.mxu0 %v197
    %694 = vmatpush.msra.mxu0 %v194
    %695 = vmatpush.msra.mxu0 %v191
    %696 = vmatpush.msra.mxu0 %v188
    %697 = vmatpush.msra.mxu0 %v185
    %698 = vmatpush.msra.mxu0 %v182
    %699 = vmatpush.msra.mxu0 %v179
    %700 = vmatmul.f32.gmra.mxu0 %v683
    %v701 = vpop.f32.mrf.mxu0
    %v702 = vadd.f32 %v285, %v701
    %703 = vdwg.mxu0
    %704 = vmatpush.msra.mxu0 %v225
    %705 = vmatpush.msra.mxu0 %v222
    %706 = vmatpush.msra.mxu0 %v219
    %707 = vmatpush.msra.mxu0 %v216
    %708 = vmatpush.msra.mxu0 %v213
    %709 = vmatpush.msra.mxu0 %v210
    %710 = vmatpush.msra.mxu0 %v207
    %711 = vmatpush.msra.mxu0 %v204
    %712 = vmatpush.msra.mxu0 %v201
    %713 = vmatpush.msra.mxu0 %v198
    %714 = vmatpush.msra.mxu0 %v195
    %715 = vmatpush.msra.mxu0 %v192
    %716 = vmatpush.msra.mxu0 %v189
    %717 = vmatpush.msra.mxu0 %v186
    %718 = vmatpush.msra.mxu0 %v183
    %719 = vmatpush.msra.mxu0 %v180
    %720 = vmatmul.f32.gmra.mxu0 %v683
    %v721 = vpop.f32.mrf.mxu0
    %v722 = vadd.f32 %v286, %v721
    %723 = vdwg.mxu0
    %724 = vmatpush.msra.mxu0 %v226
    %725 = vmatpush.msra.mxu0 %v223
    %726 = vmatpush.msra.mxu0 %v220
    %727 = vmatpush.msra.mxu0 %v217
    %728 = vmatpush.msra.mxu0 %v214
    %729 = vmatpush.msra.mxu0 %v211
    %730 = vmatpush.msra.mxu0 %v208
    %731 = vmatpush.msra.mxu0 %v205
    %732 = vmatpush.msra.mxu0 %v202
    %733 = vmatpush.msra.mxu0 %v199
    %734 = vmatpush.msra.mxu0 %v196
    %735 = vmatpush.msra.mxu0 %v193
    %736 = vmatpush.msra.mxu0 %v190
    %737 = vmatpush.msra.mxu0 %v187
    %738 = vmatpush.msra.mxu0 %v184
    %739 = vmatpush.msra.mxu0 %v181
    %740 = vmatmul.f32.gmra.mxu0 %v683
    %v741 = vpop.f32.mrf.mxu0
    %v742 = vadd.f32 %v287, %v741
    %743 = vdwg.mxu0
    %744 = vmatpush.msra.mxu0 %v272
    %745 = vmatpush.msra.mxu0 %v269
    %746 = vmatpush.msra.mxu0 %v266
    %747 = vmatpush.msra.mxu0 %v263
    %748 = vmatpush.msra.mxu0 %v260
    %749 = vmatpush.msra.mxu0 %v257
    %750 = vmatpush.msra.mxu0 %v254
    %751 = vmatpush.msra.mxu0 %v251
    %752 = vmatpush.msra.mxu0 %v248
    %753 = vmatpush.msra.mxu0 %v245
    %754 = vmatpush.msra.mxu0 %v242
    %755 = vmatpush.msra.mxu0 %v239
    %756 = vmatpush.msra.mxu0 %v236
    %757 = vmatpush.msra.mxu0 %v233
    %758 = vmatpush.msra.mxu0 %v230
    %759 = vmatpush.msra.mxu0 %v227
    %760 = vmatmul.f32.gmra.mxu0 %v571
    %v761 = vpop.f32.mrf.mxu0
    %v762 = vadd.f32 0.0, %v761
    %763 = vdwg.mxu0
    %764 = vmatpush.msra.mxu0 %v273
    %765 = vmatpush.msra.mxu0 %v270
    %766 = vmatpush.msra.mxu0 %v267
    %767 = vmatpush.msra.mxu0 %v264
    %768 = vmatpush.msra.mxu0 %v261
    %769 = vmatpush.msra.mxu0 %v258
    %770 = vmatpush.msra.mxu0 %v255
    %771 = vmatpush.msra.mxu0 %v252
    %772 = vmatpush.msra.mxu0 %v249
    %773 = vmatpush.msra.mxu0 %v246
    %774 = vmatpush.msra.mxu0 %v243
    %775 = vmatpush.msra.mxu0 %v240
    %776 = vmatpush.msra.mxu0 %v237
    %777 = vmatpush.msra.mxu0 %v234
    %778 = vmatpush.msra.mxu0 %v231
    %779 = vmatpush.msra.mxu0 %v228
    %780 = vmatmul.f32.gmra.mxu0 %v571
    %v781 = vpop.f32.mrf.mxu0
    %v782 = vadd.f32 0.0, %v781
    %783 = vdwg.mxu0
    %784 = vmatpush.msra.mxu0 %v274
    %785 = vmatpush.msra.mxu0 %v271
    %786 = vmatpush.msra.mxu0 %v268
    %787 = vmatpush.msra.mxu0 %v265
    %788 = vmatpush.msra.mxu0 %v262
    %789 = vmatpush.msra.mxu0 %v259
    %790 = vmatpush.msra.mxu0 %v256
    %791 = vmatpush.msra.mxu0 %v253
    %792 = vmatpush.msra.mxu0 %v250
    %793 = vmatpush.msra.mxu0 %v247
    %794 = vmatpush.msra.mxu0 %v244
    %795 = vmatpush.msra.mxu0 %v241
    %796 = vmatpush.msra.mxu0 %v238
    %797 = vmatpush.msra.mxu0 %v235
    %798 = vmatpush.msra.mxu0 %v232
    %799 = vmatpush.msra.mxu0 %v229
    %800 = vmatmul.f32.gmra.mxu0 %v571
    %v801 = vpop.f32.mrf.mxu0
    %v802 = vadd.f32 0.0, %v801
    %803 = vdwg.mxu0
    %v804 = vadd.f32 %v702, %v762
    %v805 = vxor.u32 %v804, 2147483648
    %v806 = vmul.f32 %v805, 1.442695
    %v807 = vpow.pop %v806
    %v808 = vadd.f32 %v807, 1.0
    %v809 = vrcp.pop %v808
    %v810 = vmul.f32 %v808, %v809
    %v811 = vsub.f32 1.0, %v810
    %v812 = vmul.f32 %v809, %v811
    %v813 = vadd.f32 %v809, %v812
    %vm814 = vweird.f32 %v808
    %vm815 = vweird.f32 %v809
    %vm816 = vmor %vm814, %vm815
    %v817 = vsel %vm816, %v809, %v813
    %v818 = vand.u32 2147483647, %v808
    %vm819 = vcmp.eq.f32.partialorder %v818, 8.507059e+37
    %v820 = vand.u32 %v808, 2147483648
    %v821 = vor.u32 1.1754944e-38, %v820
    %v822 = vsel %vm819, %v821, %v817
    %v823 = vmul.f32 1.0, %v822
    %v824 = vadd.f32 %v722, %v782
    %v825 = vxor.u32 %v824, 2147483648
    %v826 = vmul.f32 %v825, 1.442695
    %v827 = vpow.pop %v826
    %v828 = vadd.f32 %v827, 1.0
    %v829 = vrcp.pop %v828
    %v830 = vmul.f32 %v828, %v829
    %v831 = vsub.f32 1.0, %v830
    %v832 = vmul.f32 %v829, %v831
    %v833 = vadd.f32 %v829, %v832
    %vm834 = vweird.f32 %v828
    %vm835 = vweird.f32 %v829
    %vm836 = vmor %vm834, %vm835
    %v837 = vsel %vm836, %v829, %v833
    %v838 = vand.u32 2147483647, %v828
    %vm839 = vcmp.eq.f32.partialorder %v838, 8.507059e+37
    %v840 = vand.u32 %v828, 2147483648
    %v841 = vor.u32 1.1754944e-38, %v840
    %v842 = vsel %vm839, %v841, %v837
    %v843 = vmul.f32 1.0, %v842
    %v844 = vadd.f32 %v802, %v281
    %v845 = vmul.f32 %v823, %v844
    %v846 = vadd.f32 %v742, %v845
    %v847 = vtanh.pop %v846
    %v848 = vsub.f32 1.0, %v843
    %v849 = vmul.f32 %v848, %v847
    %v850 = vmul.f32 %v843, %v571
    %v851 = vadd.f32 %v849, %v850
    %s852 = scalar_lea.vmem [#allocation4], 48
    %v853 = vld [vmem:[%s852] sm:$0xff]
    %v854 = vld [vmem:[%s852 + $0x8] sm:$0xff]
    %v855 = vld [vmem:[%s852 + $0x10] sm:$0xff]
    %856 = vmatpush.msra.mxu0 %v176
    %857 = vmatpush.msra.mxu0 %v173
    %858 = vmatpush.msra.mxu0 %v170
    %859 = vmatpush.msra.mxu0 %v167
    %860 = vmatpush.msra.mxu0 %v164
    %861 = vmatpush.msra.mxu0 %v161
    %862 = vmatpush.msra.mxu0 %v158
    %863 = vmatpush.msra.mxu0 %v155
    %864 = vmatpush.msra.mxu0 %v152
    %865 = vmatpush.msra.mxu0 %v149
    %866 = vmatpush.msra.mxu0 %v146
    %867 = vmatpush.msra.mxu0 %v143
    %868 = vmatpush.msra.mxu0 %v140
    %869 = vmatpush.msra.mxu0 %v137
    %870 = vmatpush.msra.mxu0 %v134
    %871 = vmatpush.msra.mxu0 %v131
    %872 = vmatmul.f32.gmra.mxu0 %v683
    %v873 = vpop.f32.mrf.mxu0
    %v874 = vadd.f32 0.0, %v873
    %875 = vdwg.mxu0
    %876 = vmatpush.msra.mxu0 %v177
    %877 = vmatpush.msra.mxu0 %v174
    %878 = vmatpush.msra.mxu0 %v171
    %879 = vmatpush.msra.mxu0 %v168
    %880 = vmatpush.msra.mxu0 %v165
    %881 = vmatpush.msra.mxu0 %v162
    %882 = vmatpush.msra.mxu0 %v159
    %883 = vmatpush.msra.mxu0 %v156
    %884 = vmatpush.msra.mxu0 %v153
    %885 = vmatpush.msra.mxu0 %v150
    %886 = vmatpush.msra.mxu0 %v147
    %887 = vmatpush.msra.mxu0 %v144
    %888 = vmatpush.msra.mxu0 %v141
    %889 = vmatpush.msra.mxu0 %v138
    %890 = vmatpush.msra.mxu0 %v135
    %891 = vmatpush.msra.mxu0 %v132
    %892 = vmatmul.f32.gmra.mxu0 %v683
    %v893 = vpop.f32.mrf.mxu0
    %v894 = vadd.f32 0.0, %v893
    %895 = vdwg.mxu0
    %896 = vmatpush.msra.mxu0 %v178
    %897 = vmatpush.msra.mxu0 %v175
    %898 = vmatpush.msra.mxu0 %v172
    %899 = vmatpush.msra.mxu0 %v169
    %900 = vmatpush.msra.mxu0 %v166
    %901 = vmatpush.msra.mxu0 %v163
    %902 = vmatpush.msra.mxu0 %v160
    %903 = vmatpush.msra.mxu0 %v157
    %904 = vmatpush.msra.mxu0 %v154
    %905 = vmatpush.msra.mxu0 %v151
    %906 = vmatpush.msra.mxu0 %v148
    %907 = vmatpush.msra.mxu0 %v145
    %908 = vmatpush.msra.mxu0 %v142
    %909 = vmatpush.msra.mxu0 %v139
    %910 = vmatpush.msra.mxu0 %v136
    %911 = vmatpush.msra.mxu0 %v133
    %912 = vmatmul.f32.gmra.mxu0 %v683
    %v913 = vpop.f32.mrf.mxu0
    %v914 = vadd.f32 0.0, %v913
    %915 = vdwg.mxu0
    %v916 = vadd.f32 %v853, %v874
    %v917 = vxor.u32 %v916, 2147483648
    %v918 = vmul.f32 %v917, 1.442695
    %v919 = vpow.pop %v918
    %v920 = vadd.f32 %v919, 1.0
    %v921 = vrcp.pop %v920
    %v922 = vmul.f32 %v920, %v921
    %v923 = vsub.f32 1.0, %v922
    %v924 = vmul.f32 %v921, %v923
    %v925 = vadd.f32 %v921, %v924
    %vm926 = vweird.f32 %v920
    %vm927 = vweird.f32 %v921
    %vm928 = vmor %vm926, %vm927
    %v929 = vsel %vm928, %v921, %v925
    %v930 = vand.u32 2147483647, %v920
    %vm931 = vcmp.eq.f32.partialorder %v930, 8.507059e+37
    %v932 = vand.u32 %v920, 2147483648
    %v933 = vor.u32 1.1754944e-38, %v932
    %v934 = vsel %vm931, %v933, %v929
    %v935 = vmul.f32 1.0, %v934
    %v936 = vadd.f32 %v854, %v894
    %v937 = vxor.u32 %v936, 2147483648
    %v938 = vmul.f32 %v937, 1.442695
    %v939 = vpow.pop %v938
    %v940 = vadd.f32 %v939, 1.0
    %v941 = vrcp.pop %v940
    %v942 = vmul.f32 %v940, %v941
    %v943 = vsub.f32 1.0, %v942
    %v944 = vmul.f32 %v941, %v943
    %v945 = vadd.f32 %v941, %v944
    %vm946 = vweird.f32 %v940
    %vm947 = vweird.f32 %v941
    %vm948 = vmor %vm946, %vm947
    %v949 = vsel %vm948, %v941, %v945
    %v950 = vand.u32 2147483647, %v940
    %vm951 = vcmp.eq.f32.partialorder %v950, 8.507059e+37
    %v952 = vand.u32 %v940, 2147483648
    %v953 = vor.u32 1.1754944e-38, %v952
    %v954 = vsel %vm951, %v953, %v949
    %v955 = vmul.f32 1.0, %v954
    %v956 = vadd.f32 %v914, %v277
    %v957 = vmul.f32 %v935, %v956
    %v958 = vadd.f32 %v855, %v957
    %v959 = vtanh.pop %v958
    %v960 = vsub.f32 1.0, %v955
    %v961 = vmul.f32 %v960, %v959
    %v962 = vmul.f32 %v955, %v683
    %v963 = vadd.f32 %v961, %v962
    %964 = vmatpush.msra.mxu0 %v224
    %965 = vmatpush.msra.mxu0 %v221
    %966 = vmatpush.msra.mxu0 %v218
    %967 = vmatpush.msra.mxu0 %v215
    %968 = vmatpush.msra.mxu0 %v212
    %969 = vmatpush.msra.mxu0 %v209
    %970 = vmatpush.msra.mxu0 %v206
    %971 = vmatpush.msra.mxu0 %v203
    %972 = vmatpush.msra.mxu0 %v200
    %973 = vmatpush.msra.mxu0 %v197
    %974 = vmatpush.msra.mxu0 %v194
    %975 = vmatpush.msra.mxu0 %v191
    %976 = vmatpush.msra.mxu0 %v188
    %977 = vmatpush.msra.mxu0 %v185
    %978 = vmatpush.msra.mxu0 %v182
    %979 = vmatpush.msra.mxu0 %v179
    %980 = vmatmul.f32.gmra.mxu0 %v963
    %v981 = vpop.f32.mrf.mxu0
    %v982 = vadd.f32 %v285, %v981
    %983 = vdwg.mxu0
    %984 = vmatpush.msra.mxu0 %v225
    %985 = vmatpush.msra.mxu0 %v222
    %986 = vmatpush.msra.mxu0 %v219
    %987 = vmatpush.msra.mxu0 %v216
    %988 = vmatpush.msra.mxu0 %v213
    %989 = vmatpush.msra.mxu0 %v210
    %990 = vmatpush.msra.mxu0 %v207
    %991 = vmatpush.msra.mxu0 %v204
    %992 = vmatpush.msra.mxu0 %v201
    %993 = vmatpush.msra.mxu0 %v198
    %994 = vmatpush.msra.mxu0 %v195
    %995 = vmatpush.msra.mxu0 %v192
    %996 = vmatpush.msra.mxu0 %v189
    %997 = vmatpush.msra.mxu0 %v186
    %998 = vmatpush.msra.mxu0 %v183
    %999 = vmatpush.msra.mxu0 %v180
    %1000 = vmatmul.f32.gmra.mxu0 %v963
    %v1001 = vpop.f32.mrf.mxu0
    %v1002 = vadd.f32 %v286, %v1001
    %1003 = vdwg.mxu0
    %1004 = vmatpush.msra.mxu0 %v226
    %1005 = vmatpush.msra.mxu0 %v223
    %1006 = vmatpush.msra.mxu0 %v220
    %1007 = vmatpush.msra.mxu0 %v217
    %1008 = vmatpush.msra.mxu0 %v214
    %1009 = vmatpush.msra.mxu0 %v211
    %1010 = vmatpush.msra.mxu0 %v208
    %1011 = vmatpush.msra.mxu0 %v205
    %1012 = vmatpush.msra.mxu0 %v202
    %1013 = vmatpush.msra.mxu0 %v199
    %1014 = vmatpush.msra.mxu0 %v196
    %1015 = vmatpush.msra.mxu0 %v193
    %1016 = vmatpush.msra.mxu0 %v190
    %1017 = vmatpush.msra.mxu0 %v187
    %1018 = vmatpush.msra.mxu0 %v184
    %1019 = vmatpush.msra.mxu0 %v181
    %1020 = vmatmul.f32.gmra.mxu0 %v963
    %v1021 = vpop.f32.mrf.mxu0
    %v1022 = vadd.f32 %v287, %v1021
    %1023 = vdwg.mxu0
    %1024 = vmatpush.msra.mxu0 %v272
    %1025 = vmatpush.msra.mxu0 %v269
    %1026 = vmatpush.msra.mxu0 %v266
    %1027 = vmatpush.msra.mxu0 %v263
    %1028 = vmatpush.msra.mxu0 %v260
    %1029 = vmatpush.msra.mxu0 %v257
    %1030 = vmatpush.msra.mxu0 %v254
    %1031 = vmatpush.msra.mxu0 %v251
    %1032 = vmatpush.msra.mxu0 %v248
    %1033 = vmatpush.msra.mxu0 %v245
    %1034 = vmatpush.msra.mxu0 %v242
    %1035 = vmatpush.msra.mxu0 %v239
    %1036 = vmatpush.msra.mxu0 %v236
    %1037 = vmatpush.msra.mxu0 %v233
    %1038 = vmatpush.msra.mxu0 %v230
    %1039 = vmatpush.msra.mxu0 %v227
    %1040 = vmatmul.f32.gmra.mxu0 %v851
    %v1041 = vpop.f32.mrf.mxu0
    %v1042 = vadd.f32 0.0, %v1041
    %1043 = vdwg.mxu0
    %1044 = vmatpush.msra.mxu0 %v273
    %1045 = vmatpush.msra.mxu0 %v270
    %1046 = vmatpush.msra.mxu0 %v267
    %1047 = vmatpush.msra.mxu0 %v264
    %1048 = vmatpush.msra.mxu0 %v261
    %1049 = vmatpush.msra.mxu0 %v258
    %1050 = vmatpush.msra.mxu0 %v255
    %1051 = vmatpush.msra.mxu0 %v252
    %1052 = vmatpush.msra.mxu0 %v249
    %1053 = vmatpush.msra.mxu0 %v246
    %1054 = vmatpush.msra.mxu0 %v243
    %1055 = vmatpush.msra.mxu0 %v240
    %1056 = vmatpush.msra.mxu0 %v237
    %1057 = vmatpush.msra.mxu0 %v234
    %1058 = vmatpush.msra.mxu0 %v231
    %1059 = vmatpush.msra.mxu0 %v228
    %1060 = vmatmul.f32.gmra.mxu0 %v851
    %v1061 = vpop.f32.mrf.mxu0
    %v1062 = vadd.f32 0.0, %v1061
    %1063 = vdwg.mxu0
    %1064 = vmatpush.msra.mxu0 %v274
    %1065 = vmatpush.msra.mxu0 %v271
    %1066 = vmatpush.msra.mxu0 %v268
    %1067 = vmatpush.msra.mxu0 %v265
    %1068 = vmatpush.msra.mxu0 %v262
    %1069 = vmatpush.msra.mxu0 %v259
    %1070 = vmatpush.msra.mxu0 %v256
    %1071 = vmatpush.msra.mxu0 %v253
    %1072 = vmatpush.msra.mxu0 %v250
    %1073 = vmatpush.msra.mxu0 %v247
    %1074 = vmatpush.msra.mxu0 %v244
    %1075 = vmatpush.msra.mxu0 %v241
    %1076 = vmatpush.msra.mxu0 %v238
    %1077 = vmatpush.msra.mxu0 %v235
    %1078 = vmatpush.msra.mxu0 %v232
    %1079 = vmatpush.msra.mxu0 %v229
    %1080 = vmatmul.f32.gmra.mxu0 %v851
    %v1081 = vpop.f32.mrf.mxu0
    %v1082 = vadd.f32 0.0, %v1081
    %1083 = vdwg.mxu0
    %v1084 = vadd.f32 %v982, %v1042
    %v1085 = vxor.u32 %v1084, 2147483648
    %v1086 = vmul.f32 %v1085, 1.442695
    %v1087 = vpow.pop %v1086
    %v1088 = vadd.f32 %v1087, 1.0
    %v1089 = vrcp.pop %v1088
    %v1090 = vmul.f32 %v1088, %v1089
    %v1091 = vsub.f32 1.0, %v1090
    %v1092 = vmul.f32 %v1089, %v1091
    %v1093 = vadd.f32 %v1089, %v1092
    %vm1094 = vweird.f32 %v1088
    %vm1095 = vweird.f32 %v1089
    %vm1096 = vmor %vm1094, %vm1095
    %v1097 = vsel %vm1096, %v1089, %v1093
    %v1098 = vand.u32 2147483647, %v1088
    %vm1099 = vcmp.eq.f32.partialorder %v1098, 8.507059e+37
    %v1100 = vand.u32 %v1088, 2147483648
    %v1101 = vor.u32 1.1754944e-38, %v1100
    %v1102 = vsel %vm1099, %v1101, %v1097
    %v1103 = vmul.f32 1.0, %v1102
    %v1104 = vadd.f32 %v1002, %v1062
    %v1105 = vxor.u32 %v1104, 2147483648
    %v1106 = vmul.f32 %v1105, 1.442695
    %v1107 = vpow.pop %v1106
    %v1108 = vadd.f32 %v1107, 1.0
    %v1109 = vrcp.pop %v1108
    %v1110 = vmul.f32 %v1108, %v1109
    %v1111 = vsub.f32 1.0, %v1110
    %v1112 = vmul.f32 %v1109, %v1111
    %v1113 = vadd.f32 %v1109, %v1112
    %vm1114 = vweird.f32 %v1108
    %vm1115 = vweird.f32 %v1109
    %vm1116 = vmor %vm1114, %vm1115
    %v1117 = vsel %vm1116, %v1109, %v1113
    %v1118 = vand.u32 2147483647, %v1108
    %vm1119 = vcmp.eq.f32.partialorder %v1118, 8.507059e+37
    %v1120 = vand.u32 %v1108, 2147483648
    %v1121 = vor.u32 1.1754944e-38, %v1120
    %v1122 = vsel %vm1119, %v1121, %v1117
    %v1123 = vmul.f32 1.0, %v1122
    %v1124 = vadd.f32 %v1082, %v281
    %v1125 = vmul.f32 %v1103, %v1124
    %v1126 = vadd.f32 %v1022, %v1125
    %v1127 = vtanh.pop %v1126
    %v1128 = vsub.f32 1.0, %v1123
    %v1129 = vmul.f32 %v1128, %v1127
    %v1130 = vmul.f32 %v1123, %v851
    %v1131 = vadd.f32 %v1129, %v1130
    %s1132 = scalar_lea.vmem [#allocation4], 72
    %v1133 = vld [vmem:[%s1132] sm:$0xff]
    %v1134 = vld [vmem:[%s1132 + $0x8] sm:$0xff]
    %v1135 = vld [vmem:[%s1132 + $0x10] sm:$0xff]
    %1136 = vmatpush.msra.mxu0 %v176
    %1137 = vmatpush.msra.mxu0 %v173
    %1138 = vmatpush.msra.mxu0 %v170
    %1139 = vmatpush.msra.mxu0 %v167
    %1140 = vmatpush.msra.mxu0 %v164
    %1141 = vmatpush.msra.mxu0 %v161
    %1142 = vmatpush.msra.mxu0 %v158
    %1143 = vmatpush.msra.mxu0 %v155
    %1144 = vmatpush.msra.mxu0 %v152
    %1145 = vmatpush.msra.mxu0 %v149
    %1146 = vmatpush.msra.mxu0 %v146
    %1147 = vmatpush.msra.mxu0 %v143
    %1148 = vmatpush.msra.mxu0 %v140
    %1149 = vmatpush.msra.mxu0 %v137
    %1150 = vmatpush.msra.mxu0 %v134
    %1151 = vmatpush.msra.mxu0 %v131
    %1152 = vmatmul.f32.gmra.mxu0 %v963
    %v1153 = vpop.f32.mrf.mxu0
    %v1154 = vadd.f32 0.0, %v1153
    %1155 = vdwg.mxu0
    %1156 = vmatpush.msra.mxu0 %v177
    %1157 = vmatpush.msra.mxu0 %v174
    %1158 = vmatpush.msra.mxu0 %v171
    %1159 = vmatpush.msra.mxu0 %v168
    %1160 = vmatpush.msra.mxu0 %v165
    %1161 = vmatpush.msra.mxu0 %v162
    %1162 = vmatpush.msra.mxu0 %v159
    %1163 = vmatpush.msra.mxu0 %v156
    %1164 = vmatpush.msra.mxu0 %v153
    %1165 = vmatpush.msra.mxu0 %v150
    %1166 = vmatpush.msra.mxu0 %v147
    %1167 = vmatpush.msra.mxu0 %v144
    %1168 = vmatpush.msra.mxu0 %v141
    %1169 = vmatpush.msra.mxu0 %v138
    %1170 = vmatpush.msra.mxu0 %v135
    %1171 = vmatpush.msra.mxu0 %v132
    %1172 = vmatmul.f32.gmra.mxu0 %v963
    %v1173 = vpop.f32.mrf.mxu0
    %v1174 = vadd.f32 0.0, %v1173
    %1175 = vdwg.mxu0
    %1176 = vmatpush.msra.mxu0 %v178
    %1177 = vmatpush.msra.mxu0 %v175
    %1178 = vmatpush.msra.mxu0 %v172
    %1179 = vmatpush.msra.mxu0 %v169
    %1180 = vmatpush.msra.mxu0 %v166
    %1181 = vmatpush.msra.mxu0 %v163
    %1182 = vmatpush.msra.mxu0 %v160
    %1183 = vmatpush.msra.mxu0 %v157
    %1184 = vmatpush.msra.mxu0 %v154
    %1185 = vmatpush.msra.mxu0 %v151
    %1186 = vmatpush.msra.mxu0 %v148
    %1187 = vmatpush.msra.mxu0 %v145
    %1188 = vmatpush.msra.mxu0 %v142
    %1189 = vmatpush.msra.mxu0 %v139
    %1190 = vmatpush.msra.mxu0 %v136
    %1191 = vmatpush.msra.mxu0 %v133
    %1192 = vmatmul.f32.gmra.mxu0 %v963
    %v1193 = vpop.f32.mrf.mxu0
    %v1194 = vadd.f32 0.0, %v1193
    %1195 = vdwg.mxu0
    %v1196 = vadd.f32 %v1133, %v1154
    %v1197 = vxor.u32 %v1196, 2147483648
    %v1198 = vmul.f32 %v1197, 1.442695
    %v1199 = vpow.pop %v1198
    %v1200 = vadd.f32 %v1199, 1.0
    %v1201 = vrcp.pop %v1200
    %v1202 = vmul.f32 %v1200, %v1201
    %v1203 = vsub.f32 1.0, %v1202
    %v1204 = vmul.f32 %v1201, %v1203
    %v1205 = vadd.f32 %v1201, %v1204
    %vm1206 = vweird.f32 %v1200
    %vm1207 = vweird.f32 %v1201
    %vm1208 = vmor %vm1206, %vm1207
    %v1209 = vsel %vm1208, %v1201, %v1205
    %v1210 = vand.u32 2147483647, %v1200
    %vm1211 = vcmp.eq.f32.partialorder %v1210, 8.507059e+37
    %v1212 = vand.u32 %v1200, 2147483648
    %v1213 = vor.u32 1.1754944e-38, %v1212
    %v1214 = vsel %vm1211, %v1213, %v1209
    %v1215 = vmul.f32 1.0, %v1214
    %v1216 = vadd.f32 %v1134, %v1174
    %v1217 = vxor.u32 %v1216, 2147483648
    %v1218 = vmul.f32 %v1217, 1.442695
    %v1219 = vpow.pop %v1218
    %v1220 = vadd.f32 %v1219, 1.0
    %v1221 = vrcp.pop %v1220
    %v1222 = vmul.f32 %v1220, %v1221
    %v1223 = vsub.f32 1.0, %v1222
    %v1224 = vmul.f32 %v1221, %v1223
    %v1225 = vadd.f32 %v1221, %v1224
    %vm1226 = vweird.f32 %v1220
    %vm1227 = vweird.f32 %v1221
    %vm1228 = vmor %vm1226, %vm1227
    %v1229 = vsel %vm1228, %v1221, %v1225
    %v1230 = vand.u32 2147483647, %v1220
    %vm1231 = vcmp.eq.f32.partialorder %v1230, 8.507059e+37
    %v1232 = vand.u32 %v1220, 2147483648
    %v1233 = vor.u32 1.1754944e-38, %v1232
    %v1234 = vsel %vm1231, %v1233, %v1229
    %v1235 = vmul.f32 1.0, %v1234
    %v1236 = vadd.f32 %v1194, %v277
    %v1237 = vmul.f32 %v1215, %v1236
    %v1238 = vadd.f32 %v1135, %v1237
    %v1239 = vtanh.pop %v1238
    %v1240 = vsub.f32 1.0, %v1235
    %v1241 = vmul.f32 %v1240, %v1239
    %v1242 = vmul.f32 %v1235, %v963
    %v1243 = vadd.f32 %v1241, %v1242
    %1244 = vmatpush.msra.mxu0 %v224
    %1245 = vmatpush.msra.mxu0 %v221
    %1246 = vmatpush.msra.mxu0 %v218
    %1247 = vmatpush.msra.mxu0 %v215
    %1248 = vmatpush.msra.mxu0 %v212
    %1249 = vmatpush.msra.mxu0 %v209
    %1250 = vmatpush.msra.mxu0 %v206
    %1251 = vmatpush.msra.mxu0 %v203
    %1252 = vmatpush.msra.mxu0 %v200
    %1253 = vmatpush.msra.mxu0 %v197
    %1254 = vmatpush.msra.mxu0 %v194
    %1255 = vmatpush.msra.mxu0 %v191
    %1256 = vmatpush.msra.mxu0 %v188
    %1257 = vmatpush.msra.mxu0 %v185
    %1258 = vmatpush.msra.mxu0 %v182
    %1259 = vmatpush.msra.mxu0 %v179
    %1260 = vmatmul.f32.gmra.mxu0 %v1243
    %v1261 = vpop.f32.mrf.mxu0
    %v1262 = vadd.f32 %v285, %v1261
    %1263 = vdwg.mxu0
    %1264 = vmatpush.msra.mxu0 %v225
    %1265 = vmatpush.msra.mxu0 %v222
    %1266 = vmatpush.msra.mxu0 %v219
    %1267 = vmatpush.msra.mxu0 %v216
    %1268 = vmatpush.msra.mxu0 %v213
    %1269 = vmatpush.msra.mxu0 %v210
    %1270 = vmatpush.msra.mxu0 %v207
    %1271 = vmatpush.msra.mxu0 %v204
    %1272 = vmatpush.msra.mxu0 %v201
    %1273 = vmatpush.msra.mxu0 %v198
    %1274 = vmatpush.msra.mxu0 %v195
    %1275 = vmatpush.msra.mxu0 %v192
    %1276 = vmatpush.msra.mxu0 %v189
    %1277 = vmatpush.msra.mxu0 %v186
    %1278 = vmatpush.msra.mxu0 %v183
    %1279 = vmatpush.msra.mxu0 %v180
    %1280 = vmatmul.f32.gmra.mxu0 %v1243
    %v1281 = vpop.f32.mrf.mxu0
    %v1282 = vadd.f32 %v286, %v1281
    %1283 = vdwg.mxu0
    %1284 = vmatpush.msra.mxu0 %v226
    %1285 = vmatpush.msra.mxu0 %v223
    %1286 = vmatpush.msra.mxu0 %v220
    %1287 = vmatpush.msra.mxu0 %v217
    %1288 = vmatpush.msra.mxu0 %v214
    %1289 = vmatpush.msra.mxu0 %v211
    %1290 = vmatpush.msra.mxu0 %v208
    %1291 = vmatpush.msra.mxu0 %v205
    %1292 = vmatpush.msra.mxu0 %v202
    %1293 = vmatpush.msra.mxu0 %v199
    %1294 = vmatpush.msra.mxu0 %v196
    %1295 = vmatpush.msra.mxu0 %v193
    %1296 = vmatpush.msra.mxu0 %v190
    %1297 = vmatpush.msra.mxu0 %v187
    %1298 = vmatpush.msra.mxu0 %v184
    %1299 = vmatpush.msra.mxu0 %v181
    %1300 = vmatmul.f32.gmra.mxu0 %v1243
    %v1301 = vpop.f32.mrf.mxu0
    %v1302 = vadd.f32 %v287, %v1301
    %1303 = vdwg.mxu0
    %1304 = vmatpush.msra.mxu0 %v272
    %1305 = vmatpush.msra.mxu0 %v269
    %1306 = vmatpush.msra.mxu0 %v266
    %1307 = vmatpush.msra.mxu0 %v263
    %1308 = vmatpush.msra.mxu0 %v260
    %1309 = vmatpush.msra.mxu0 %v257
    %1310 = vmatpush.msra.mxu0 %v254
    %1311 = vmatpush.msra.mxu0 %v251
    %1312 = vmatpush.msra.mxu0 %v248
    %1313 = vmatpush.msra.mxu0 %v245
    %1314 = vmatpush.msra.mxu0 %v242
    %1315 = vmatpush.msra.mxu0 %v239
    %1316 = vmatpush.msra.mxu0 %v236
    %1317 = vmatpush.msra.mxu0 %v233
    %1318 = vmatpush.msra.mxu0 %v230
    %1319 = vmatpush.msra.mxu0 %v227
    %1320 = vmatmul.f32.gmra.mxu0 %v1131
    %v1321 = vpop.f32.mrf.mxu0
    %v1322 = vadd.f32 0.0, %v1321
    %1323 = vdwg.mxu0
    %1324 = vmatpush.msra.mxu0 %v273
    %1325 = vmatpush.msra.mxu0 %v270
    %1326 = vmatpush.msra.mxu0 %v267
    %1327 = vmatpush.msra.mxu0 %v264
    %1328 = vmatpush.msra.mxu0 %v261
    %1329 = vmatpush.msra.mxu0 %v258
    %1330 = vmatpush.msra.mxu0 %v255
    %1331 = vmatpush.msra.mxu0 %v252
    %1332 = vmatpush.msra.mxu0 %v249
    %1333 = vmatpush.msra.mxu0 %v246
    %1334 = vmatpush.msra.mxu0 %v243
    %1335 = vmatpush.msra.mxu0 %v240
    %1336 = vmatpush.msra.mxu0 %v237
    %1337 = vmatpush.msra.mxu0 %v234
    %1338 = vmatpush.msra.mxu0 %v231
    %1339 = vmatpush.msra.mxu0 %v228
    %1340 = vmatmul.f32.gmra.mxu0 %v1131
    %v1341 = vpop.f32.mrf.mxu0
    %v1342 = vadd.f32 0.0, %v1341
    %1343 = vdwg.mxu0
    %1344 = vmatpush.msra.mxu0 %v274
    %1345 = vmatpush.msra.mxu0 %v271
    %1346 = vmatpush.msra.mxu0 %v268
    %1347 = vmatpush.msra.mxu0 %v265
    %1348 = vmatpush.msra.mxu0 %v262
    %1349 = vmatpush.msra.mxu0 %v259
    %1350 = vmatpush.msra.mxu0 %v256
    %1351 = vmatpush.msra.mxu0 %v253
    %1352 = vmatpush.msra.mxu0 %v250
    %1353 = vmatpush.msra.mxu0 %v247
    %1354 = vmatpush.msra.mxu0 %v244
    %1355 = vmatpush.msra.mxu0 %v241
    %1356 = vmatpush.msra.mxu0 %v238
    %1357 = vmatpush.msra.mxu0 %v235
    %1358 = vmatpush.msra.mxu0 %v232
    %1359 = vmatpush.msra.mxu0 %v229
    %1360 = vmatmul.f32.gmra.mxu0 %v1131
    %v1361 = vpop.f32.mrf.mxu0
    %v1362 = vadd.f32 0.0, %v1361
    %1363 = vdwg.mxu0
    %v1364 = vadd.f32 %v1262, %v1322
    %v1365 = vxor.u32 %v1364, 2147483648
    %v1366 = vmul.f32 %v1365, 1.442695
    %v1367 = vpow.pop %v1366
    %v1368 = vadd.f32 %v1367, 1.0
    %v1369 = vrcp.pop %v1368
    %v1370 = vmul.f32 %v1368, %v1369
    %v1371 = vsub.f32 1.0, %v1370
    %v1372 = vmul.f32 %v1369, %v1371
    %v1373 = vadd.f32 %v1369, %v1372
    %vm1374 = vweird.f32 %v1368
    %vm1375 = vweird.f32 %v1369
    %vm1376 = vmor %vm1374, %vm1375
    %v1377 = vsel %vm1376, %v1369, %v1373
    %v1378 = vand.u32 2147483647, %v1368
    %vm1379 = vcmp.eq.f32.partialorder %v1378, 8.507059e+37
    %v1380 = vand.u32 %v1368, 2147483648
    %v1381 = vor.u32 1.1754944e-38, %v1380
    %v1382 = vsel %vm1379, %v1381, %v1377
    %v1383 = vmul.f32 1.0, %v1382
    %v1384 = vadd.f32 %v1282, %v1342
    %v1385 = vxor.u32 %v1384, 2147483648
    %v1386 = vmul.f32 %v1385, 1.442695
    %v1387 = vpow.pop %v1386
    %v1388 = vadd.f32 %v1387, 1.0
    %v1389 = vrcp.pop %v1388
    %v1390 = vmul.f32 %v1388, %v1389
    %v1391 = vsub.f32 1.0, %v1390
    %v1392 = vmul.f32 %v1389, %v1391
    %v1393 = vadd.f32 %v1389, %v1392
    %vm1394 = vweird.f32 %v1388
    %vm1395 = vweird.f32 %v1389
    %vm1396 = vmor %vm1394, %vm1395
    %v1397 = vsel %vm1396, %v1389, %v1393
    %v1398 = vand.u32 2147483647, %v1388
    %vm1399 = vcmp.eq.f32.partialorder %v1398, 8.507059e+37
    %v1400 = vand.u32 %v1388, 2147483648
    %v1401 = vor.u32 1.1754944e-38, %v1400
    %v1402 = vsel %vm1399, %v1401, %v1397
    %v1403 = vmul.f32 1.0, %v1402
    %v1404 = vadd.f32 %v1362, %v281
    %v1405 = vmul.f32 %v1383, %v1404
    %v1406 = vadd.f32 %v1302, %v1405
    %v1407 = vtanh.pop %v1406
    %v1408 = vsub.f32 1.0, %v1403
    %v1409 = vmul.f32 %v1408, %v1407
    %v1410 = vmul.f32 %v1403, %v1131
    %v1411 = vadd.f32 %v1409, %v1410
    %s1412 = scalar_lea.vmem [#allocation4], 96
    %v1413 = vld [vmem:[%s1412] sm:$0xff]
    %v1414 = vld [vmem:[%s1412 + $0x8] sm:$0xff]
    %v1415 = vld [vmem:[%s1412 + $0x10] sm:$0xff]
    %1416 = vmatpush.msra.mxu0 %v176
    %1417 = vmatpush.msra.mxu0 %v173
    %1418 = vmatpush.msra.mxu0 %v170
    %1419 = vmatpush.msra.mxu0 %v167
    %1420 = vmatpush.msra.mxu0 %v164
    %1421 = vmatpush.msra.mxu0 %v161
    %1422 = vmatpush.msra.mxu0 %v158
    %1423 = vmatpush.msra.mxu0 %v155
    %1424 = vmatpush.msra.mxu0 %v152
    %1425 = vmatpush.msra.mxu0 %v149
    %1426 = vmatpush.msra.mxu0 %v146
    %1427 = vmatpush.msra.mxu0 %v143
    %1428 = vmatpush.msra.mxu0 %v140
    %1429 = vmatpush.msra.mxu0 %v137
    %1430 = vmatpush.msra.mxu0 %v134
    %1431 = vmatpush.msra.mxu0 %v131
    %1432 = vmatmul.f32.gmra.mxu0 %v1243
    %v1433 = vpop.f32.mrf.mxu0
    %v1434 = vadd.f32 0.0, %v1433
    %1435 = vdwg.mxu0
    %1436 = vmatpush.msra.mxu0 %v177
    %1437 = vmatpush.msra.mxu0 %v174
    %1438 = vmatpush.msra.mxu0 %v171
    %1439 = vmatpush.msra.mxu0 %v168
    %1440 = vmatpush.msra.mxu0 %v165
    %1441 = vmatpush.msra.mxu0 %v162
    %1442 = vmatpush.msra.mxu0 %v159
    %1443 = vmatpush.msra.mxu0 %v156
    %1444 = vmatpush.msra.mxu0 %v153
    %1445 = vmatpush.msra.mxu0 %v150
    %1446 = vmatpush.msra.mxu0 %v147
    %1447 = vmatpush.msra.mxu0 %v144
    %1448 = vmatpush.msra.mxu0 %v141
    %1449 = vmatpush.msra.mxu0 %v138
    %1450 = vmatpush.msra.mxu0 %v135
    %1451 = vmatpush.msra.mxu0 %v132
    %1452 = vmatmul.f32.gmra.mxu0 %v1243
    %v1453 = vpop.f32.mrf.mxu0
    %v1454 = vadd.f32 0.0, %v1453
    %1455 = vdwg.mxu0
    %1456 = vmatpush.msra.mxu0 %v178
    %1457 = vmatpush.msra.mxu0 %v175
    %1458 = vmatpush.msra.mxu0 %v172
    %1459 = vmatpush.msra.mxu0 %v169
    %1460 = vmatpush.msra.mxu0 %v166
    %1461 = vmatpush.msra.mxu0 %v163
    %1462 = vmatpush.msra.mxu0 %v160
    %1463 = vmatpush.msra.mxu0 %v157
    %1464 = vmatpush.msra.mxu0 %v154
    %1465 = vmatpush.msra.mxu0 %v151
    %1466 = vmatpush.msra.mxu0 %v148
    %1467 = vmatpush.msra.mxu0 %v145
    %1468 = vmatpush.msra.mxu0 %v142
    %1469 = vmatpush.msra.mxu0 %v139
    %1470 = vmatpush.msra.mxu0 %v136
    %1471 = vmatpush.msra.mxu0 %v133
    %1472 = vmatmul.f32.gmra.mxu0 %v1243
    %v1473 = vpop.f32.mrf.mxu0
    %v1474 = vadd.f32 0.0, %v1473
    %1475 = vdwg.mxu0
    %v1476 = vadd.f32 %v1413, %v1434
    %v1477 = vxor.u32 %v1476, 2147483648
    %v1478 = vmul.f32 %v1477, 1.442695
    %v1479 = vpow.pop %v1478
    %v1480 = vadd.f32 %v1479, 1.0
    %v1481 = vrcp.pop %v1480
    %v1482 = vmul.f32 %v1480, %v1481
    %v1483 = vsub.f32 1.0, %v1482
    %v1484 = vmul.f32 %v1481, %v1483
    %v1485 = vadd.f32 %v1481, %v1484
    %vm1486 = vweird.f32 %v1480
    %vm1487 = vweird.f32 %v1481
    %vm1488 = vmor %vm1486, %vm1487
    %v1489 = vsel %vm1488, %v1481, %v1485
    %v1490 = vand.u32 2147483647, %v1480
    %vm1491 = vcmp.eq.f32.partialorder %v1490, 8.507059e+37
    %v1492 = vand.u32 %v1480, 2147483648
    %v1493 = vor.u32 1.1754944e-38, %v1492
    %v1494 = vsel %vm1491, %v1493, %v1489
    %v1495 = vmul.f32 1.0, %v1494
    %v1496 = vadd.f32 %v1414, %v1454
    %v1497 = vxor.u32 %v1496, 2147483648
    %v1498 = vmul.f32 %v1497, 1.442695
    %v1499 = vpow.pop %v1498
    %v1500 = vadd.f32 %v1499, 1.0
    %v1501 = vrcp.pop %v1500
    %v1502 = vmul.f32 %v1500, %v1501
    %v1503 = vsub.f32 1.0, %v1502
    %v1504 = vmul.f32 %v1501, %v1503
    %v1505 = vadd.f32 %v1501, %v1504
    %vm1506 = vweird.f32 %v1500
    %vm1507 = vweird.f32 %v1501
    %vm1508 = vmor %vm1506, %vm1507
    %v1509 = vsel %vm1508, %v1501, %v1505
    %v1510 = vand.u32 2147483647, %v1500
    %vm1511 = vcmp.eq.f32.partialorder %v1510, 8.507059e+37
    %v1512 = vand.u32 %v1500, 2147483648
    %v1513 = vor.u32 1.1754944e-38, %v1512
    %v1514 = vsel %vm1511, %v1513, %v1509
    %v1515 = vmul.f32 1.0, %v1514
    %v1516 = vadd.f32 %v1474, %v277
    %v1517 = vmul.f32 %v1495, %v1516
    %v1518 = vadd.f32 %v1415, %v1517
    %v1519 = vtanh.pop %v1518
    %v1520 = vsub.f32 1.0, %v1515
    %v1521 = vmul.f32 %v1520, %v1519
    %v1522 = vmul.f32 %v1515, %v1243
    %v1523 = vadd.f32 %v1521, %v1522
    %1524 = vmatpush.msra.mxu0 %v224
    %1525 = vmatpush.msra.mxu0 %v221
    %1526 = vmatpush.msra.mxu0 %v218
    %1527 = vmatpush.msra.mxu0 %v215
    %1528 = vmatpush.msra.mxu0 %v212
    %1529 = vmatpush.msra.mxu0 %v209
    %1530 = vmatpush.msra.mxu0 %v206
    %1531 = vmatpush.msra.mxu0 %v203
    %1532 = vmatpush.msra.mxu0 %v200
    %1533 = vmatpush.msra.mxu0 %v197
    %1534 = vmatpush.msra.mxu0 %v194
    %1535 = vmatpush.msra.mxu0 %v191
    %1536 = vmatpush.msra.mxu0 %v188
    %1537 = vmatpush.msra.mxu0 %v185
    %1538 = vmatpush.msra.mxu0 %v182
    %1539 = vmatpush.msra.mxu0 %v179
    %1540 = vmatmul.f32.gmra.mxu0 %v1523
    %v1541 = vpop.f32.mrf.mxu0
    %v1542 = vadd.f32 %v285, %v1541
    %1543 = vdwg.mxu0
    %1544 = vmatpush.msra.mxu0 %v225
    %1545 = vmatpush.msra.mxu0 %v222
    %1546 = vmatpush.msra.mxu0 %v219
    %1547 = vmatpush.msra.mxu0 %v216
    %1548 = vmatpush.msra.mxu0 %v213
    %1549 = vmatpush.msra.mxu0 %v210
    %1550 = vmatpush.msra.mxu0 %v207
    %1551 = vmatpush.msra.mxu0 %v204
    %1552 = vmatpush.msra.mxu0 %v201
    %1553 = vmatpush.msra.mxu0 %v198
    %1554 = vmatpush.msra.mxu0 %v195
    %1555 = vmatpush.msra.mxu0 %v192
    %1556 = vmatpush.msra.mxu0 %v189
    %1557 = vmatpush.msra.mxu0 %v186
    %1558 = vmatpush.msra.mxu0 %v183
    %1559 = vmatpush.msra.mxu0 %v180
    %1560 = vmatmul.f32.gmra.mxu0 %v1523
    %v1561 = vpop.f32.mrf.mxu0
    %v1562 = vadd.f32 %v286, %v1561
    %1563 = vdwg.mxu0
    %1564 = vmatpush.msra.mxu0 %v226
    %1565 = vmatpush.msra.mxu0 %v223
    %1566 = vmatpush.msra.mxu0 %v220
    %1567 = vmatpush.msra.mxu0 %v217
    %1568 = vmatpush.msra.mxu0 %v214
    %1569 = vmatpush.msra.mxu0 %v211
    %1570 = vmatpush.msra.mxu0 %v208
    %1571 = vmatpush.msra.mxu0 %v205
    %1572 = vmatpush.msra.mxu0 %v202
    %1573 = vmatpush.msra.mxu0 %v199
    %1574 = vmatpush.msra.mxu0 %v196
    %1575 = vmatpush.msra.mxu0 %v193
    %1576 = vmatpush.msra.mxu0 %v190
    %1577 = vmatpush.msra.mxu0 %v187
    %1578 = vmatpush.msra.mxu0 %v184
    %1579 = vmatpush.msra.mxu0 %v181
    %1580 = vmatmul.f32.gmra.mxu0 %v1523
    %v1581 = vpop.f32.mrf.mxu0
    %v1582 = vadd.f32 %v287, %v1581
    %1583 = vdwg.mxu0
    %1584 = vmatpush.msra.mxu0 %v272
    %1585 = vmatpush.msra.mxu0 %v269
    %1586 = vmatpush.msra.mxu0 %v266
    %1587 = vmatpush.msra.mxu0 %v263
    %1588 = vmatpush.msra.mxu0 %v260
    %1589 = vmatpush.msra.mxu0 %v257
    %1590 = vmatpush.msra.mxu0 %v254
    %1591 = vmatpush.msra.mxu0 %v251
    %1592 = vmatpush.msra.mxu0 %v248
    %1593 = vmatpush.msra.mxu0 %v245
    %1594 = vmatpush.msra.mxu0 %v242
    %1595 = vmatpush.msra.mxu0 %v239
    %1596 = vmatpush.msra.mxu0 %v236
    %1597 = vmatpush.msra.mxu0 %v233
    %1598 = vmatpush.msra.mxu0 %v230
    %1599 = vmatpush.msra.mxu0 %v227
    %1600 = vmatmul.f32.gmra.mxu0 %v1411
    %v1601 = vpop.f32.mrf.mxu0
    %v1602 = vadd.f32 0.0, %v1601
    %1603 = vdwg.mxu0
    %1604 = vmatpush.msra.mxu0 %v273
    %1605 = vmatpush.msra.mxu0 %v270
    %1606 = vmatpush.msra.mxu0 %v267
    %1607 = vmatpush.msra.mxu0 %v264
    %1608 = vmatpush.msra.mxu0 %v261
    %1609 = vmatpush.msra.mxu0 %v258
    %1610 = vmatpush.msra.mxu0 %v255
    %1611 = vmatpush.msra.mxu0 %v252
    %1612 = vmatpush.msra.mxu0 %v249
    %1613 = vmatpush.msra.mxu0 %v246
    %1614 = vmatpush.msra.mxu0 %v243
    %1615 = vmatpush.msra.mxu0 %v240
    %1616 = vmatpush.msra.mxu0 %v237
    %1617 = vmatpush.msra.mxu0 %v234
    %1618 = vmatpush.msra.mxu0 %v231
    %1619 = vmatpush.msra.mxu0 %v228
    %1620 = vmatmul.f32.gmra.mxu0 %v1411
    %v1621 = vpop.f32.mrf.mxu0
    %v1622 = vadd.f32 0.0, %v1621
    %1623 = vdwg.mxu0
    %1624 = vmatpush.msra.mxu0 %v274
    %1625 = vmatpush.msra.mxu0 %v271
    %1626 = vmatpush.msra.mxu0 %v268
    %1627 = vmatpush.msra.mxu0 %v265
    %1628 = vmatpush.msra.mxu0 %v262
    %1629 = vmatpush.msra.mxu0 %v259
    %1630 = vmatpush.msra.mxu0 %v256
    %1631 = vmatpush.msra.mxu0 %v253
    %1632 = vmatpush.msra.mxu0 %v250
    %1633 = vmatpush.msra.mxu0 %v247
    %1634 = vmatpush.msra.mxu0 %v244
    %1635 = vmatpush.msra.mxu0 %v241
    %1636 = vmatpush.msra.mxu0 %v238
    %1637 = vmatpush.msra.mxu0 %v235
    %1638 = vmatpush.msra.mxu0 %v232
    %1639 = vmatpush.msra.mxu0 %v229
    %1640 = vmatmul.f32.gmra.mxu0 %v1411
    %v1641 = vpop.f32.mrf.mxu0
    %v1642 = vadd.f32 0.0, %v1641
    %1643 = vdwg.mxu0
    %v1644 = vadd.f32 %v1542, %v1602
    %v1645 = vxor.u32 %v1644, 2147483648
    %v1646 = vmul.f32 %v1645, 1.442695
    %v1647 = vpow.pop %v1646
    %v1648 = vadd.f32 %v1647, 1.0
    %v1649 = vrcp.pop %v1648
    %v1650 = vmul.f32 %v1648, %v1649
    %v1651 = vsub.f32 1.0, %v1650
    %v1652 = vmul.f32 %v1649, %v1651
    %v1653 = vadd.f32 %v1649, %v1652
    %vm1654 = vweird.f32 %v1648
    %vm1655 = vweird.f32 %v1649
    %vm1656 = vmor %vm1654, %vm1655
    %v1657 = vsel %vm1656, %v1649, %v1653
    %v1658 = vand.u32 2147483647, %v1648
    %vm1659 = vcmp.eq.f32.partialorder %v1658, 8.507059e+37
    %v1660 = vand.u32 %v1648, 2147483648
    %v1661 = vor.u32 1.1754944e-38, %v1660
    %v1662 = vsel %vm1659, %v1661, %v1657
    %v1663 = vmul.f32 1.0, %v1662
    %v1664 = vadd.f32 %v1562, %v1622
    %v1665 = vxor.u32 %v1664, 2147483648
    %v1666 = vmul.f32 %v1665, 1.442695
    %v1667 = vpow.pop %v1666
    %v1668 = vadd.f32 %v1667, 1.0
    %v1669 = vrcp.pop %v1668
    %v1670 = vmul.f32 %v1668, %v1669
    %v1671 = vsub.f32 1.0, %v1670
    %v1672 = vmul.f32 %v1669, %v1671
    %v1673 = vadd.f32 %v1669, %v1672
    %vm1674 = vweird.f32 %v1668
    %vm1675 = vweird.f32 %v1669
    %vm1676 = vmor %vm1674, %vm1675
    %v1677 = vsel %vm1676, %v1669, %v1673
    %v1678 = vand.u32 2147483647, %v1668
    %vm1679 = vcmp.eq.f32.partialorder %v1678, 8.507059e+37
    %v1680 = vand.u32 %v1668, 2147483648
    %v1681 = vor.u32 1.1754944e-38, %v1680
    %v1682 = vsel %vm1679, %v1681, %v1677
    %v1683 = vmul.f32 1.0, %v1682
    %v1684 = vadd.f32 %v1642, %v281
    %v1685 = vmul.f32 %v1663, %v1684
    %v1686 = vadd.f32 %v1582, %v1685
    %v1687 = vtanh.pop %v1686
    %v1688 = vsub.f32 1.0, %v1683
    %v1689 = vmul.f32 %v1688, %v1687
    %v1690 = vmul.f32 %v1683, %v1411
    %v1691 = vadd.f32 %v1689, %v1690
    %s1692 = scalar_lea.vmem [#allocation4], 120
    %v1693 = vld [vmem:[%s1692] sm:$0xff]
    %v1694 = vld [vmem:[%s1692 + $0x8] sm:$0xff]
    %v1695 = vld [vmem:[%s1692 + $0x10] sm:$0xff]
    %1696 = vmatpush.msra.mxu0 %v176
    %1697 = vmatpush.msra.mxu0 %v173
    %1698 = vmatpush.msra.mxu0 %v170
    %1699 = vmatpush.msra.mxu0 %v167
    %1700 = vmatpush.msra.mxu0 %v164
    %1701 = vmatpush.msra.mxu0 %v161
    %1702 = vmatpush.msra.mxu0 %v158
    %1703 = vmatpush.msra.mxu0 %v155
    %1704 = vmatpush.msra.mxu0 %v152
    %1705 = vmatpush.msra.mxu0 %v149
    %1706 = vmatpush.msra.mxu0 %v146
    %1707 = vmatpush.msra.mxu0 %v143
    %1708 = vmatpush.msra.mxu0 %v140
    %1709 = vmatpush.msra.mxu0 %v137
    %1710 = vmatpush.msra.mxu0 %v134
    %1711 = vmatpush.msra.mxu0 %v131
    %1712 = vmatmul.f32.gmra.mxu0 %v1523
    %v1713 = vpop.f32.mrf.mxu0
    %v1714 = vadd.f32 0.0, %v1713
    %1715 = vdwg.mxu0
    %1716 = vmatpush.msra.mxu0 %v177
    %1717 = vmatpush.msra.mxu0 %v174
    %1718 = vmatpush.msra.mxu0 %v171
    %1719 = vmatpush.msra.mxu0 %v168
    %1720 = vmatpush.msra.mxu0 %v165
    %1721 = vmatpush.msra.mxu0 %v162
    %1722 = vmatpush.msra.mxu0 %v159
    %1723 = vmatpush.msra.mxu0 %v156
    %1724 = vmatpush.msra.mxu0 %v153
    %1725 = vmatpush.msra.mxu0 %v150
    %1726 = vmatpush.msra.mxu0 %v147
    %1727 = vmatpush.msra.mxu0 %v144
    %1728 = vmatpush.msra.mxu0 %v141
    %1729 = vmatpush.msra.mxu0 %v138
    %1730 = vmatpush.msra.mxu0 %v135
    %1731 = vmatpush.msra.mxu0 %v132
    %1732 = vmatmul.f32.gmra.mxu0 %v1523
    %v1733 = vpop.f32.mrf.mxu0
    %v1734 = vadd.f32 0.0, %v1733
    %1735 = vdwg.mxu0
    %1736 = vmatpush.msra.mxu0 %v178
    %1737 = vmatpush.msra.mxu0 %v175
    %1738 = vmatpush.msra.mxu0 %v172
    %1739 = vmatpush.msra.mxu0 %v169
    %1740 = vmatpush.msra.mxu0 %v166
    %1741 = vmatpush.msra.mxu0 %v163
    %1742 = vmatpush.msra.mxu0 %v160
    %1743 = vmatpush.msra.mxu0 %v157
    %1744 = vmatpush.msra.mxu0 %v154
    %1745 = vmatpush.msra.mxu0 %v151
    %1746 = vmatpush.msra.mxu0 %v148
    %1747 = vmatpush.msra.mxu0 %v145
    %1748 = vmatpush.msra.mxu0 %v142
    %1749 = vmatpush.msra.mxu0 %v139
    %1750 = vmatpush.msra.mxu0 %v136
    %1751 = vmatpush.msra.mxu0 %v133
    %1752 = vmatmul.f32.gmra.mxu0 %v1523
    %v1753 = vpop.f32.mrf.mxu0
    %v1754 = vadd.f32 0.0, %v1753
    %1755 = vdwg.mxu0
    %v1756 = vadd.f32 %v1693, %v1714
    %v1757 = vxor.u32 %v1756, 2147483648
    %v1758 = vmul.f32 %v1757, 1.442695
    %v1759 = vpow.pop %v1758
    %v1760 = vadd.f32 %v1759, 1.0
    %v1761 = vrcp.pop %v1760
    %v1762 = vmul.f32 %v1760, %v1761
    %v1763 = vsub.f32 1.0, %v1762
    %v1764 = vmul.f32 %v1761, %v1763
    %v1765 = vadd.f32 %v1761, %v1764
    %vm1766 = vweird.f32 %v1760
    %vm1767 = vweird.f32 %v1761
    %vm1768 = vmor %vm1766, %vm1767
    %v1769 = vsel %vm1768, %v1761, %v1765
    %v1770 = vand.u32 2147483647, %v1760
    %vm1771 = vcmp.eq.f32.partialorder %v1770, 8.507059e+37
    %v1772 = vand.u32 %v1760, 2147483648
    %v1773 = vor.u32 1.1754944e-38, %v1772
    %v1774 = vsel %vm1771, %v1773, %v1769
    %v1775 = vmul.f32 1.0, %v1774
    %v1776 = vadd.f32 %v1694, %v1734
    %v1777 = vxor.u32 %v1776, 2147483648
    %v1778 = vmul.f32 %v1777, 1.442695
    %v1779 = vpow.pop %v1778
    %v1780 = vadd.f32 %v1779, 1.0
    %v1781 = vrcp.pop %v1780
    %v1782 = vmul.f32 %v1780, %v1781
    %v1783 = vsub.f32 1.0, %v1782
    %v1784 = vmul.f32 %v1781, %v1783
    %v1785 = vadd.f32 %v1781, %v1784
    %vm1786 = vweird.f32 %v1780
    %vm1787 = vweird.f32 %v1781
    %vm1788 = vmor %vm1786, %vm1787
    %v1789 = vsel %vm1788, %v1781, %v1785
    %v1790 = vand.u32 2147483647, %v1780
    %vm1791 = vcmp.eq.f32.partialorder %v1790, 8.507059e+37
    %v1792 = vand.u32 %v1780, 2147483648
    %v1793 = vor.u32 1.1754944e-38, %v1792
    %v1794 = vsel %vm1791, %v1793, %v1789
    %v1795 = vmul.f32 1.0, %v1794
    %v1796 = vadd.f32 %v1754, %v277
    %v1797 = vmul.f32 %v1775, %v1796
    %v1798 = vadd.f32 %v1695, %v1797
    %v1799 = vtanh.pop %v1798
    %v1800 = vsub.f32 1.0, %v1795
    %v1801 = vmul.f32 %v1800, %v1799
    %v1802 = vmul.f32 %v1795, %v1523
    %v1803 = vadd.f32 %v1801, %v1802
    %1804 = vmatpush.msra.mxu0 %v224
    %1805 = vmatpush.msra.mxu0 %v221
    %1806 = vmatpush.msra.mxu0 %v218
    %1807 = vmatpush.msra.mxu0 %v215
    %1808 = vmatpush.msra.mxu0 %v212
    %1809 = vmatpush.msra.mxu0 %v209
    %1810 = vmatpush.msra.mxu0 %v206
    %1811 = vmatpush.msra.mxu0 %v203
    %1812 = vmatpush.msra.mxu0 %v200
    %1813 = vmatpush.msra.mxu0 %v197
    %1814 = vmatpush.msra.mxu0 %v194
    %1815 = vmatpush.msra.mxu0 %v191
    %1816 = vmatpush.msra.mxu0 %v188
    %1817 = vmatpush.msra.mxu0 %v185
    %1818 = vmatpush.msra.mxu0 %v182
    %1819 = vmatpush.msra.mxu0 %v179
    %1820 = vmatmul.f32.gmra.mxu0 %v1803
    %v1821 = vpop.f32.mrf.mxu0
    %v1822 = vadd.f32 %v285, %v1821
    %1823 = vdwg.mxu0
    %1824 = vmatpush.msra.mxu0 %v225
    %1825 = vmatpush.msra.mxu0 %v222
    %1826 = vmatpush.msra.mxu0 %v219
    %1827 = vmatpush.msra.mxu0 %v216
    %1828 = vmatpush.msra.mxu0 %v213
    %1829 = vmatpush.msra.mxu0 %v210
    %1830 = vmatpush.msra.mxu0 %v207
    %1831 = vmatpush.msra.mxu0 %v204
    %1832 = vmatpush.msra.mxu0 %v201
    %1833 = vmatpush.msra.mxu0 %v198
    %1834 = vmatpush.msra.mxu0 %v195
    %1835 = vmatpush.msra.mxu0 %v192
    %1836 = vmatpush.msra.mxu0 %v189
    %1837 = vmatpush.msra.mxu0 %v186
    %1838 = vmatpush.msra.mxu0 %v183
    %1839 = vmatpush.msra.mxu0 %v180
    %1840 = vmatmul.f32.gmra.mxu0 %v1803
    %v1841 = vpop.f32.mrf.mxu0
    %v1842 = vadd.f32 %v286, %v1841
    %1843 = vdwg.mxu0
    %1844 = vmatpush.msra.mxu0 %v226
    %1845 = vmatpush.msra.mxu0 %v223
    %1846 = vmatpush.msra.mxu0 %v220
    %1847 = vmatpush.msra.mxu0 %v217
    %1848 = vmatpush.msra.mxu0 %v214
    %1849 = vmatpush.msra.mxu0 %v211
    %1850 = vmatpush.msra.mxu0 %v208
    %1851 = vmatpush.msra.mxu0 %v205
    %1852 = vmatpush.msra.mxu0 %v202
    %1853 = vmatpush.msra.mxu0 %v199
    %1854 = vmatpush.msra.mxu0 %v196
    %1855 = vmatpush.msra.mxu0 %v193
    %1856 = vmatpush.msra.mxu0 %v190
    %1857 = vmatpush.msra.mxu0 %v187
    %1858 = vmatpush.msra.mxu0 %v184
    %1859 = vmatpush.msra.mxu0 %v181
    %1860 = vmatmul.f32.gmra.mxu0 %v1803
    %v1861 = vpop.f32.mrf.mxu0
    %v1862 = vadd.f32 %v287, %v1861
    %1863 = vdwg.mxu0
    %1864 = vmatpush.msra.mxu0 %v272
    %1865 = vmatpush.msra.mxu0 %v269
    %1866 = vmatpush.msra.mxu0 %v266
    %1867 = vmatpush.msra.mxu0 %v263
    %1868 = vmatpush.msra.mxu0 %v260
    %1869 = vmatpush.msra.mxu0 %v257
    %1870 = vmatpush.msra.mxu0 %v254
    %1871 = vmatpush.msra.mxu0 %v251
    %1872 = vmatpush.msra.mxu0 %v248
    %1873 = vmatpush.msra.mxu0 %v245
    %1874 = vmatpush.msra.mxu0 %v242
    %1875 = vmatpush.msra.mxu0 %v239
    %1876 = vmatpush.msra.mxu0 %v236
    %1877 = vmatpush.msra.mxu0 %v233
    %1878 = vmatpush.msra.mxu0 %v230
    %1879 = vmatpush.msra.mxu0 %v227
    %1880 = vmatmul.f32.gmra.mxu0 %v1691
    %v1881 = vpop.f32.mrf.mxu0
    %v1882 = vadd.f32 0.0, %v1881
    %1883 = vdwg.mxu0
    %1884 = vmatpush.msra.mxu0 %v273
    %1885 = vmatpush.msra.mxu0 %v270
    %1886 = vmatpush.msra.mxu0 %v267
    %1887 = vmatpush.msra.mxu0 %v264
    %1888 = vmatpush.msra.mxu0 %v261
    %1889 = vmatpush.msra.mxu0 %v258
    %1890 = vmatpush.msra.mxu0 %v255
    %1891 = vmatpush.msra.mxu0 %v252
    %1892 = vmatpush.msra.mxu0 %v249
    %1893 = vmatpush.msra.mxu0 %v246
    %1894 = vmatpush.msra.mxu0 %v243
    %1895 = vmatpush.msra.mxu0 %v240
    %1896 = vmatpush.msra.mxu0 %v237
    %1897 = vmatpush.msra.mxu0 %v234
    %1898 = vmatpush.msra.mxu0 %v231
    %1899 = vmatpush.msra.mxu0 %v228
    %1900 = vmatmul.f32.gmra.mxu0 %v1691
    %v1901 = vpop.f32.mrf.mxu0
    %v1902 = vadd.f32 0.0, %v1901
    %1903 = vdwg.mxu0
    %1904 = vmatpush.msra.mxu0 %v274
    %1905 = vmatpush.msra.mxu0 %v271
    %1906 = vmatpush.msra.mxu0 %v268
    %1907 = vmatpush.msra.mxu0 %v265
    %1908 = vmatpush.msra.mxu0 %v262
    %1909 = vmatpush.msra.mxu0 %v259
    %1910 = vmatpush.msra.mxu0 %v256
    %1911 = vmatpush.msra.mxu0 %v253
    %1912 = vmatpush.msra.mxu0 %v250
    %1913 = vmatpush.msra.mxu0 %v247
    %1914 = vmatpush.msra.mxu0 %v244
    %1915 = vmatpush.msra.mxu0 %v241
    %1916 = vmatpush.msra.mxu0 %v238
    %1917 = vmatpush.msra.mxu0 %v235
    %1918 = vmatpush.msra.mxu0 %v232
    %1919 = vmatpush.msra.mxu0 %v229
    %1920 = vmatmul.f32.gmra.mxu0 %v1691
    %v1921 = vpop.f32.mrf.mxu0
    %v1922 = vadd.f32 0.0, %v1921
    %1923 = vdwg.mxu0
    %v1924 = vadd.f32 %v1822, %v1882
    %v1925 = vxor.u32 %v1924, 2147483648
    %v1926 = vmul.f32 %v1925, 1.442695
    %v1927 = vpow.pop %v1926
    %v1928 = vadd.f32 %v1927, 1.0
    %v1929 = vrcp.pop %v1928
    %v1930 = vmul.f32 %v1928, %v1929
    %v1931 = vsub.f32 1.0, %v1930
    %v1932 = vmul.f32 %v1929, %v1931
    %v1933 = vadd.f32 %v1929, %v1932
    %vm1934 = vweird.f32 %v1928
    %vm1935 = vweird.f32 %v1929
    %vm1936 = vmor %vm1934, %vm1935
    %v1937 = vsel %vm1936, %v1929, %v1933
    %v1938 = vand.u32 2147483647, %v1928
    %vm1939 = vcmp.eq.f32.partialorder %v1938, 8.507059e+37
    %v1940 = vand.u32 %v1928, 2147483648
    %v1941 = vor.u32 1.1754944e-38, %v1940
    %v1942 = vsel %vm1939, %v1941, %v1937
    %v1943 = vmul.f32 1.0, %v1942
    %v1944 = vadd.f32 %v1842, %v1902
    %v1945 = vxor.u32 %v1944, 2147483648
    %v1946 = vmul.f32 %v1945, 1.442695
    %v1947 = vpow.pop %v1946
    %v1948 = vadd.f32 %v1947, 1.0
    %v1949 = vrcp.pop %v1948
    %v1950 = vmul.f32 %v1948, %v1949
    %v1951 = vsub.f32 1.0, %v1950
    %v1952 = vmul.f32 %v1949, %v1951
    %v1953 = vadd.f32 %v1949, %v1952
    %vm1954 = vweird.f32 %v1948
    %vm1955 = vweird.f32 %v1949
    %vm1956 = vmor %vm1954, %vm1955
    %v1957 = vsel %vm1956, %v1949, %v1953
    %v1958 = vand.u32 2147483647, %v1948
    %vm1959 = vcmp.eq.f32.partialorder %v1958, 8.507059e+37
    %v1960 = vand.u32 %v1948, 2147483648
    %v1961 = vor.u32 1.1754944e-38, %v1960
    %v1962 = vsel %vm1959, %v1961, %v1957
    %v1963 = vmul.f32 1.0, %v1962
    %v1964 = vadd.f32 %v1922, %v281
    %v1965 = vmul.f32 %v1943, %v1964
    %v1966 = vadd.f32 %v1862, %v1965
    %v1967 = vtanh.pop %v1966
    %v1968 = vsub.f32 1.0, %v1963
    %v1969 = vmul.f32 %v1968, %v1967
    %v1970 = vmul.f32 %v1963, %v1691
    %v1971 = vadd.f32 %v1969, %v1970
    %s1972 = scalar_lea.vmem [#allocation4], 144
    %v1973 = vld [vmem:[%s1972] sm:$0xff]
    %v1974 = vld [vmem:[%s1972 + $0x8] sm:$0xff]
    %v1975 = vld [vmem:[%s1972 + $0x10] sm:$0xff]
    %1976 = vmatpush.msra.mxu0 %v176
    %1977 = vmatpush.msra.mxu0 %v173
    %1978 = vmatpush.msra.mxu0 %v170
    %1979 = vmatpush.msra.mxu0 %v167
    %1980 = vmatpush.msra.mxu0 %v164
    %1981 = vmatpush.msra.mxu0 %v161
    %1982 = vmatpush.msra.mxu0 %v158
    %1983 = vmatpush.msra.mxu0 %v155
    %1984 = vmatpush.msra.mxu0 %v152
    %1985 = vmatpush.msra.mxu0 %v149
    %1986 = vmatpush.msra.mxu0 %v146
    %1987 = vmatpush.msra.mxu0 %v143
    %1988 = vmatpush.msra.mxu0 %v140
    %1989 = vmatpush.msra.mxu0 %v137
    %1990 = vmatpush.msra.mxu0 %v134
    %1991 = vmatpush.msra.mxu0 %v131
    %1992 = vmatmul.f32.gmra.mxu0 %v1803
    %v1993 = vpop.f32.mrf.mxu0
    %v1994 = vadd.f32 0.0, %v1993
    %1995 = vdwg.mxu0
    %1996 = vmatpush.msra.mxu0 %v177
    %1997 = vmatpush.msra.mxu0 %v174
    %1998 = vmatpush.msra.mxu0 %v171
    %1999 = vmatpush.msra.mxu0 %v168
    %2000 = vmatpush.msra.mxu0 %v165
    %2001 = vmatpush.msra.mxu0 %v162
    %2002 = vmatpush.msra.mxu0 %v159
    %2003 = vmatpush.msra.mxu0 %v156
    %2004 = vmatpush.msra.mxu0 %v153
    %2005 = vmatpush.msra.mxu0 %v150
    %2006 = vmatpush.msra.mxu0 %v147
    %2007 = vmatpush.msra.mxu0 %v144
    %2008 = vmatpush.msra.mxu0 %v141
    %2009 = vmatpush.msra.mxu0 %v138
    %2010 = vmatpush.msra.mxu0 %v135
    %2011 = vmatpush.msra.mxu0 %v132
    %2012 = vmatmul.f32.gmra.mxu0 %v1803
    %v2013 = vpop.f32.mrf.mxu0
    %v2014 = vadd.f32 0.0, %v2013
    %2015 = vdwg.mxu0
    %2016 = vmatpush.msra.mxu0 %v178
    %2017 = vmatpush.msra.mxu0 %v175
    %2018 = vmatpush.msra.mxu0 %v172
    %2019 = vmatpush.msra.mxu0 %v169
    %2020 = vmatpush.msra.mxu0 %v166
    %2021 = vmatpush.msra.mxu0 %v163
    %2022 = vmatpush.msra.mxu0 %v160
    %2023 = vmatpush.msra.mxu0 %v157
    %2024 = vmatpush.msra.mxu0 %v154
    %2025 = vmatpush.msra.mxu0 %v151
    %2026 = vmatpush.msra.mxu0 %v148
    %2027 = vmatpush.msra.mxu0 %v145
    %2028 = vmatpush.msra.mxu0 %v142
    %2029 = vmatpush.msra.mxu0 %v139
    %2030 = vmatpush.msra.mxu0 %v136
    %2031 = vmatpush.msra.mxu0 %v133
    %2032 = vmatmul.f32.gmra.mxu0 %v1803
    %v2033 = vpop.f32.mrf.mxu0
    %v2034 = vadd.f32 0.0, %v2033
    %2035 = vdwg.mxu0
    %v2036 = vadd.f32 %v1973, %v1994
    %v2037 = vxor.u32 %v2036, 2147483648
    %v2038 = vmul.f32 %v2037, 1.442695
    %v2039 = vpow.pop %v2038
    %v2040 = vadd.f32 %v2039, 1.0
    %v2041 = vrcp.pop %v2040
    %v2042 = vmul.f32 %v2040, %v2041
    %v2043 = vsub.f32 1.0, %v2042
    %v2044 = vmul.f32 %v2041, %v2043
    %v2045 = vadd.f32 %v2041, %v2044
    %vm2046 = vweird.f32 %v2040
    %vm2047 = vweird.f32 %v2041
    %vm2048 = vmor %vm2046, %vm2047
    %v2049 = vsel %vm2048, %v2041, %v2045
    %v2050 = vand.u32 2147483647, %v2040
    %vm2051 = vcmp.eq.f32.partialorder %v2050, 8.507059e+37
    %v2052 = vand.u32 %v2040, 2147483648
    %v2053 = vor.u32 1.1754944e-38, %v2052
    %v2054 = vsel %vm2051, %v2053, %v2049
    %v2055 = vmul.f32 1.0, %v2054
    %v2056 = vadd.f32 %v1974, %v2014
    %v2057 = vxor.u32 %v2056, 2147483648
    %v2058 = vmul.f32 %v2057, 1.442695
    %v2059 = vpow.pop %v2058
    %v2060 = vadd.f32 %v2059, 1.0
    %v2061 = vrcp.pop %v2060
    %v2062 = vmul.f32 %v2060, %v2061
    %v2063 = vsub.f32 1.0, %v2062
    %v2064 = vmul.f32 %v2061, %v2063
    %v2065 = vadd.f32 %v2061, %v2064
    %vm2066 = vweird.f32 %v2060
    %vm2067 = vweird.f32 %v2061
    %vm2068 = vmor %vm2066, %vm2067
    %v2069 = vsel %vm2068, %v2061, %v2065
    %v2070 = vand.u32 2147483647, %v2060
    %vm2071 = vcmp.eq.f32.partialorder %v2070, 8.507059e+37
    %v2072 = vand.u32 %v2060, 2147483648
    %v2073 = vor.u32 1.1754944e-38, %v2072
    %v2074 = vsel %vm2071, %v2073, %v2069
    %v2075 = vmul.f32 1.0, %v2074
    %v2076 = vadd.f32 %v2034, %v277
    %v2077 = vmul.f32 %v2055, %v2076
    %v2078 = vadd.f32 %v1975, %v2077
    %v2079 = vtanh.pop %v2078
    %v2080 = vsub.f32 1.0, %v2075
    %v2081 = vmul.f32 %v2080, %v2079
    %v2082 = vmul.f32 %v2075, %v1803
    %v2083 = vadd.f32 %v2081, %v2082
    %2084 = vmatpush.msra.mxu0 %v224
    %2085 = vmatpush.msra.mxu0 %v221
    %2086 = vmatpush.msra.mxu0 %v218
    %2087 = vmatpush.msra.mxu0 %v215
    %2088 = vmatpush.msra.mxu0 %v212
    %2089 = vmatpush.msra.mxu0 %v209
    %2090 = vmatpush.msra.mxu0 %v206
    %2091 = vmatpush.msra.mxu0 %v203
    %2092 = vmatpush.msra.mxu0 %v200
    %2093 = vmatpush.msra.mxu0 %v197
    %2094 = vmatpush.msra.mxu0 %v194
    %2095 = vmatpush.msra.mxu0 %v191
    %2096 = vmatpush.msra.mxu0 %v188
    %2097 = vmatpush.msra.mxu0 %v185
    %2098 = vmatpush.msra.mxu0 %v182
    %2099 = vmatpush.msra.mxu0 %v179
    %2100 = vmatmul.f32.gmra.mxu0 %v2083
    %v2101 = vpop.f32.mrf.mxu0
    %v2102 = vadd.f32 %v285, %v2101
    %2103 = vdwg.mxu0
    %2104 = vmatpush.msra.mxu0 %v225
    %2105 = vmatpush.msra.mxu0 %v222
    %2106 = vmatpush.msra.mxu0 %v219
    %2107 = vmatpush.msra.mxu0 %v216
    %2108 = vmatpush.msra.mxu0 %v213
    %2109 = vmatpush.msra.mxu0 %v210
    %2110 = vmatpush.msra.mxu0 %v207
    %2111 = vmatpush.msra.mxu0 %v204
    %2112 = vmatpush.msra.mxu0 %v201
    %2113 = vmatpush.msra.mxu0 %v198
    %2114 = vmatpush.msra.mxu0 %v195
    %2115 = vmatpush.msra.mxu0 %v192
    %2116 = vmatpush.msra.mxu0 %v189
    %2117 = vmatpush.msra.mxu0 %v186
    %2118 = vmatpush.msra.mxu0 %v183
    %2119 = vmatpush.msra.mxu0 %v180
    %2120 = vmatmul.f32.gmra.mxu0 %v2083
    %v2121 = vpop.f32.mrf.mxu0
    %v2122 = vadd.f32 %v286, %v2121
    %2123 = vdwg.mxu0
    %2124 = vmatpush.msra.mxu0 %v226
    %2125 = vmatpush.msra.mxu0 %v223
    %2126 = vmatpush.msra.mxu0 %v220
    %2127 = vmatpush.msra.mxu0 %v217
    %2128 = vmatpush.msra.mxu0 %v214
    %2129 = vmatpush.msra.mxu0 %v211
    %2130 = vmatpush.msra.mxu0 %v208
    %2131 = vmatpush.msra.mxu0 %v205
    %2132 = vmatpush.msra.mxu0 %v202
    %2133 = vmatpush.msra.mxu0 %v199
    %2134 = vmatpush.msra.mxu0 %v196
    %2135 = vmatpush.msra.mxu0 %v193
    %2136 = vmatpush.msra.mxu0 %v190
    %2137 = vmatpush.msra.mxu0 %v187
    %2138 = vmatpush.msra.mxu0 %v184
    %2139 = vmatpush.msra.mxu0 %v181
    %2140 = vmatmul.f32.gmra.mxu0 %v2083
    %v2141 = vpop.f32.mrf.mxu0
    %v2142 = vadd.f32 %v287, %v2141
    %2143 = vdwg.mxu0
    %2144 = vmatpush.msra.mxu0 %v272
    %2145 = vmatpush.msra.mxu0 %v269
    %2146 = vmatpush.msra.mxu0 %v266
    %2147 = vmatpush.msra.mxu0 %v263
    %2148 = vmatpush.msra.mxu0 %v260
    %2149 = vmatpush.msra.mxu0 %v257
    %2150 = vmatpush.msra.mxu0 %v254
    %2151 = vmatpush.msra.mxu0 %v251
    %2152 = vmatpush.msra.mxu0 %v248
    %2153 = vmatpush.msra.mxu0 %v245
    %2154 = vmatpush.msra.mxu0 %v242
    %2155 = vmatpush.msra.mxu0 %v239
    %2156 = vmatpush.msra.mxu0 %v236
    %2157 = vmatpush.msra.mxu0 %v233
    %2158 = vmatpush.msra.mxu0 %v230
    %2159 = vmatpush.msra.mxu0 %v227
    %2160 = vmatmul.f32.gmra.mxu0 %v1971
    %v2161 = vpop.f32.mrf.mxu0
    %v2162 = vadd.f32 0.0, %v2161
    %2163 = vdwg.mxu0
    %2164 = vmatpush.msra.mxu0 %v273
    %2165 = vmatpush.msra.mxu0 %v270
    %2166 = vmatpush.msra.mxu0 %v267
    %2167 = vmatpush.msra.mxu0 %v264
    %2168 = vmatpush.msra.mxu0 %v261
    %2169 = vmatpush.msra.mxu0 %v258
    %2170 = vmatpush.msra.mxu0 %v255
    %2171 = vmatpush.msra.mxu0 %v252
    %2172 = vmatpush.msra.mxu0 %v249
    %2173 = vmatpush.msra.mxu0 %v246
    %2174 = vmatpush.msra.mxu0 %v243
    %2175 = vmatpush.msra.mxu0 %v240
    %2176 = vmatpush.msra.mxu0 %v237
    %2177 = vmatpush.msra.mxu0 %v234
    %2178 = vmatpush.msra.mxu0 %v231
    %2179 = vmatpush.msra.mxu0 %v228
    %2180 = vmatmul.f32.gmra.mxu0 %v1971
    %v2181 = vpop.f32.mrf.mxu0
    %v2182 = vadd.f32 0.0, %v2181
    %2183 = vdwg.mxu0
    %2184 = vmatpush.msra.mxu0 %v274
    %2185 = vmatpush.msra.mxu0 %v271
    %2186 = vmatpush.msra.mxu0 %v268
    %2187 = vmatpush.msra.mxu0 %v265
    %2188 = vmatpush.msra.mxu0 %v262
    %2189 = vmatpush.msra.mxu0 %v259
    %2190 = vmatpush.msra.mxu0 %v256
    %2191 = vmatpush.msra.mxu0 %v253
    %2192 = vmatpush.msra.mxu0 %v250
    %2193 = vmatpush.msra.mxu0 %v247
    %2194 = vmatpush.msra.mxu0 %v244
    %2195 = vmatpush.msra.mxu0 %v241
    %2196 = vmatpush.msra.mxu0 %v238
    %2197 = vmatpush.msra.mxu0 %v235
    %2198 = vmatpush.msra.mxu0 %v232
    %2199 = vmatpush.msra.mxu0 %v229
    %2200 = vmatmul.f32.gmra.mxu0 %v1971
    %v2201 = vpop.f32.mrf.mxu0
    %v2202 = vadd.f32 0.0, %v2201
    %2203 = vdwg.mxu0
    %v2204 = vadd.f32 %v2102, %v2162
    %v2205 = vxor.u32 %v2204, 2147483648
    %v2206 = vmul.f32 %v2205, 1.442695
    %v2207 = vpow.pop %v2206
    %v2208 = vadd.f32 %v2207, 1.0
    %v2209 = vrcp.pop %v2208
    %v2210 = vmul.f32 %v2208, %v2209
    %v2211 = vsub.f32 1.0, %v2210
    %v2212 = vmul.f32 %v2209, %v2211
    %v2213 = vadd.f32 %v2209, %v2212
    %vm2214 = vweird.f32 %v2208
    %vm2215 = vweird.f32 %v2209
    %vm2216 = vmor %vm2214, %vm2215
    %v2217 = vsel %vm2216, %v2209, %v2213
    %v2218 = vand.u32 2147483647, %v2208
    %vm2219 = vcmp.eq.f32.partialorder %v2218, 8.507059e+37
    %v2220 = vand.u32 %v2208, 2147483648
    %v2221 = vor.u32 1.1754944e-38, %v2220
    %v2222 = vsel %vm2219, %v2221, %v2217
    %v2223 = vmul.f32 1.0, %v2222
    %v2224 = vadd.f32 %v2122, %v2182
    %v2225 = vxor.u32 %v2224, 2147483648
    %v2226 = vmul.f32 %v2225, 1.442695
    %v2227 = vpow.pop %v2226
    %v2228 = vadd.f32 %v2227, 1.0
    %v2229 = vrcp.pop %v2228
    %v2230 = vmul.f32 %v2228, %v2229
    %v2231 = vsub.f32 1.0, %v2230
    %v2232 = vmul.f32 %v2229, %v2231
    %v2233 = vadd.f32 %v2229, %v2232
    %vm2234 = vweird.f32 %v2228
    %vm2235 = vweird.f32 %v2229
    %vm2236 = vmor %vm2234, %vm2235
    %v2237 = vsel %vm2236, %v2229, %v2233
    %v2238 = vand.u32 2147483647, %v2228
    %vm2239 = vcmp.eq.f32.partialorder %v2238, 8.507059e+37
    %v2240 = vand.u32 %v2228, 2147483648
    %v2241 = vor.u32 1.1754944e-38, %v2240
    %v2242 = vsel %vm2239, %v2241, %v2237
    %v2243 = vmul.f32 1.0, %v2242
    %v2244 = vadd.f32 %v2202, %v281
    %v2245 = vmul.f32 %v2223, %v2244
    %v2246 = vadd.f32 %v2142, %v2245
    %v2247 = vtanh.pop %v2246
    %v2248 = vsub.f32 1.0, %v2243
    %v2249 = vmul.f32 %v2248, %v2247
    %v2250 = vmul.f32 %v2243, %v1971
    %v2251 = vadd.f32 %v2249, %v2250
    %s2252 = scalar_lea.vmem [#allocation4], 168
    %v2253 = vld [vmem:[%s2252] sm:$0xff]
    %v2254 = vld [vmem:[%s2252 + $0x8] sm:$0xff]
    %v2255 = vld [vmem:[%s2252 + $0x10] sm:$0xff]
    %2256 = vmatpush.msra.mxu0 %v176
    %2257 = vmatpush.msra.mxu0 %v173
    %2258 = vmatpush.msra.mxu0 %v170
    %2259 = vmatpush.msra.mxu0 %v167
    %2260 = vmatpush.msra.mxu0 %v164
    %2261 = vmatpush.msra.mxu0 %v161
    %2262 = vmatpush.msra.mxu0 %v158
    %2263 = vmatpush.msra.mxu0 %v155
    %2264 = vmatpush.msra.mxu0 %v152
    %2265 = vmatpush.msra.mxu0 %v149
    %2266 = vmatpush.msra.mxu0 %v146
    %2267 = vmatpush.msra.mxu0 %v143
    %2268 = vmatpush.msra.mxu0 %v140
    %2269 = vmatpush.msra.mxu0 %v137
    %2270 = vmatpush.msra.mxu0 %v134
    %2271 = vmatpush.msra.mxu0 %v131
    %2272 = vmatmul.f32.gmra.mxu0 %v2083
    %v2273 = vpop.f32.mrf.mxu0
    %v2274 = vadd.f32 0.0, %v2273
    %2275 = vdwg.mxu0
    %2276 = vmatpush.msra.mxu0 %v177
    %2277 = vmatpush.msra.mxu0 %v174
    %2278 = vmatpush.msra.mxu0 %v171
    %2279 = vmatpush.msra.mxu0 %v168
    %2280 = vmatpush.msra.mxu0 %v165
    %2281 = vmatpush.msra.mxu0 %v162
    %2282 = vmatpush.msra.mxu0 %v159
    %2283 = vmatpush.msra.mxu0 %v156
    %2284 = vmatpush.msra.mxu0 %v153
    %2285 = vmatpush.msra.mxu0 %v150
    %2286 = vmatpush.msra.mxu0 %v147
    %2287 = vmatpush.msra.mxu0 %v144
    %2288 = vmatpush.msra.mxu0 %v141
    %2289 = vmatpush.msra.mxu0 %v138
    %2290 = vmatpush.msra.mxu0 %v135
    %2291 = vmatpush.msra.mxu0 %v132
    %2292 = vmatmul.f32.gmra.mxu0 %v2083
    %v2293 = vpop.f32.mrf.mxu0
    %v2294 = vadd.f32 0.0, %v2293
    %2295 = vdwg.mxu0
    %2296 = vmatpush.msra.mxu0 %v178
    %2297 = vmatpush.msra.mxu0 %v175
    %2298 = vmatpush.msra.mxu0 %v172
    %2299 = vmatpush.msra.mxu0 %v169
    %2300 = vmatpush.msra.mxu0 %v166
    %2301 = vmatpush.msra.mxu0 %v163
    %2302 = vmatpush.msra.mxu0 %v160
    %2303 = vmatpush.msra.mxu0 %v157
    %2304 = vmatpush.msra.mxu0 %v154
    %2305 = vmatpush.msra.mxu0 %v151
    %2306 = vmatpush.msra.mxu0 %v148
    %2307 = vmatpush.msra.mxu0 %v145
    %2308 = vmatpush.msra.mxu0 %v142
    %2309 = vmatpush.msra.mxu0 %v139
    %2310 = vmatpush.msra.mxu0 %v136
    %2311 = vmatpush.msra.mxu0 %v133
    %2312 = vmatmul.f32.gmra.mxu0 %v2083
    %v2313 = vpop.f32.mrf.mxu0
    %v2314 = vadd.f32 0.0, %v2313
    %2315 = vdwg.mxu0
    %v2316 = vadd.f32 %v2253, %v2274
    %v2317 = vxor.u32 %v2316, 2147483648
    %v2318 = vmul.f32 %v2317, 1.442695
    %v2319 = vpow.pop %v2318
    %v2320 = vadd.f32 %v2319, 1.0
    %v2321 = vrcp.pop %v2320
    %v2322 = vmul.f32 %v2320, %v2321
    %v2323 = vsub.f32 1.0, %v2322
    %v2324 = vmul.f32 %v2321, %v2323
    %v2325 = vadd.f32 %v2321, %v2324
    %vm2326 = vweird.f32 %v2320
    %vm2327 = vweird.f32 %v2321
    %vm2328 = vmor %vm2326, %vm2327
    %v2329 = vsel %vm2328, %v2321, %v2325
    %v2330 = vand.u32 2147483647, %v2320
    %vm2331 = vcmp.eq.f32.partialorder %v2330, 8.507059e+37
    %v2332 = vand.u32 %v2320, 2147483648
    %v2333 = vor.u32 1.1754944e-38, %v2332
    %v2334 = vsel %vm2331, %v2333, %v2329
    %v2335 = vmul.f32 1.0, %v2334
    %v2336 = vadd.f32 %v2254, %v2294
    %v2337 = vxor.u32 %v2336, 2147483648
    %v2338 = vmul.f32 %v2337, 1.442695
    %v2339 = vpow.pop %v2338
    %v2340 = vadd.f32 %v2339, 1.0
    %v2341 = vrcp.pop %v2340
    %v2342 = vmul.f32 %v2340, %v2341
    %v2343 = vsub.f32 1.0, %v2342
    %v2344 = vmul.f32 %v2341, %v2343
    %v2345 = vadd.f32 %v2341, %v2344
    %vm2346 = vweird.f32 %v2340
    %vm2347 = vweird.f32 %v2341
    %vm2348 = vmor %vm2346, %vm2347
    %v2349 = vsel %vm2348, %v2341, %v2345
    %v2350 = vand.u32 2147483647, %v2340
    %vm2351 = vcmp.eq.f32.partialorder %v2350, 8.507059e+37
    %v2352 = vand.u32 %v2340, 2147483648
    %v2353 = vor.u32 1.1754944e-38, %v2352
    %v2354 = vsel %vm2351, %v2353, %v2349
    %v2355 = vmul.f32 1.0, %v2354
    %v2356 = vadd.f32 %v2314, %v277
    %v2357 = vmul.f32 %v2335, %v2356
    %v2358 = vadd.f32 %v2255, %v2357
    %v2359 = vtanh.pop %v2358
    %v2360 = vsub.f32 1.0, %v2355
    %v2361 = vmul.f32 %v2360, %v2359
    %v2362 = vmul.f32 %v2355, %v2083
    %v2363 = vadd.f32 %v2361, %v2362
    %2364 = vmatpush.msra.mxu0 %v224
    %2365 = vmatpush.msra.mxu0 %v221
    %2366 = vmatpush.msra.mxu0 %v218
    %2367 = vmatpush.msra.mxu0 %v215
    %2368 = vmatpush.msra.mxu0 %v212
    %2369 = vmatpush.msra.mxu0 %v209
    %2370 = vmatpush.msra.mxu0 %v206
    %2371 = vmatpush.msra.mxu0 %v203
    %2372 = vmatpush.msra.mxu0 %v200
    %2373 = vmatpush.msra.mxu0 %v197
    %2374 = vmatpush.msra.mxu0 %v194
    %2375 = vmatpush.msra.mxu0 %v191
    %2376 = vmatpush.msra.mxu0 %v188
    %2377 = vmatpush.msra.mxu0 %v185
    %2378 = vmatpush.msra.mxu0 %v182
    %2379 = vmatpush.msra.mxu0 %v179
    %2380 = vmatmul.f32.gmra.mxu0 %v2363
    %v2381 = vpop.f32.mrf.mxu0
    %v2382 = vadd.f32 %v285, %v2381
    %2383 = vdwg.mxu0
    %2384 = vmatpush.msra.mxu0 %v225
    %2385 = vmatpush.msra.mxu0 %v222
    %2386 = vmatpush.msra.mxu0 %v219
    %2387 = vmatpush.msra.mxu0 %v216
    %2388 = vmatpush.msra.mxu0 %v213
    %2389 = vmatpush.msra.mxu0 %v210
    %2390 = vmatpush.msra.mxu0 %v207
    %2391 = vmatpush.msra.mxu0 %v204
    %2392 = vmatpush.msra.mxu0 %v201
    %2393 = vmatpush.msra.mxu0 %v198
    %2394 = vmatpush.msra.mxu0 %v195
    %2395 = vmatpush.msra.mxu0 %v192
    %2396 = vmatpush.msra.mxu0 %v189
    %2397 = vmatpush.msra.mxu0 %v186
    %2398 = vmatpush.msra.mxu0 %v183
    %2399 = vmatpush.msra.mxu0 %v180
    %2400 = vmatmul.f32.gmra.mxu0 %v2363
    %v2401 = vpop.f32.mrf.mxu0
    %v2402 = vadd.f32 %v286, %v2401
    %2403 = vdwg.mxu0
    %2404 = vmatpush.msra.mxu0 %v226
    %2405 = vmatpush.msra.mxu0 %v223
    %2406 = vmatpush.msra.mxu0 %v220
    %2407 = vmatpush.msra.mxu0 %v217
    %2408 = vmatpush.msra.mxu0 %v214
    %2409 = vmatpush.msra.mxu0 %v211
    %2410 = vmatpush.msra.mxu0 %v208
    %2411 = vmatpush.msra.mxu0 %v205
    %2412 = vmatpush.msra.mxu0 %v202
    %2413 = vmatpush.msra.mxu0 %v199
    %2414 = vmatpush.msra.mxu0 %v196
    %2415 = vmatpush.msra.mxu0 %v193
    %2416 = vmatpush.msra.mxu0 %v190
    %2417 = vmatpush.msra.mxu0 %v187
    %2418 = vmatpush.msra.mxu0 %v184
    %2419 = vmatpush.msra.mxu0 %v181
    %2420 = vmatmul.f32.gmra.mxu0 %v2363
    %v2421 = vpop.f32.mrf.mxu0
    %v2422 = vadd.f32 %v287, %v2421
    %2423 = vdwg.mxu0
    %2424 = vmatpush.msra.mxu0 %v272
    %2425 = vmatpush.msra.mxu0 %v269
    %2426 = vmatpush.msra.mxu0 %v266
    %2427 = vmatpush.msra.mxu0 %v263
    %2428 = vmatpush.msra.mxu0 %v260
    %2429 = vmatpush.msra.mxu0 %v257
    %2430 = vmatpush.msra.mxu0 %v254
    %2431 = vmatpush.msra.mxu0 %v251
    %2432 = vmatpush.msra.mxu0 %v248
    %2433 = vmatpush.msra.mxu0 %v245
    %2434 = vmatpush.msra.mxu0 %v242
    %2435 = vmatpush.msra.mxu0 %v239
    %2436 = vmatpush.msra.mxu0 %v236
    %2437 = vmatpush.msra.mxu0 %v233
    %2438 = vmatpush.msra.mxu0 %v230
    %2439 = vmatpush.msra.mxu0 %v227
    %2440 = vmatmul.f32.gmra.mxu0 %v2251
    %v2441 = vpop.f32.mrf.mxu0
    %v2442 = vadd.f32 0.0, %v2441
    %2443 = vdwg.mxu0
    %2444 = vmatpush.msra.mxu0 %v273
    %2445 = vmatpush.msra.mxu0 %v270
    %2446 = vmatpush.msra.mxu0 %v267
    %2447 = vmatpush.msra.mxu0 %v264
    %2448 = vmatpush.msra.mxu0 %v261
    %2449 = vmatpush.msra.mxu0 %v258
    %2450 = vmatpush.msra.mxu0 %v255
    %2451 = vmatpush.msra.mxu0 %v252
    %2452 = vmatpush.msra.mxu0 %v249
    %2453 = vmatpush.msra.mxu0 %v246
    %2454 = vmatpush.msra.mxu0 %v243
    %2455 = vmatpush.msra.mxu0 %v240
    %2456 = vmatpush.msra.mxu0 %v237
    %2457 = vmatpush.msra.mxu0 %v234
    %2458 = vmatpush.msra.mxu0 %v231
    %2459 = vmatpush.msra.mxu0 %v228
    %2460 = vmatmul.f32.gmra.mxu0 %v2251
    %v2461 = vpop.f32.mrf.mxu0
    %v2462 = vadd.f32 0.0, %v2461
    %2463 = vdwg.mxu0
    %2464 = vmatpush.msra.mxu0 %v274
    %2465 = vmatpush.msra.mxu0 %v271
    %2466 = vmatpush.msra.mxu0 %v268
    %2467 = vmatpush.msra.mxu0 %v265
    %2468 = vmatpush.msra.mxu0 %v262
    %2469 = vmatpush.msra.mxu0 %v259
    %2470 = vmatpush.msra.mxu0 %v256
    %2471 = vmatpush.msra.mxu0 %v253
    %2472 = vmatpush.msra.mxu0 %v250
    %2473 = vmatpush.msra.mxu0 %v247
    %2474 = vmatpush.msra.mxu0 %v244
    %2475 = vmatpush.msra.mxu0 %v241
    %2476 = vmatpush.msra.mxu0 %v238
    %2477 = vmatpush.msra.mxu0 %v235
    %2478 = vmatpush.msra.mxu0 %v232
    %2479 = vmatpush.msra.mxu0 %v229
    %2480 = vmatmul.f32.gmra.mxu0 %v2251
    %v2481 = vpop.f32.mrf.mxu0
    %v2482 = vadd.f32 0.0, %v2481
    %2483 = vdwg.mxu0
    %v2484 = vadd.f32 %v2382, %v2442
    %v2485 = vxor.u32 %v2484, 2147483648
    %v2486 = vmul.f32 %v2485, 1.442695
    %v2487 = vpow.pop %v2486
    %v2488 = vadd.f32 %v2487, 1.0
    %v2489 = vrcp.pop %v2488
    %v2490 = vmul.f32 %v2488, %v2489
    %v2491 = vsub.f32 1.0, %v2490
    %v2492 = vmul.f32 %v2489, %v2491
    %v2493 = vadd.f32 %v2489, %v2492
    %vm2494 = vweird.f32 %v2488
    %vm2495 = vweird.f32 %v2489
    %vm2496 = vmor %vm2494, %vm2495
    %v2497 = vsel %vm2496, %v2489, %v2493
    %v2498 = vand.u32 2147483647, %v2488
    %vm2499 = vcmp.eq.f32.partialorder %v2498, 8.507059e+37
    %v2500 = vand.u32 %v2488, 2147483648
    %v2501 = vor.u32 1.1754944e-38, %v2500
    %v2502 = vsel %vm2499, %v2501, %v2497
    %v2503 = vmul.f32 1.0, %v2502
    %v2504 = vadd.f32 %v2402, %v2462
    %v2505 = vxor.u32 %v2504, 2147483648
    %v2506 = vmul.f32 %v2505, 1.442695
    %v2507 = vpow.pop %v2506
    %v2508 = vadd.f32 %v2507, 1.0
    %v2509 = vrcp.pop %v2508
    %v2510 = vmul.f32 %v2508, %v2509
    %v2511 = vsub.f32 1.0, %v2510
    %v2512 = vmul.f32 %v2509, %v2511
    %v2513 = vadd.f32 %v2509, %v2512
    %vm2514 = vweird.f32 %v2508
    %vm2515 = vweird.f32 %v2509
    %vm2516 = vmor %vm2514, %vm2515
    %v2517 = vsel %vm2516, %v2509, %v2513
    %v2518 = vand.u32 2147483647, %v2508
    %vm2519 = vcmp.eq.f32.partialorder %v2518, 8.507059e+37
    %v2520 = vand.u32 %v2508, 2147483648
    %v2521 = vor.u32 1.1754944e-38, %v2520
    %v2522 = vsel %vm2519, %v2521, %v2517
    %v2523 = vmul.f32 1.0, %v2522
    %v2524 = vadd.f32 %v2482, %v281
    %v2525 = vmul.f32 %v2503, %v2524
    %v2526 = vadd.f32 %v2422, %v2525
    %v2527 = vtanh.pop %v2526
    %v2528 = vsub.f32 1.0, %v2523
    %v2529 = vmul.f32 %v2528, %v2527
    %v2530 = vmul.f32 %v2523, %v2251
    %v2531 = vadd.f32 %v2529, %v2530
    %2532 = vst [vmem:[#allocation2] sm:$0xff] %v2363
    %2533 = vst [vmem:[#allocation3] sm:$0xff] %v2531
    // Predicated region
    $region66: #{tpu_custom_call.1} parent=1 // pred_check
      %p2534 = pneg %p125
    $region67: #{tpu_custom_call.1} parent=1 // pred_check_branch
      %2536 = sbr.rel (%p2534) target = $region69
    $region68: #{tpu_custom_call.1} parent=1 // pred_region
      %v2537 = vld [vmem:[#allocation13] sm:$0xff]
      %v2538 = vld [vmem:[#allocation13 + $0x8] sm:$0xff]
      %v2539 = vld [vmem:[#allocation13 + $0x10] sm:$0xff]
      %v2540 = vld [vmem:[#allocation13 + $0x18] sm:$0xff]
      %v2541 = vld [vmem:[#allocation13 + $0x20] sm:$0xff]
      %v2542 = vld [vmem:[#allocation13 + $0x28] sm:$0xff]
      %v2543 = vld [vmem:[#allocation13 + $0x30] sm:$0xff]
      %v2544 = vld [vmem:[#allocation13 + $0x38] sm:$0xff]
      %v2545 = vld [vmem:[#allocation13 + $0x40] sm:$0xff]
      %v2546 = vld [vmem:[#allocation13 + $0x48] sm:$0xff]
      %v2547 = vld [vmem:[#allocation13 + $0x50] sm:$0xff]
      %v2548 = vld [vmem:[#allocation13 + $0x58] sm:$0xff]
      %v2549 = vld [vmem:[#allocation13 + $0x60] sm:$0xff]
      %v2550 = vld [vmem:[#allocation13 + $0x68] sm:$0xff]
      %v2551 = vld [vmem:[#allocation13 + $0x70] sm:$0xff]
      %v2552 = vld [vmem:[#allocation13 + $0x78] sm:$0xff]
      %v2553 = vld [vmem:[%s8] sm:$0x1]
      %v2555 = vperm.slane %v2553, 0
      %2557 = vmatpush.msra.mxu0 %v2552
      %2558 = vmatpush.msra.mxu0 %v2551
      %2559 = vmatpush.msra.mxu0 %v2550
      %2560 = vmatpush.msra.mxu0 %v2549
      %2561 = vmatpush.msra.mxu0 %v2548
      %2562 = vmatpush.msra.mxu0 %v2547
      %2563 = vmatpush.msra.mxu0 %v2546
      %2564 = vmatpush.msra.mxu0 %v2545
      %2565 = vmatpush.msra.mxu0 %v2544
      %2566 = vmatpush.msra.mxu0 %v2543
      %2567 = vmatpush.msra.mxu0 %v2542
      %2568 = vmatpush.msra.mxu0 %v2541
      %2569 = vmatpush.msra.mxu0 %v2540
      %2570 = vmatpush.msra.mxu0 %v2539
      %2571 = vmatpush.msra.mxu0 %v2538
      %2572 = vmatpush.msra.mxu0 %v2537
      %2573 = vmatmul.f32.gmra.mxu0 %v2531
      %v2574 = vpop.f32.mrf.mxu0
      %v2575 = vadd.f32 %v2555, %v2574
      %2576 = vdwg.mxu0
      %2577 = vst [vmem:[#allocation15] sm:$0xff] %v2575
    $region69: #{tpu_custom_call.1} parent=1 // pred_fallthru
      _
    // Predicated region
    $region70: #{tpu_custom_call.1} parent=1 // pred_check
      _
    $region71: #{tpu_custom_call.1} parent=1 // pred_check_branch
      %2579 = sbr.rel (0) target = $region73
    $region72: #{tpu_custom_call.1} parent=1 // pred_region
      %2581 = vsyncadd [#allocation6], 0
      %s2583 = sshll.u32 [#allocation15], 4
      %s2584 = int_to_ptr.vmem [resolvable:$true] %s2583
      %s2585 = sshll.u32 %s9, 4
      %s2586 = int_to_ptr.hbm [resolvable:$true] %s2585
      %2588 = dma.vmem_to_hbm [thread:$0]  %s2584, 128, %s2586, [#allocation6]
    $region73: #{tpu_custom_call.1} parent=1 // pred_fallthru
      _
    // Predicated region
    $region74: #{tpu_custom_call.1} parent=1 // pred_check
      _
    $region75: #{tpu_custom_call.1} parent=1 // pred_check_branch
      %2590 = sbr.rel (0) target = $region77
    $region76: #{tpu_custom_call.1} parent=1 // pred_region
      %2592 = dma.done [#allocation6], 128
    $region77: #{tpu_custom_call.1} parent=1 // pred_fallthru
      _
    %2593 = vsyncpa [#allocation5], 1
    %2594 = vsyncpa [#allocation8], 1
    %2595 = vsyncpa [#allocation11], 1
    %2596 = vsyncpa [#allocation14], 1
    %2597 = vsyncpa [#allocation6], 1

</llo_original>
